<compile_context>
chip_gen: v7x
topology: tpu7x:2x2x1
jax: 0.10.0
libtpu: 0.0.40
codegen_flags: <defaults>
</compile_context>

<pallas_src>
import numpy as np
import jax
import jax.numpy as jnp
from jax.experimental import pallas as pl
from jax.experimental.pallas import tpu as pltpu

# ---------------- small config consistent with the module ----------------
BATCH = 2
SEQ_LEN = 8                 # extractor.padding_size
EMB = 32                    # word embedding size (Conv1d runs over this axis)
VOCAB = 50                  # vocabulary size; table has VOCAB+1 rows, row 0 = padding
KERNEL_SIZES = (2, 3, 4, 5)
KMAX = max(KERNEL_SIZES)
OUT_SIZE = 32
STRIDE = 2
GRAPH_DIM = 200             # per reblog type -> 2*200 = 400 (fc_graph Linear(400,128))
NONTEXT_DIM = 10

B_PAD = ((BATCH + 7) // 8) * 8      # pad batch rows to a full sublane group (8)
BT = 2 * B_PAD                      # 16 rows: reblog rows [0:8], nonreblog rows [8:16]
ADD_PAD = 32                        # lane-pad the non-text features
HEAD_PAD = 128                      # lane-dense final output width

CONV_LENS = {k: (EMB - k) // STRIDE + 1 for k in KERNEL_SIZES}             # 16,15,15,14
POOL_LENS = {k: (CONV_LENS[k] - k) // STRIDE + 1 for k in KERNEL_SIZES}    # 8,7,6,5

# PyTorch flattened layout of post_embs/text_embs: per output channel o, the 2*sum(lp)
# columns are ordered [R_k2, NR_k2, R_k3, NR_k3, ...].
PER_O = 2 * sum(POOL_LENS.values())                 # 52
COLBLOCK = {}
_c = 0
for _k in KERNEL_SIZES:
    COLBLOCK[(_k, "reblog")] = _c;    _c += POOL_LENS[_k]
    COLBLOCK[(_k, "nonreblog")] = _c; _c += POOL_LENS[_k]
POST_FLAT = OUT_SIZE * PER_O                        # 1664
FLAT = POST_FLAT + NONTEXT_DIM + POST_FLAT + OUT_SIZE   # 3370 (fc_head input dim)

N_GROUPS = sum(k * POOL_LENS[k] for k in KERNEL_SIZES)   # 86 (k, j, p) groups
N_IM2COL = BT * N_GROUPS                                 # 1376 im2col rows per branch
H_ROWS = BT * sum(POOL_LENS.values())                    # 416 packed head-weight rows


def _round16(n):
    return ((n + 15) // 16) * 16


KPAD_POST = _round16(SEQ_LEN * KMAX)        # 48  (bf16 sublane-pack friendly K)
KPAD_TEXT = _round16(2 * SEQ_LEN * KMAX)    # 80


# ---------------- the single fused Pallas kernel ----------------
def fused_forward_kernel(xcp_ref, wdp_ref, xct_ref, wdt_ref, bias_ref,
                         hp_ref, ht_ref,
                         graph_ref, w1_ref, b1_ref, w2_ref, b2_ref,
                         xadd_ref, whadd_ref, whg_ref, bh_ref,
                         o_ref):
    def branch_head_contrib(xc_ref, wd_ref, h_ref, bias_row0):
        """Conv+ReLU+MaxPool for one text branch and its fc_head partial sum.

        xc_ref rows are ordered (k, j, p, b_total); all row-block offsets below are
        static multiples of 16 sublanes, so every slice is alignment-free on the VPU.
        Returns acc (BT, 32): acc[b_total, o] = sum_{k,p} pooled[k,b_total,o,p]*wh[...].
        """
        acc = jnp.zeros((BT, OUT_SIZE), jnp.float32)
        row_off = 0
        h_off = 0
        for k_idx, k in enumerate(KERNEL_SIZES):        # static unroll, 4 iterations
            lp = POOL_LENS[k]
            G = lp * BT                                 # rows per pooling offset j
            conv = jnp.dot(xc_ref[row_off:row_off + k * G, :], wd_ref[k_idx],
                           preferred_element_type=jnp.float32)        # (k*G, 32)
            m = conv[0:G, :]
            for j in range(1, k):                       # MaxPool1d over offsets j
                m = jnp.maximum(m, conv[j * G:(j + 1) * G, :])
            # relu(max_j(conv_j) + bias) == max_j relu(conv_j + bias): exact.
            pooled = jnp.maximum(
                m + bias_ref[bias_row0 + k_idx:bias_row0 + k_idx + 1, :], 0.0)  # (G, 32)
            # fc_head partial: multiply by row-packed head weights, sum pool positions.
            prod = pooled * h_ref[h_off:h_off + G, :]
            part = prod[0:BT, :]
            for p in range(1, lp):
                part = part + prod[p * BT:(p + 1) * BT, :]
            acc = acc + part
            row_off += k * G
            h_off += G
        return acc

    acc = branch_head_contrib(xcp_ref, wdp_ref, hp_ref, 0)                    # post/tag
    acc = acc + branch_head_contrib(xct_ref, wdt_ref, ht_ref, len(KERNEL_SIZES))  # text

    # fc_graph: Linear(400,128) + ReLU + Linear(128,32) + ReLU (bf16 weights, f32 acc)
    h1 = jnp.maximum(jnp.dot(graph_ref[...], w1_ref[...],
                             preferred_element_type=jnp.float32) + b1_ref[...], 0.0)
    gemb = jnp.maximum(jnp.dot(h1.astype(jnp.bfloat16), w2_ref[...],
                               preferred_element_type=jnp.float32) + b2_ref[...], 0.0)

    # fc_block: Linear(FLAT, 1) + Dropout(p=0) (identity) + Sigmoid.
    # Combine reblog rows [0:B_PAD] + nonreblog rows [B_PAD:BT], add the nontext and
    # graph head contributions on the 32-lane axis, then ONE lane reduce.
    tot = (acc[0:B_PAD, :] + acc[B_PAD:BT, :]
           + gemb * whg_ref[...]
           + xadd_ref[...] * whadd_ref[...])                   # (B_PAD, 32)
    y = jnp.sum(tot, axis=1, keepdims=True) + bh_ref[...]      # (B_PAD, 1)
    # sigmoid (exact in f32: exp(-y) overflow -> inf -> 1/inf = 0)
    o_ref[...] = jnp.broadcast_to(1.0 / (1.0 + jnp.exp(-y)), (B_PAD, HEAD_PAD))


def _full_spec(shape):
    return pl.BlockSpec(shape, lambda *args, _n=len(shape): (0,) * _n)


# ---------------- one-time host-side parameter prep ----------------
def build_conv_pack(conv_params, channels):
    """Dense per-kernel-size conv weights: Wd[k_idx, c*k+i, o] = w_k[o, c, i]."""
    kpad = _round16(channels * KMAX)
    Wd = np.zeros((len(KERNEL_SIZES), kpad, OUT_SIZE), np.float32)
    Bias = np.zeros((len(KERNEL_SIZES), OUT_SIZE), np.float32)
    for k_idx, k in enumerate(KERNEL_SIZES):
        w, b = conv_params[k]                      # (O, C, k), (O,)
        Wd[k_idx, :channels * k, :] = w.transpose(1, 2, 0).reshape(channels * k, OUT_SIZE)
        Bias[k_idx] = b
    return jnp.asarray(Wd, dtype=jnp.bfloat16), Bias


def build_im2col_indices(channels):
    """Gather indices for the host-side im2col.

    Row order (k, j, p, b_total); row = group*BT + b_total.
    Feature order c*k + i (zero index for padded columns; the matching conv-weight rows
    are zero so padded columns never contribute)."""
    kpad = _round16(channels * KMAX)
    feat, b_idx = [], []
    for k in KERNEL_SIZES:
        for j in range(k):
            for p in range(POOL_LENS[k]):
                fi = np.zeros((kpad,), np.int32)
                for c in range(channels):
                    for i in range(k):
                        fi[c * k + i] = c * EMB + 2 * (STRIDE * p + j) + i
                for b in range(BT):
                    feat.append(fi)
                    b_idx.append(b)
    return (jnp.asarray(np.asarray(b_idx, np.int32)),
            jnp.asarray(np.stack(feat).astype(np.int32)))


def build_head_rows(wh, base):
    """Pack the fc_head weights into the pooled-row layout: H[p*BT + b_total, o]."""
    H = np.zeros((H_ROWS, OUT_SIZE), np.float32)
    hoff = 0
    for k in KERNEL_SIZES:
        lp = POOL_LENS[k]
        for branch, b0 in (("reblog", 0), ("nonreblog", B_PAD)):
            cb = COLBLOCK[(k, branch)]
            col = base + np.arange(OUT_SIZE)[None, :] * PER_O + cb + np.arange(lp)[:, None]
            block = wh[col, 0]                     # (lp, OUT_SIZE)
            for b in range(b0, b0 + B_PAD):
                H[hoff + np.arange(lp) * BT + b, :] = block
        hoff += lp * BT
    return jnp.asarray(H)


def init_params():
    rng = np.random.default_rng(0)

    def lin(fan_in, shape):
        bound = 1.0 / np.sqrt(fan_in)
        return rng.uniform(-bound, bound, size=shape).astype(np.float32)

    params = {}
    word_vecs = 0.1 * rng.standard_normal((VOCAB, EMB)).astype(np.float32)
    params["embedding"] = np.concatenate([np.zeros((1, EMB), np.float32), word_vecs], axis=0)
    params["conv_post"] = {k: (lin(SEQ_LEN * k, (OUT_SIZE, SEQ_LEN, k)),
                               lin(SEQ_LEN * k, (OUT_SIZE,))) for k in KERNEL_SIZES}
    params["conv_text"] = {k: (lin(2 * SEQ_LEN * k, (OUT_SIZE, 2 * SEQ_LEN, k)),
                               lin(2 * SEQ_LEN * k, (OUT_SIZE,))) for k in KERNEL_SIZES}
    params["fc_graph"] = (lin(2 * GRAPH_DIM, (2 * GRAPH_DIM, 128)), lin(2 * GRAPH_DIM, (128,)),
                          lin(128, (128, 32)), lin(128, (32,)))
    params["fc_head"] = (lin(FLAT, (FLAT, 1)), lin(FLAT, (1,)))
    return params


def prep_params(params):
    prep = {"embedding": jnp.asarray(params["embedding"])}
    prep["Wd_post"], bias_p = build_conv_pack(params["conv_post"], SEQ_LEN)
    prep["Wd_text"], bias_t = build_conv_pack(params["conv_text"], 2 * SEQ_LEN)
    prep["bias"] = jnp.asarray(np.concatenate([bias_p, bias_t], axis=0))   # (8, 32) f32
    prep["b_idx"], prep["fidx_post"] = build_im2col_indices(SEQ_LEN)
    _, prep["fidx_text"] = build_im2col_indices(2 * SEQ_LEN)

    w1, b1, w2, b2 = params["fc_graph"]
    prep["w1"], prep["b1"] = jnp.asarray(w1, dtype=jnp.bfloat16), jnp.asarray(b1[None, :])
    prep["w2"], prep["b2"] = jnp.asarray(w2, dtype=jnp.bfloat16), jnp.asarray(b2[None, :])

    wh, bh = params["fc_head"]
    prep["H_post"] = build_head_rows(wh, 0)
    prep["H_text"] = build_head_rows(wh, POST_FLAT + NONTEXT_DIM)
    whadd = np.zeros((1, ADD_PAD), np.float32)
    whadd[0, :NONTEXT_DIM] = wh[POST_FLAT:POST_FLAT + NONTEXT_DIM, 0]
    prep["whadd"] = jnp.asarray(whadd)
    prep["whg"] = jnp.asarray(wh[2 * POST_FLAT + NONTEXT_DIM:, 0][None, :])  # (1, 32)
    prep["bh"] = jnp.asarray(bh.reshape(1, 1))
    return prep


# ---------------- forward (embedding gather / im2col / padding = plain-JAX glue) ----------------
def forward(x, prep):
    b = x.shape[0]
    assert b <= B_PAD
    s, g = SEQ_LEN, GRAPH_DIM
    tag_r = x[:, 0:s].astype(jnp.int32)
    tag_nr = x[:, s:2 * s].astype(jnp.int32)
    text_r = x[:, 2 * s:4 * s].astype(jnp.int32)
    text_nr = x[:, 4 * s:6 * s].astype(jnp.int32)
    graph = x[:, 6 * s:6 * s + 2 * g].astype(jnp.float32)
    x_add = x[:, 6 * s + 2 * g:6 * s + 2 * g + NONTEXT_DIM].astype(jnp.float32)

    emb = prep["embedding"]

    def emb_flat(tok):                           # (b, L) tokens -> (B_PAD, L*EMB)
        e = emb[tok].reshape(b, -1)
        return jnp.pad(e, ((0, B_PAD - b), (0, 0)))

    # reblog rows [0:B_PAD], nonreblog rows [B_PAD:BT] (same conv weights for both)
    xp_flat = jnp.concatenate([emb_flat(tag_r), emb_flat(tag_nr)], axis=0)    # (16, 256)
    xt_flat = jnp.concatenate([emb_flat(text_r), emb_flat(text_nr)], axis=0)  # (16, 512)

    # Host/XLA-side im2col (perf-review item): the sparsity that used to live in the
    # Toeplitz weights now lives in this tiny gather, feeding dense in-kernel matmuls.
    b_idx = prep["b_idx"][:, None]
    xcol_p = xp_flat[b_idx, prep["fidx_post"]].astype(jnp.bfloat16)   # (1376, 48)
    xcol_t = xt_flat[b_idx, prep["fidx_text"]].astype(jnp.bfloat16)   # (1376, 80)

    graph_p = jnp.pad(graph, ((0, B_PAD - b), (0, 0))).astype(jnp.bfloat16)
    xadd_p = jnp.pad(x_add, ((0, B_PAD - b), (0, ADD_PAD - NONTEXT_DIM)))

    args = (xcol_p, prep["Wd_post"], xcol_t, prep["Wd_text"], prep["bias"],
            prep["H_post"], prep["H_text"],
            graph_p, prep["w1"], prep["b1"], prep["w2"], prep["b2"],
            xadd_p, prep["whadd"], prep["whg"], prep["bh"])

    out = pl.pallas_call(
        fused_forward_kernel,
        out_shape=jax.ShapeDtypeStruct((B_PAD, HEAD_PAD), jnp.float32),
        grid=(1,),      # ~0.6 MiB total input traffic -> launch-bound; no pipelining needed
        in_specs=[_full_spec(a.shape) for a in args],
        out_specs=_full_spec((B_PAD, HEAD_PAD)),
        compiler_params=pltpu.CompilerParams(
            dimension_semantics=("arbitrary",),
            vmem_limit_bytes=16 * 1024 * 1024),   # right-sized; safe under v7x's 64 MiB
    )(*args)
    return out[:b, 0]                            # matches torch .squeeze()


# ---------------- plain-numpy reference (mirrors the PyTorch module) ----------------
def reference_forward(x, params):
    x = np.asarray(x, np.float32)
    b, s, g = x.shape[0], SEQ_LEN, GRAPH_DIM
    emb = params["embedding"]
    tok = x[:, :6 * s].astype(np.int64)
    tag = {"reblog": emb[tok[:, 0:s]], "nonreblog": emb[tok[:, s:2 * s]]}
    txt = {"reblog": emb[tok[:, 2 * s:4 * s]], "nonreblog": emb[tok[:, 4 * s:6 * s]]}
    graph = x[:, 6 * s:6 * s + 2 * g]
    x_add = x[:, 6 * s + 2 * g:6 * s + 2 * g + NONTEXT_DIM]

    def conv_block_ref(xe, w, bias):             # Conv1d(stride=2)+ReLU+MaxPool1d(k,2)
        k, lc, lp = w.shape[2], CONV_LENS[w.shape[2]], POOL_LENS[w.shape[2]]
        conv = np.empty((b, OUT_SIZE, lc), np.float32)
        for t in range(lc):
            conv[:, :, t] = np.einsum("bci,oci->bo", xe[:, :, STRIDE * t:STRIDE * t + k], w) + bias
        conv = np.maximum(conv, 0.0)
        pooled = np.empty((b, OUT_SIZE, lp), np.float32)
        for p in range(lp):
            pooled[:, :, p] = conv[:, :, STRIDE * p:STRIDE * p + k].max(axis=2)
        return pooled

    def branch_embs(xdict, conv_params):
        feats = {br: {k: conv_block_ref(xdict[br], *conv_params[k]) for k in KERNEL_SIZES}
                 for br in ("reblog", "nonreblog")}
        pieces = []
        for k in KERNEL_SIZES:
            pieces += [feats["reblog"][k], feats["nonreblog"][k]]
        return np.concatenate(pieces, axis=2).reshape(b, -1)

    post_embs = branch_embs(tag, params["conv_post"])
    text_embs = branch_embs(txt, params["conv_text"])

    w1, b1, w2, b2 = params["fc_graph"]
    h = np.maximum(graph @ w1 + b1, 0.0)
    gemb = np.maximum(h @ w2 + b2, 0.0)

    wh, bh = params["fc_head"]
    flat = np.concatenate([post_embs, x_add, text_embs, gemb], axis=1)
    y = flat @ wh + bh                           # Dropout(p=0) is identity
    return (1.0 / (1.0 + np.exp(-y))).squeeze()


if __name__ == "__main__":
    params = init_params()
    prep = prep_params(params)

    key = jax.random.PRNGKey(0)
    k_tok, k_graph, k_add = jax.random.split(key, 3)
    # x columns: [tag_reblog(8) | tag_nonreblog(8) | text_reblog(16) | text_nonreblog(16)
    #             | graph_reblog(200) | graph_nonreblog(200) | nontext(10)]  -> (2, 458)
    tokens = jax.random.randint(k_tok, (BATCH, 6 * SEQ_LEN), 0, VOCAB + 1).astype(jnp.float32)
    graph_feats = jax.random.normal(k_graph, (BATCH, 2 * GRAPH_DIM), dtype=jnp.float32)
    nontext = jax.random.normal(k_add, (BATCH, NONTEXT_DIM), dtype=jnp.float32)
    x = jnp.concatenate([tokens, graph_feats, nontext], axis=1)

    fwd = jax.jit(forward)
    out = jax.block_until_ready(fwd(x, prep))
    assert out.shape == (BATCH,)
    assert bool(jnp.all(jnp.isfinite(out)))

    ref = reference_forward(x, params)
    assert np.allclose(np.asarray(out), ref, atol=2e-2), (np.asarray(out), ref)
    print("KERNEL_OK")
</pallas_src>

<mosaic_0001>
module attributes {stable_mosaic.version = 11 : i64} {
  func.func @fused_forward_kernel(%arg0: i32, %arg1: memref<1376x48xbf16, #tpu.memory_space<vmem>>, %arg2: memref<4x48x32xbf16, #tpu.memory_space<vmem>>, %arg3: memref<1376x80xbf16, #tpu.memory_space<vmem>>, %arg4: memref<4x80x32xbf16, #tpu.memory_space<vmem>>, %arg5: memref<8x32xf32, #tpu.memory_space<vmem>>, %arg6: memref<416x32xf32, #tpu.memory_space<vmem>>, %arg7: memref<416x32xf32, #tpu.memory_space<vmem>>, %arg8: memref<8x400xbf16, #tpu.memory_space<vmem>>, %arg9: memref<400x128xbf16, #tpu.memory_space<vmem>>, %arg10: memref<1x128xf32, #tpu.memory_space<vmem>>, %arg11: memref<128x32xbf16, #tpu.memory_space<vmem>>, %arg12: memref<1x32xf32, #tpu.memory_space<vmem>>, %arg13: memref<8x32xf32, #tpu.memory_space<vmem>>, %arg14: memref<1x32xf32, #tpu.memory_space<vmem>>, %arg15: memref<1x32xf32, #tpu.memory_space<vmem>>, %arg16: memref<1x1xf32, #tpu.memory_space<vmem>>, %arg17: memref<8x128xf32, #tpu.memory_space<vmem>>) attributes {dimension_semantics = [#tpu.dimension_semantics<arbitrary>], iteration_bounds = array<i64: 1>, scalar_prefetch = 0 : i64, scratch_operands = 0 : i64, tpu.core_type = #tpu.core_type<tc>, window_params = [{pipeline_mode = #tpu.pipeline_mode<synchronous>, transform_indices = @transform_0, window_bounds = array<i64: 1376, 48>}, {pipeline_mode = #tpu.pipeline_mode<synchronous>, transform_indices = @transform_1, window_bounds = array<i64: 4, 48, 32>}, {pipeline_mode = #tpu.pipeline_mode<synchronous>, transform_indices = @transform_2, window_bounds = array<i64: 1376, 80>}, {pipeline_mode = #tpu.pipeline_mode<synchronous>, transform_indices = @transform_3, window_bounds = array<i64: 4, 80, 32>}, {pipeline_mode = #tpu.pipeline_mode<synchronous>, transform_indices = @transform_4, window_bounds = array<i64: 8, 32>}, {pipeline_mode = #tpu.pipeline_mode<synchronous>, transform_indices = @transform_5, window_bounds = array<i64: 416, 32>}, {pipeline_mode = #tpu.pipeline_mode<synchronous>, transform_indices = @transform_6, window_bounds = array<i64: 416, 32>}, {pipeline_mode = #tpu.pipeline_mode<synchronous>, transform_indices = @transform_7, window_bounds = array<i64: 8, 400>}, {pipeline_mode = #tpu.pipeline_mode<synchronous>, transform_indices = @transform_8, window_bounds = array<i64: 400, 128>}, {pipeline_mode = #tpu.pipeline_mode<synchronous>, transform_indices = @transform_9, window_bounds = array<i64: 1, 128>}, {pipeline_mode = #tpu.pipeline_mode<synchronous>, transform_indices = @transform_10, window_bounds = array<i64: 128, 32>}, {pipeline_mode = #tpu.pipeline_mode<synchronous>, transform_indices = @transform_11, window_bounds = array<i64: 1, 32>}, {pipeline_mode = #tpu.pipeline_mode<synchronous>, transform_indices = @transform_12, window_bounds = array<i64: 8, 32>}, {pipeline_mode = #tpu.pipeline_mode<synchronous>, transform_indices = @transform_13, window_bounds = array<i64: 1, 32>}, {pipeline_mode = #tpu.pipeline_mode<synchronous>, transform_indices = @transform_14, window_bounds = array<i64: 1, 32>}, {pipeline_mode = #tpu.pipeline_mode<synchronous>, transform_indices = @transform_15, window_bounds = array<i64: 1, 1>}, {pipeline_mode = #tpu.pipeline_mode<synchronous>, transform_indices = @transform_16, window_bounds = array<i64: 8, 128>}]} {
    %cst = arith.constant 0.000000e+00 : f32
    %0 = vector.broadcast %cst : f32 to vector<16x32xf32>
    %c0 = arith.constant 0 : index
    %c0_0 = arith.constant 0 : index
    %1 = vector.load %arg1[%c0, %c0_0] : memref<1376x48xbf16, #tpu.memory_space<vmem>>, vector<256x48xbf16>
    %c0_1 = arith.constant 0 : index
    %c0_2 = arith.constant 0 : index
    %c0_3 = arith.constant 0 : index
    %2 = vector.load %arg2[%c0_1, %c0_2, %c0_3] : memref<4x48x32xbf16, #tpu.memory_space<vmem>>, vector<1x48x32xbf16>
    %3 = vector.shape_cast %2 : vector<1x48x32xbf16> to vector<48x32xbf16>
    %cst_4 = arith.constant dense<0.000000e+00> : vector<256x32xf32>
    %4 = tpu.matmul %1, %3, %cst_4 {dimension_numbers = #tpu.dot_dimension_numbers<[1], [0], [0], [1], [0, 0, 1, 1], [], []>} : vector<256x48xbf16>, vector<48x32xbf16>, vector<256x32xf32> -> vector<256x32xf32>
    %5 = vector.extract_strided_slice %4 {offsets = [0, 0], sizes = [128, 32], strides = [1, 1]} : vector<256x32xf32> to vector<128x32xf32>
    %6 = vector.extract_strided_slice %4 {offsets = [128, 0], sizes = [128, 32], strides = [1, 1]} : vector<256x32xf32> to vector<128x32xf32>
    %7 = arith.maximumf %5, %6 : vector<128x32xf32>
    %c0_5 = arith.constant 0 : index
    %c0_6 = arith.constant 0 : index
    %8 = vector.load %arg5[%c0_5, %c0_6] : memref<8x32xf32, #tpu.memory_space<vmem>>, vector<1x32xf32>
    %9 = vector.broadcast %8 : vector<1x32xf32> to vector<128x32xf32>
    %10 = arith.addf %7, %9 : vector<128x32xf32>
    %cst_7 = arith.constant 0.000000e+00 : f32
    %11 = vector.broadcast %cst_7 : f32 to vector<128x32xf32>
    %12 = arith.maximumf %10, %11 : vector<128x32xf32>
    %c0_8 = arith.constant 0 : index
    %c0_9 = arith.constant 0 : index
    %13 = vector.load %arg6[%c0_8, %c0_9] : memref<416x32xf32, #tpu.memory_space<vmem>>, vector<128x32xf32>
    %14 = arith.mulf %12, %13 : vector<128x32xf32>
    %15 = vector.extract_strided_slice %14 {offsets = [0, 0], sizes = [16, 32], strides = [1, 1]} : vector<128x32xf32> to vector<16x32xf32>
    %16 = vector.extract_strided_slice %14 {offsets = [16, 0], sizes = [16, 32], strides = [1, 1]} : vector<128x32xf32> to vector<16x32xf32>
    %17 = arith.addf %15, %16 : vector<16x32xf32>
    %18 = vector.extract_strided_slice %14 {offsets = [32, 0], sizes = [16, 32], strides = [1, 1]} : vector<128x32xf32> to vector<16x32xf32>
    %19 = arith.addf %17, %18 : vector<16x32xf32>
    %20 = vector.extract_strided_slice %14 {offsets = [48, 0], sizes = [16, 32], strides = [1, 1]} : vector<128x32xf32> to vector<16x32xf32>
    %21 = arith.addf %19, %20 : vector<16x32xf32>
    %22 = vector.extract_strided_slice %14 {offsets = [64, 0], sizes = [16, 32], strides = [1, 1]} : vector<128x32xf32> to vector<16x32xf32>
    %23 = arith.addf %21, %22 : vector<16x32xf32>
    %24 = vector.extract_strided_slice %14 {offsets = [80, 0], sizes = [16, 32], strides = [1, 1]} : vector<128x32xf32> to vector<16x32xf32>
    %25 = arith.addf %23, %24 : vector<16x32xf32>
    %26 = vector.extract_strided_slice %14 {offsets = [96, 0], sizes = [16, 32], strides = [1, 1]} : vector<128x32xf32> to vector<16x32xf32>
    %27 = arith.addf %25, %26 : vector<16x32xf32>
    %28 = vector.extract_strided_slice %14 {offsets = [112, 0], sizes = [16, 32], strides = [1, 1]} : vector<128x32xf32> to vector<16x32xf32>
    %29 = arith.addf %27, %28 : vector<16x32xf32>
    %30 = arith.addf %0, %29 : vector<16x32xf32>
    %c256 = arith.constant 256 : index
    %c0_10 = arith.constant 0 : index
    %31 = vector.load %arg1[%c256, %c0_10] : memref<1376x48xbf16, #tpu.memory_space<vmem>>, vector<336x48xbf16>
    %c1 = arith.constant 1 : index
    %c0_11 = arith.constant 0 : index
    %c0_12 = arith.constant 0 : index
    %32 = vector.load %arg2[%c1, %c0_11, %c0_12] : memref<4x48x32xbf16, #tpu.memory_space<vmem>>, vector<1x48x32xbf16>
    %33 = vector.shape_cast %32 : vector<1x48x32xbf16> to vector<48x32xbf16>
    %cst_13 = arith.constant dense<0.000000e+00> : vector<336x32xf32>
    %34 = tpu.matmul %31, %33, %cst_13 {dimension_numbers = #tpu.dot_dimension_numbers<[1], [0], [0], [1], [0, 0, 1, 1], [], []>} : vector<336x48xbf16>, vector<48x32xbf16>, vector<336x32xf32> -> vector<336x32xf32>
    %35 = vector.extract_strided_slice %34 {offsets = [0, 0], sizes = [112, 32], strides = [1, 1]} : vector<336x32xf32> to vector<112x32xf32>
    %36 = vector.extract_strided_slice %34 {offsets = [112, 0], sizes = [112, 32], strides = [1, 1]} : vector<336x32xf32> to vector<112x32xf32>
    %37 = arith.maximumf %35, %36 : vector<112x32xf32>
    %38 = vector.extract_strided_slice %34 {offsets = [224, 0], sizes = [112, 32], strides = [1, 1]} : vector<336x32xf32> to vector<112x32xf32>
    %39 = arith.maximumf %37, %38 : vector<112x32xf32>
    %c1_14 = arith.constant 1 : index
    %c0_15 = arith.constant 0 : index
    %40 = vector.load %arg5[%c1_14, %c0_15] : memref<8x32xf32, #tpu.memory_space<vmem>>, vector<1x32xf32>
    %41 = vector.broadcast %40 : vector<1x32xf32> to vector<112x32xf32>
    %42 = arith.addf %39, %41 : vector<112x32xf32>
    %cst_16 = arith.constant 0.000000e+00 : f32
    %43 = vector.broadcast %cst_16 : f32 to vector<112x32xf32>
    %44 = arith.maximumf %42, %43 : vector<112x32xf32>
    %c128 = arith.constant 128 : index
    %c0_17 = arith.constant 0 : index
    %45 = vector.load %arg6[%c128, %c0_17] : memref<416x32xf32, #tpu.memory_space<vmem>>, vector<112x32xf32>
    %46 = arith.mulf %44, %45 : vector<112x32xf32>
    %47 = vector.extract_strided_slice %46 {offsets = [0, 0], sizes = [16, 32], strides = [1, 1]} : vector<112x32xf32> to vector<16x32xf32>
    %48 = vector.extract_strided_slice %46 {offsets = [16, 0], sizes = [16, 32], strides = [1, 1]} : vector<112x32xf32> to vector<16x32xf32>
    %49 = arith.addf %47, %48 : vector<16x32xf32>
    %50 = vector.extract_strided_slice %46 {offsets = [32, 0], sizes = [16, 32], strides = [1, 1]} : vector<112x32xf32> to vector<16x32xf32>
    %51 = arith.addf %49, %50 : vector<16x32xf32>
    %52 = vector.extract_strided_slice %46 {offsets = [48, 0], sizes = [16, 32], strides = [1, 1]} : vector<112x32xf32> to vector<16x32xf32>
    %53 = arith.addf %51, %52 : vector<16x32xf32>
    %54 = vector.extract_strided_slice %46 {offsets = [64, 0], sizes = [16, 32], strides = [1, 1]} : vector<112x32xf32> to vector<16x32xf32>
    %55 = arith.addf %53, %54 : vector<16x32xf32>
    %56 = vector.extract_strided_slice %46 {offsets = [80, 0], sizes = [16, 32], strides = [1, 1]} : vector<112x32xf32> to vector<16x32xf32>
    %57 = arith.addf %55, %56 : vector<16x32xf32>
    %58 = vector.extract_strided_slice %46 {offsets = [96, 0], sizes = [16, 32], strides = [1, 1]} : vector<112x32xf32> to vector<16x32xf32>
    %59 = arith.addf %57, %58 : vector<16x32xf32>
    %60 = arith.addf %30, %59 : vector<16x32xf32>
    %c592 = arith.constant 592 : index
    %c0_18 = arith.constant 0 : index
    %61 = vector.load %arg1[%c592, %c0_18] : memref<1376x48xbf16, #tpu.memory_space<vmem>>, vector<384x48xbf16>
    %c2 = arith.constant 2 : index
    %c0_19 = arith.constant 0 : index
    %c0_20 = arith.constant 0 : index
    %62 = vector.load %arg2[%c2, %c0_19, %c0_20] : memref<4x48x32xbf16, #tpu.memory_space<vmem>>, vector<1x48x32xbf16>
    %63 = vector.shape_cast %62 : vector<1x48x32xbf16> to vector<48x32xbf16>
    %cst_21 = arith.constant dense<0.000000e+00> : vector<384x32xf32>
    %64 = tpu.matmul %61, %63, %cst_21 {dimension_numbers = #tpu.dot_dimension_numbers<[1], [0], [0], [1], [0, 0, 1, 1], [], []>} : vector<384x48xbf16>, vector<48x32xbf16>, vector<384x32xf32> -> vector<384x32xf32>
    %65 = vector.extract_strided_slice %64 {offsets = [0, 0], sizes = [96, 32], strides = [1, 1]} : vector<384x32xf32> to vector<96x32xf32>
    %66 = vector.extract_strided_slice %64 {offsets = [96, 0], sizes = [96, 32], strides = [1, 1]} : vector<384x32xf32> to vector<96x32xf32>
    %67 = arith.maximumf %65, %66 : vector<96x32xf32>
    %68 = vector.extract_strided_slice %64 {offsets = [192, 0], sizes = [96, 32], strides = [1, 1]} : vector<384x32xf32> to vector<96x32xf32>
    %69 = arith.maximumf %67, %68 : vector<96x32xf32>
    %70 = vector.extract_strided_slice %64 {offsets = [288, 0], sizes = [96, 32], strides = [1, 1]} : vector<384x32xf32> to vector<96x32xf32>
    %71 = arith.maximumf %69, %70 : vector<96x32xf32>
    %c2_22 = arith.constant 2 : index
    %c0_23 = arith.constant 0 : index
    %72 = vector.load %arg5[%c2_22, %c0_23] : memref<8x32xf32, #tpu.memory_space<vmem>>, vector<1x32xf32>
    %73 = vector.broadcast %72 : vector<1x32xf32> to vector<96x32xf32>
    %74 = arith.addf %71, %73 : vector<96x32xf32>
    %cst_24 = arith.constant 0.000000e+00 : f32
    %75 = vector.broadcast %cst_24 : f32 to vector<96x32xf32>
    %76 = arith.maximumf %74, %75 : vector<96x32xf32>
    %c240 = arith.constant 240 : index
    %c0_25 = arith.constant 0 : index
    %77 = vector.load %arg6[%c240, %c0_25] : memref<416x32xf32, #tpu.memory_space<vmem>>, vector<96x32xf32>
    %78 = arith.mulf %76, %77 : vector<96x32xf32>
    %79 = vector.extract_strided_slice %78 {offsets = [0, 0], sizes = [16, 32], strides = [1, 1]} : vector<96x32xf32> to vector<16x32xf32>
    %80 = vector.extract_strided_slice %78 {offsets = [16, 0], sizes = [16, 32], strides = [1, 1]} : vector<96x32xf32> to vector<16x32xf32>
    %81 = arith.addf %79, %80 : vector<16x32xf32>
    %82 = vector.extract_strided_slice %78 {offsets = [32, 0], sizes = [16, 32], strides = [1, 1]} : vector<96x32xf32> to vector<16x32xf32>
    %83 = arith.addf %81, %82 : vector<16x32xf32>
    %84 = vector.extract_strided_slice %78 {offsets = [48, 0], sizes = [16, 32], strides = [1, 1]} : vector<96x32xf32> to vector<16x32xf32>
    %85 = arith.addf %83, %84 : vector<16x32xf32>
    %86 = vector.extract_strided_slice %78 {offsets = [64, 0], sizes = [16, 32], strides = [1, 1]} : vector<96x32xf32> to vector<16x32xf32>
    %87 = arith.addf %85, %86 : vector<16x32xf32>
    %88 = vector.extract_strided_slice %78 {offsets = [80, 0], sizes = [16, 32], strides = [1, 1]} : vector<96x32xf32> to vector<16x32xf32>
    %89 = arith.addf %87, %88 : vector<16x32xf32>
    %90 = arith.addf %60, %89 : vector<16x32xf32>
    %c976 = arith.constant 976 : index
    %c0_26 = arith.constant 0 : index
    %91 = vector.load %arg1[%c976, %c0_26] : memref<1376x48xbf16, #tpu.memory_space<vmem>>, vector<400x48xbf16>
    %c3 = arith.constant 3 : index
    %c0_27 = arith.constant 0 : index
    %c0_28 = arith.constant 0 : index
    %92 = vector.load %arg2[%c3, %c0_27, %c0_28] : memref<4x48x32xbf16, #tpu.memory_space<vmem>>, vector<1x48x32xbf16>
    %93 = vector.shape_cast %92 : vector<1x48x32xbf16> to vector<48x32xbf16>
    %cst_29 = arith.constant dense<0.000000e+00> : vector<400x32xf32>
    %94 = tpu.matmul %91, %93, %cst_29 {dimension_numbers = #tpu.dot_dimension_numbers<[1], [0], [0], [1], [0, 0, 1, 1], [], []>} : vector<400x48xbf16>, vector<48x32xbf16>, vector<400x32xf32> -> vector<400x32xf32>
    %95 = vector.extract_strided_slice %94 {offsets = [0, 0], sizes = [80, 32], strides = [1, 1]} : vector<400x32xf32> to vector<80x32xf32>
    %96 = vector.extract_strided_slice %94 {offsets = [80, 0], sizes = [80, 32], strides = [1, 1]} : vector<400x32xf32> to vector<80x32xf32>
    %97 = arith.maximumf %95, %96 : vector<80x32xf32>
    %98 = vector.extract_strided_slice %94 {offsets = [160, 0], sizes = [80, 32], strides = [1, 1]} : vector<400x32xf32> to vector<80x32xf32>
    %99 = arith.maximumf %97, %98 : vector<80x32xf32>
    %100 = vector.extract_strided_slice %94 {offsets = [240, 0], sizes = [80, 32], strides = [1, 1]} : vector<400x32xf32> to vector<80x32xf32>
    %101 = arith.maximumf %99, %100 : vector<80x32xf32>
    %102 = vector.extract_strided_slice %94 {offsets = [320, 0], sizes = [80, 32], strides = [1, 1]} : vector<400x32xf32> to vector<80x32xf32>
    %103 = arith.maximumf %101, %102 : vector<80x32xf32>
    %c3_30 = arith.constant 3 : index
    %c0_31 = arith.constant 0 : index
    %104 = vector.load %arg5[%c3_30, %c0_31] : memref<8x32xf32, #tpu.memory_space<vmem>>, vector<1x32xf32>
    %105 = vector.broadcast %104 : vector<1x32xf32> to vector<80x32xf32>
    %106 = arith.addf %103, %105 : vector<80x32xf32>
    %cst_32 = arith.constant 0.000000e+00 : f32
    %107 = vector.broadcast %cst_32 : f32 to vector<80x32xf32>
    %108 = arith.maximumf %106, %107 : vector<80x32xf32>
    %c336 = arith.constant 336 : index
    %c0_33 = arith.constant 0 : index
    %109 = vector.load %arg6[%c336, %c0_33] : memref<416x32xf32, #tpu.memory_space<vmem>>, vector<80x32xf32>
    %110 = arith.mulf %108, %109 : vector<80x32xf32>
    %111 = vector.extract_strided_slice %110 {offsets = [0, 0], sizes = [16, 32], strides = [1, 1]} : vector<80x32xf32> to vector<16x32xf32>
    %112 = vector.extract_strided_slice %110 {offsets = [16, 0], sizes = [16, 32], strides = [1, 1]} : vector<80x32xf32> to vector<16x32xf32>
    %113 = arith.addf %111, %112 : vector<16x32xf32>
    %114 = vector.extract_strided_slice %110 {offsets = [32, 0], sizes = [16, 32], strides = [1, 1]} : vector<80x32xf32> to vector<16x32xf32>
    %115 = arith.addf %113, %114 : vector<16x32xf32>
    %116 = vector.extract_strided_slice %110 {offsets = [48, 0], sizes = [16, 32], strides = [1, 1]} : vector<80x32xf32> to vector<16x32xf32>
    %117 = arith.addf %115, %116 : vector<16x32xf32>
    %118 = vector.extract_strided_slice %110 {offsets = [64, 0], sizes = [16, 32], strides = [1, 1]} : vector<80x32xf32> to vector<16x32xf32>
    %119 = arith.addf %117, %118 : vector<16x32xf32>
    %120 = arith.addf %90, %119 : vector<16x32xf32>
    %cst_34 = arith.constant 0.000000e+00 : f32
    %121 = vector.broadcast %cst_34 : f32 to vector<16x32xf32>
    %c0_35 = arith.constant 0 : index
    %c0_36 = arith.constant 0 : index
    %122 = vector.load %arg3[%c0_35, %c0_36] : memref<1376x80xbf16, #tpu.memory_space<vmem>>, vector<256x80xbf16>
    %c0_37 = arith.constant 0 : index
    %c0_38 = arith.constant 0 : index
    %c0_39 = arith.constant 0 : index
    %123 = vector.load %arg4[%c0_37, %c0_38, %c0_39] : memref<4x80x32xbf16, #tpu.memory_space<vmem>>, vector<1x80x32xbf16>
    %124 = vector.shape_cast %123 : vector<1x80x32xbf16> to vector<80x32xbf16>
    %cst_40 = arith.constant dense<0.000000e+00> : vector<256x32xf32>
    %125 = tpu.matmul %122, %124, %cst_40 {dimension_numbers = #tpu.dot_dimension_numbers<[1], [0], [0], [1], [0, 0, 1, 1], [], []>} : vector<256x80xbf16>, vector<80x32xbf16>, vector<256x32xf32> -> vector<256x32xf32>
    %126 = vector.extract_strided_slice %125 {offsets = [0, 0], sizes = [128, 32], strides = [1, 1]} : vector<256x32xf32> to vector<128x32xf32>
    %127 = vector.extract_strided_slice %125 {offsets = [128, 0], sizes = [128, 32], strides = [1, 1]} : vector<256x32xf32> to vector<128x32xf32>
    %128 = arith.maximumf %126, %127 : vector<128x32xf32>
    %c4 = arith.constant 4 : index
    %c0_41 = arith.constant 0 : index
    %129 = vector.load %arg5[%c4, %c0_41] : memref<8x32xf32, #tpu.memory_space<vmem>>, vector<1x32xf32>
    %130 = vector.broadcast %129 : vector<1x32xf32> to vector<128x32xf32>
    %131 = arith.addf %128, %130 : vector<128x32xf32>
    %cst_42 = arith.constant 0.000000e+00 : f32
    %132 = vector.broadcast %cst_42 : f32 to vector<128x32xf32>
    %133 = arith.maximumf %131, %132 : vector<128x32xf32>
    %c0_43 = arith.constant 0 : index
    %c0_44 = arith.constant 0 : index
    %134 = vector.load %arg7[%c0_43, %c0_44] : memref<416x32xf32, #tpu.memory_space<vmem>>, vector<128x32xf32>
    %135 = arith.mulf %133, %134 : vector<128x32xf32>
    %136 = vector.extract_strided_slice %135 {offsets = [0, 0], sizes = [16, 32], strides = [1, 1]} : vector<128x32xf32> to vector<16x32xf32>
    %137 = vector.extract_strided_slice %135 {offsets = [16, 0], sizes = [16, 32], strides = [1, 1]} : vector<128x32xf32> to vector<16x32xf32>
    %138 = arith.addf %136, %137 : vector<16x32xf32>
    %139 = vector.extract_strided_slice %135 {offsets = [32, 0], sizes = [16, 32], strides = [1, 1]} : vector<128x32xf32> to vector<16x32xf32>
    %140 = arith.addf %138, %139 : vector<16x32xf32>
    %141 = vector.extract_strided_slice %135 {offsets = [48, 0], sizes = [16, 32], strides = [1, 1]} : vector<128x32xf32> to vector<16x32xf32>
    %142 = arith.addf %140, %141 : vector<16x32xf32>
    %143 = vector.extract_strided_slice %135 {offsets = [64, 0], sizes = [16, 32], strides = [1, 1]} : vector<128x32xf32> to vector<16x32xf32>
    %144 = arith.addf %142, %143 : vector<16x32xf32>
    %145 = vector.extract_strided_slice %135 {offsets = [80, 0], sizes = [16, 32], strides = [1, 1]} : vector<128x32xf32> to vector<16x32xf32>
    %146 = arith.addf %144, %145 : vector<16x32xf32>
    %147 = vector.extract_strided_slice %135 {offsets = [96, 0], sizes = [16, 32], strides = [1, 1]} : vector<128x32xf32> to vector<16x32xf32>
    %148 = arith.addf %146, %147 : vector<16x32xf32>
    %149 = vector.extract_strided_slice %135 {offsets = [112, 0], sizes = [16, 32], strides = [1, 1]} : vector<128x32xf32> to vector<16x32xf32>
    %150 = arith.addf %148, %149 : vector<16x32xf32>
    %151 = arith.addf %121, %150 : vector<16x32xf32>
    %c256_45 = arith.constant 256 : index
    %c0_46 = arith.constant 0 : index
    %152 = vector.load %arg3[%c256_45, %c0_46] : memref<1376x80xbf16, #tpu.memory_space<vmem>>, vector<336x80xbf16>
    %c1_47 = arith.constant 1 : index
    %c0_48 = arith.constant 0 : index
    %c0_49 = arith.constant 0 : index
    %153 = vector.load %arg4[%c1_47, %c0_48, %c0_49] : memref<4x80x32xbf16, #tpu.memory_space<vmem>>, vector<1x80x32xbf16>
    %154 = vector.shape_cast %153 : vector<1x80x32xbf16> to vector<80x32xbf16>
    %cst_50 = arith.constant dense<0.000000e+00> : vector<336x32xf32>
    %155 = tpu.matmul %152, %154, %cst_50 {dimension_numbers = #tpu.dot_dimension_numbers<[1], [0], [0], [1], [0, 0, 1, 1], [], []>} : vector<336x80xbf16>, vector<80x32xbf16>, vector<336x32xf32> -> vector<336x32xf32>
    %156 = vector.extract_strided_slice %155 {offsets = [0, 0], sizes = [112, 32], strides = [1, 1]} : vector<336x32xf32> to vector<112x32xf32>
    %157 = vector.extract_strided_slice %155 {offsets = [112, 0], sizes = [112, 32], strides = [1, 1]} : vector<336x32xf32> to vector<112x32xf32>
    %158 = arith.maximumf %156, %157 : vector<112x32xf32>
    %159 = vector.extract_strided_slice %155 {offsets = [224, 0], sizes = [112, 32], strides = [1, 1]} : vector<336x32xf32> to vector<112x32xf32>
    %160 = arith.maximumf %158, %159 : vector<112x32xf32>
    %c5 = arith.constant 5 : index
    %c0_51 = arith.constant 0 : index
    %161 = vector.load %arg5[%c5, %c0_51] : memref<8x32xf32, #tpu.memory_space<vmem>>, vector<1x32xf32>
    %162 = vector.broadcast %161 : vector<1x32xf32> to vector<112x32xf32>
    %163 = arith.addf %160, %162 : vector<112x32xf32>
    %cst_52 = arith.constant 0.000000e+00 : f32
    %164 = vector.broadcast %cst_52 : f32 to vector<112x32xf32>
    %165 = arith.maximumf %163, %164 : vector<112x32xf32>
    %c128_53 = arith.constant 128 : index
    %c0_54 = arith.constant 0 : index
    %166 = vector.load %arg7[%c128_53, %c0_54] : memref<416x32xf32, #tpu.memory_space<vmem>>, vector<112x32xf32>
    %167 = arith.mulf %165, %166 : vector<112x32xf32>
    %168 = vector.extract_strided_slice %167 {offsets = [0, 0], sizes = [16, 32], strides = [1, 1]} : vector<112x32xf32> to vector<16x32xf32>
    %169 = vector.extract_strided_slice %167 {offsets = [16, 0], sizes = [16, 32], strides = [1, 1]} : vector<112x32xf32> to vector<16x32xf32>
    %170 = arith.addf %168, %169 : vector<16x32xf32>
    %171 = vector.extract_strided_slice %167 {offsets = [32, 0], sizes = [16, 32], strides = [1, 1]} : vector<112x32xf32> to vector<16x32xf32>
    %172 = arith.addf %170, %171 : vector<16x32xf32>
    %173 = vector.extract_strided_slice %167 {offsets = [48, 0], sizes = [16, 32], strides = [1, 1]} : vector<112x32xf32> to vector<16x32xf32>
    %174 = arith.addf %172, %173 : vector<16x32xf32>
    %175 = vector.extract_strided_slice %167 {offsets = [64, 0], sizes = [16, 32], strides = [1, 1]} : vector<112x32xf32> to vector<16x32xf32>
    %176 = arith.addf %174, %175 : vector<16x32xf32>
    %177 = vector.extract_strided_slice %167 {offsets = [80, 0], sizes = [16, 32], strides = [1, 1]} : vector<112x32xf32> to vector<16x32xf32>
    %178 = arith.addf %176, %177 : vector<16x32xf32>
    %179 = vector.extract_strided_slice %167 {offsets = [96, 0], sizes = [16, 32], strides = [1, 1]} : vector<112x32xf32> to vector<16x32xf32>
    %180 = arith.addf %178, %179 : vector<16x32xf32>
    %181 = arith.addf %151, %180 : vector<16x32xf32>
    %c592_55 = arith.constant 592 : index
    %c0_56 = arith.constant 0 : index
    %182 = vector.load %arg3[%c592_55, %c0_56] : memref<1376x80xbf16, #tpu.memory_space<vmem>>, vector<384x80xbf16>
    %c2_57 = arith.constant 2 : index
    %c0_58 = arith.constant 0 : index
    %c0_59 = arith.constant 0 : index
    %183 = vector.load %arg4[%c2_57, %c0_58, %c0_59] : memref<4x80x32xbf16, #tpu.memory_space<vmem>>, vector<1x80x32xbf16>
    %184 = vector.shape_cast %183 : vector<1x80x32xbf16> to vector<80x32xbf16>
    %cst_60 = arith.constant dense<0.000000e+00> : vector<384x32xf32>
    %185 = tpu.matmul %182, %184, %cst_60 {dimension_numbers = #tpu.dot_dimension_numbers<[1], [0], [0], [1], [0, 0, 1, 1], [], []>} : vector<384x80xbf16>, vector<80x32xbf16>, vector<384x32xf32> -> vector<384x32xf32>
    %186 = vector.extract_strided_slice %185 {offsets = [0, 0], sizes = [96, 32], strides = [1, 1]} : vector<384x32xf32> to vector<96x32xf32>
    %187 = vector.extract_strided_slice %185 {offsets = [96, 0], sizes = [96, 32], strides = [1, 1]} : vector<384x32xf32> to vector<96x32xf32>
    %188 = arith.maximumf %186, %187 : vector<96x32xf32>
    %189 = vector.extract_strided_slice %185 {offsets = [192, 0], sizes = [96, 32], strides = [1, 1]} : vector<384x32xf32> to vector<96x32xf32>
    %190 = arith.maximumf %188, %189 : vector<96x32xf32>
    %191 = vector.extract_strided_slice %185 {offsets = [288, 0], sizes = [96, 32], strides = [1, 1]} : vector<384x32xf32> to vector<96x32xf32>
    %192 = arith.maximumf %190, %191 : vector<96x32xf32>
    %c6 = arith.constant 6 : index
    %c0_61 = arith.constant 0 : index
    %193 = vector.load %arg5[%c6, %c0_61] : memref<8x32xf32, #tpu.memory_space<vmem>>, vector<1x32xf32>
    %194 = vector.broadcast %193 : vector<1x32xf32> to vector<96x32xf32>
    %195 = arith.addf %192, %194 : vector<96x32xf32>
    %cst_62 = arith.constant 0.000000e+00 : f32
    %196 = vector.broadcast %cst_62 : f32 to vector<96x32xf32>
    %197 = arith.maximumf %195, %196 : vector<96x32xf32>
    %c240_63 = arith.constant 240 : index
    %c0_64 = arith.constant 0 : index
    %198 = vector.load %arg7[%c240_63, %c0_64] : memref<416x32xf32, #tpu.memory_space<vmem>>, vector<96x32xf32>
    %199 = arith.mulf %197, %198 : vector<96x32xf32>
    %200 = vector.extract_strided_slice %199 {offsets = [0, 0], sizes = [16, 32], strides = [1, 1]} : vector<96x32xf32> to vector<16x32xf32>
    %201 = vector.extract_strided_slice %199 {offsets = [16, 0], sizes = [16, 32], strides = [1, 1]} : vector<96x32xf32> to vector<16x32xf32>
    %202 = arith.addf %200, %201 : vector<16x32xf32>
    %203 = vector.extract_strided_slice %199 {offsets = [32, 0], sizes = [16, 32], strides = [1, 1]} : vector<96x32xf32> to vector<16x32xf32>
    %204 = arith.addf %202, %203 : vector<16x32xf32>
    %205 = vector.extract_strided_slice %199 {offsets = [48, 0], sizes = [16, 32], strides = [1, 1]} : vector<96x32xf32> to vector<16x32xf32>
    %206 = arith.addf %204, %205 : vector<16x32xf32>
    %207 = vector.extract_strided_slice %199 {offsets = [64, 0], sizes = [16, 32], strides = [1, 1]} : vector<96x32xf32> to vector<16x32xf32>
    %208 = arith.addf %206, %207 : vector<16x32xf32>
    %209 = vector.extract_strided_slice %199 {offsets = [80, 0], sizes = [16, 32], strides = [1, 1]} : vector<96x32xf32> to vector<16x32xf32>
    %210 = arith.addf %208, %209 : vector<16x32xf32>
    %211 = arith.addf %181, %210 : vector<16x32xf32>
    %c976_65 = arith.constant 976 : index
    %c0_66 = arith.constant 0 : index
    %212 = vector.load %arg3[%c976_65, %c0_66] : memref<1376x80xbf16, #tpu.memory_space<vmem>>, vector<400x80xbf16>
    %c3_67 = arith.constant 3 : index
    %c0_68 = arith.constant 0 : index
    %c0_69 = arith.constant 0 : index
    %213 = vector.load %arg4[%c3_67, %c0_68, %c0_69] : memref<4x80x32xbf16, #tpu.memory_space<vmem>>, vector<1x80x32xbf16>
    %214 = vector.shape_cast %213 : vector<1x80x32xbf16> to vector<80x32xbf16>
    %cst_70 = arith.constant dense<0.000000e+00> : vector<400x32xf32>
    %215 = tpu.matmul %212, %214, %cst_70 {dimension_numbers = #tpu.dot_dimension_numbers<[1], [0], [0], [1], [0, 0, 1, 1], [], []>} : vector<400x80xbf16>, vector<80x32xbf16>, vector<400x32xf32> -> vector<400x32xf32>
    %216 = vector.extract_strided_slice %215 {offsets = [0, 0], sizes = [80, 32], strides = [1, 1]} : vector<400x32xf32> to vector<80x32xf32>
    %217 = vector.extract_strided_slice %215 {offsets = [80, 0], sizes = [80, 32], strides = [1, 1]} : vector<400x32xf32> to vector<80x32xf32>
    %218 = arith.maximumf %216, %217 : vector<80x32xf32>
    %219 = vector.extract_strided_slice %215 {offsets = [160, 0], sizes = [80, 32], strides = [1, 1]} : vector<400x32xf32> to vector<80x32xf32>
    %220 = arith.maximumf %218, %219 : vector<80x32xf32>
    %221 = vector.extract_strided_slice %215 {offsets = [240, 0], sizes = [80, 32], strides = [1, 1]} : vector<400x32xf32> to vector<80x32xf32>
    %222 = arith.maximumf %220, %221 : vector<80x32xf32>
    %223 = vector.extract_strided_slice %215 {offsets = [320, 0], sizes = [80, 32], strides = [1, 1]} : vector<400x32xf32> to vector<80x32xf32>
    %224 = arith.maximumf %222, %223 : vector<80x32xf32>
    %c7 = arith.constant 7 : index
    %c0_71 = arith.constant 0 : index
    %225 = vector.load %arg5[%c7, %c0_71] : memref<8x32xf32, #tpu.memory_space<vmem>>, vector<1x32xf32>
    %226 = vector.broadcast %225 : vector<1x32xf32> to vector<80x32xf32>
    %227 = arith.addf %224, %226 : vector<80x32xf32>
    %cst_72 = arith.constant 0.000000e+00 : f32
    %228 = vector.broadcast %cst_72 : f32 to vector<80x32xf32>
    %229 = arith.maximumf %227, %228 : vector<80x32xf32>
    %c336_73 = arith.constant 336 : index
    %c0_74 = arith.constant 0 : index
    %230 = vector.load %arg7[%c336_73, %c0_74] : memref<416x32xf32, #tpu.memory_space<vmem>>, vector<80x32xf32>
    %231 = arith.mulf %229, %230 : vector<80x32xf32>
    %232 = vector.extract_strided_slice %231 {offsets = [0, 0], sizes = [16, 32], strides = [1, 1]} : vector<80x32xf32> to vector<16x32xf32>
    %233 = vector.extract_strided_slice %231 {offsets = [16, 0], sizes = [16, 32], strides = [1, 1]} : vector<80x32xf32> to vector<16x32xf32>
    %234 = arith.addf %232, %233 : vector<16x32xf32>
    %235 = vector.extract_strided_slice %231 {offsets = [32, 0], sizes = [16, 32], strides = [1, 1]} : vector<80x32xf32> to vector<16x32xf32>
    %236 = arith.addf %234, %235 : vector<16x32xf32>
    %237 = vector.extract_strided_slice %231 {offsets = [48, 0], sizes = [16, 32], strides = [1, 1]} : vector<80x32xf32> to vector<16x32xf32>
    %238 = arith.addf %236, %237 : vector<16x32xf32>
    %239 = vector.extract_strided_slice %231 {offsets = [64, 0], sizes = [16, 32], strides = [1, 1]} : vector<80x32xf32> to vector<16x32xf32>
    %240 = arith.addf %238, %239 : vector<16x32xf32>
    %241 = arith.addf %211, %240 : vector<16x32xf32>
    %242 = arith.addf %120, %241 : vector<16x32xf32>
    %c0_75 = arith.constant 0 : index
    %c0_76 = arith.constant 0 : index
    %243 = vector.load %arg8[%c0_75, %c0_76] : memref<8x400xbf16, #tpu.memory_space<vmem>>, vector<8x400xbf16>
    %c0_77 = arith.constant 0 : index
    %c0_78 = arith.constant 0 : index
    %244 = vector.load %arg9[%c0_77, %c0_78] : memref<400x128xbf16, #tpu.memory_space<vmem>>, vector<400x128xbf16>
    %cst_79 = arith.constant dense<0.000000e+00> : vector<8x128xf32>
    %245 = tpu.matmul %243, %244, %cst_79 {dimension_numbers = #tpu.dot_dimension_numbers<[1], [0], [0], [1], [0, 0, 1, 1], [], []>} : vector<8x400xbf16>, vector<400x128xbf16>, vector<8x128xf32> -> vector<8x128xf32>
    %c0_80 = arith.constant 0 : index
    %c0_81 = arith.constant 0 : index
    %246 = vector.load %arg10[%c0_80, %c0_81] : memref<1x128xf32, #tpu.memory_space<vmem>>, vector<1x128xf32>
    %247 = vector.broadcast %246 : vector<1x128xf32> to vector<8x128xf32>
    %248 = arith.addf %245, %247 : vector<8x128xf32>
    %cst_82 = arith.constant 0.000000e+00 : f32
    %249 = vector.broadcast %cst_82 : f32 to vector<8x128xf32>
    %250 = arith.maximumf %248, %249 : vector<8x128xf32>
    %251 = arith.truncf %250 : vector<8x128xf32> to vector<8x128xbf16>
    %c0_83 = arith.constant 0 : index
    %c0_84 = arith.constant 0 : index
    %252 = vector.load %arg11[%c0_83, %c0_84] : memref<128x32xbf16, #tpu.memory_space<vmem>>, vector<128x32xbf16>
    %cst_85 = arith.constant dense<0.000000e+00> : vector<8x32xf32>
    %253 = tpu.matmul %251, %252, %cst_85 {dimension_numbers = #tpu.dot_dimension_numbers<[1], [0], [0], [1], [0, 0, 1, 1], [], []>} : vector<8x128xbf16>, vector<128x32xbf16>, vector<8x32xf32> -> vector<8x32xf32>
    %c0_86 = arith.constant 0 : index
    %c0_87 = arith.constant 0 : index
    %254 = vector.load %arg12[%c0_86, %c0_87] : memref<1x32xf32, #tpu.memory_space<vmem>>, vector<1x32xf32>
    %255 = vector.broadcast %254 : vector<1x32xf32> to vector<8x32xf32>
    %256 = arith.addf %253, %255 : vector<8x32xf32>
    %cst_88 = arith.constant 0.000000e+00 : f32
    %257 = vector.broadcast %cst_88 : f32 to vector<8x32xf32>
    %258 = arith.maximumf %256, %257 : vector<8x32xf32>
    %259 = vector.extract_strided_slice %242 {offsets = [0, 0], sizes = [8, 32], strides = [1, 1]} : vector<16x32xf32> to vector<8x32xf32>
    %260 = vector.extract_strided_slice %242 {offsets = [8, 0], sizes = [8, 32], strides = [1, 1]} : vector<16x32xf32> to vector<8x32xf32>
    %261 = arith.addf %259, %260 : vector<8x32xf32>
    %c0_89 = arith.constant 0 : index
    %c0_90 = arith.constant 0 : index
    %262 = vector.load %arg15[%c0_89, %c0_90] : memref<1x32xf32, #tpu.memory_space<vmem>>, vector<1x32xf32>
    %263 = vector.broadcast %262 : vector<1x32xf32> to vector<8x32xf32>
    %264 = arith.mulf %258, %263 : vector<8x32xf32>
    %265 = arith.addf %261, %264 : vector<8x32xf32>
    %c0_91 = arith.constant 0 : index
    %c0_92 = arith.constant 0 : index
    %266 = vector.load %arg13[%c0_91, %c0_92] : memref<8x32xf32, #tpu.memory_space<vmem>>, vector<8x32xf32>
    %c0_93 = arith.constant 0 : index
    %c0_94 = arith.constant 0 : index
    %267 = vector.load %arg14[%c0_93, %c0_94] : memref<1x32xf32, #tpu.memory_space<vmem>>, vector<1x32xf32>
    %268 = vector.broadcast %267 : vector<1x32xf32> to vector<8x32xf32>
    %269 = arith.mulf %266, %268 : vector<8x32xf32>
    %270 = arith.addf %265, %269 : vector<8x32xf32>
    %cst_95 = arith.constant dense<0.000000e+00> : vector<8xf32>
    %271 = vector.multi_reduction <add>, %270, %cst_95 [1] : vector<8x32xf32> to vector<8xf32>
    %272 = vector.shape_cast %271 : vector<8xf32> to vector<8x1xf32>
    %c0_96 = arith.constant 0 : index
    %c0_97 = arith.constant 0 : index
    %273 = vector.load %arg16[%c0_96, %c0_97] : memref<1x1xf32, #tpu.memory_space<vmem>>, vector<1x1xf32>
    %274 = vector.broadcast %273 : vector<1x1xf32> to vector<8x1xf32>
    %275 = arith.addf %272, %274 : vector<8x1xf32>
    %cst_98 = arith.constant 0.000000e+00 : f32
    %276 = vector.broadcast %cst_98 : f32 to vector<8x1xf32>
    %277 = arith.subf %276, %275 : vector<8x1xf32>
    %278 = math.exp %277 : vector<8x1xf32>
    %cst_99 = arith.constant 1.000000e+00 : f32
    %279 = vector.broadcast %cst_99 : f32 to vector<8x1xf32>
    %280 = arith.addf %279, %278 : vector<8x1xf32>
    %cst_100 = arith.constant 1.000000e+00 : f32
    %281 = vector.broadcast %cst_100 : f32 to vector<8x1xf32>
    %282 = arith.divf %281, %280 : vector<8x1xf32>
    %283 = vector.shape_cast %282 : vector<8x1xf32> to vector<8x1xf32>
    %284 = vector.broadcast %283 : vector<8x1xf32> to vector<8x128xf32>
    %c0_101 = arith.constant 0 : index
    %c0_102 = arith.constant 0 : index
    %285 = vector.load %arg17[%c0_101, %c0_102] : memref<8x128xf32, #tpu.memory_space<vmem>>, vector<8x128xf32>
    tpu.vector_store %arg17[%c0_101, %c0_102], %284 {strides = array<i32>} : memref<8x128xf32, #tpu.memory_space<vmem>>, vector<8x128xf32>,
    return
  }
  func.func @transform_0(%arg0: i32) -> (i32, i32) {
    %c0_i32 = arith.constant 0 : i32
    %c0_i32_0 = arith.constant 0 : i32
    %c0_i32_1 = arith.constant 0 : i32
    return %c0_i32, %c0_i32_0 : i32, i32
  }
  func.func @transform_1(%arg0: i32) -> (i32, i32, i32) {
    %c0_i32 = arith.constant 0 : i32
    %c0_i32_0 = arith.constant 0 : i32
    %c0_i32_1 = arith.constant 0 : i32
    %c0_i32_2 = arith.constant 0 : i32
    return %c0_i32, %c0_i32_0, %c0_i32_1 : i32, i32, i32
  }
  func.func @transform_2(%arg0: i32) -> (i32, i32) {
    %c0_i32 = arith.constant 0 : i32
    %c0_i32_0 = arith.constant 0 : i32
    %c0_i32_1 = arith.constant 0 : i32
    return %c0_i32, %c0_i32_0 : i32, i32
  }
  func.func @transform_3(%arg0: i32) -> (i32, i32, i32) {
    %c0_i32 = arith.constant 0 : i32
    %c0_i32_0 = arith.constant 0 : i32
    %c0_i32_1 = arith.constant 0 : i32
    %c0_i32_2 = arith.constant 0 : i32
    return %c0_i32, %c0_i32_0, %c0_i32_1 : i32, i32, i32
  }
  func.func @transform_4(%arg0: i32) -> (i32, i32) {
    %c0_i32 = arith.constant 0 : i32
    %c0_i32_0 = arith.constant 0 : i32
    %c0_i32_1 = arith.constant 0 : i32
    return %c0_i32, %c0_i32_0 : i32, i32
  }
  func.func @transform_5(%arg0: i32) -> (i32, i32) {
    %c0_i32 = arith.constant 0 : i32
    %c0_i32_0 = arith.constant 0 : i32
    %c0_i32_1 = arith.constant 0 : i32
    return %c0_i32, %c0_i32_0 : i32, i32
  }
  func.func @transform_6(%arg0: i32) -> (i32, i32) {
    %c0_i32 = arith.constant 0 : i32
    %c0_i32_0 = arith.constant 0 : i32
    %c0_i32_1 = arith.constant 0 : i32
    return %c0_i32, %c0_i32_0 : i32, i32
  }
  func.func @transform_7(%arg0: i32) -> (i32, i32) {
    %c0_i32 = arith.constant 0 : i32
    %c0_i32_0 = arith.constant 0 : i32
    %c0_i32_1 = arith.constant 0 : i32
    return %c0_i32, %c0_i32_0 : i32, i32
  }
  func.func @transform_8(%arg0: i32) -> (i32, i32) {
    %c0_i32 = arith.constant 0 : i32
    %c0_i32_0 = arith.constant 0 : i32
    %c0_i32_1 = arith.constant 0 : i32
    return %c0_i32, %c0_i32_0 : i32, i32
  }
  func.func @transform_9(%arg0: i32) -> (i32, i32) {
    %c0_i32 = arith.constant 0 : i32
    %c0_i32_0 = arith.constant 0 : i32
    %c0_i32_1 = arith.constant 0 : i32
    return %c0_i32, %c0_i32_0 : i32, i32
  }
  func.func @transform_10(%arg0: i32) -> (i32, i32) {
    %c0_i32 = arith.constant 0 : i32
    %c0_i32_0 = arith.constant 0 : i32
    %c0_i32_1 = arith.constant 0 : i32
    return %c0_i32, %c0_i32_0 : i32, i32
  }
  func.func @transform_11(%arg0: i32) -> (i32, i32) {
    %c0_i32 = arith.constant 0 : i32
    %c0_i32_0 = arith.constant 0 : i32
    %c0_i32_1 = arith.constant 0 : i32
    return %c0_i32, %c0_i32_0 : i32, i32
  }
  func.func @transform_12(%arg0: i32) -> (i32, i32) {
    %c0_i32 = arith.constant 0 : i32
    %c0_i32_0 = arith.constant 0 : i32
    %c0_i32_1 = arith.constant 0 : i32
    return %c0_i32, %c0_i32_0 : i32, i32
  }
  func.func @transform_13(%arg0: i32) -> (i32, i32) {
    %c0_i32 = arith.constant 0 : i32
    %c0_i32_0 = arith.constant 0 : i32
    %c0_i32_1 = arith.constant 0 : i32
    return %c0_i32, %c0_i32_0 : i32, i32
  }
  func.func @transform_14(%arg0: i32) -> (i32, i32) {
    %c0_i32 = arith.constant 0 : i32
    %c0_i32_0 = arith.constant 0 : i32
    %c0_i32_1 = arith.constant 0 : i32
    return %c0_i32, %c0_i32_0 : i32, i32
  }
  func.func @transform_15(%arg0: i32) -> (i32, i32) {
    %c0_i32 = arith.constant 0 : i32
    %c0_i32_0 = arith.constant 0 : i32
    %c0_i32_1 = arith.constant 0 : i32
    return %c0_i32, %c0_i32_0 : i32, i32
  }
  func.func @transform_16(%arg0: i32) -> (i32, i32) {
    %c0_i32 = arith.constant 0 : i32
    %c0_i32_0 = arith.constant 0 : i32
    %c0_i32_1 = arith.constant 0 : i32
    return %c0_i32, %c0_i32_0 : i32, i32
  }
}

</mosaic_0001>

<llo_original>
// kernel: forward.1
$region0: #{forward.1}
  #allocation0 [shape = 'u32[]', space=smem, size = 0x4, offset = 0x4, fixed_abs, tag = 'smem constant byte address 0x4 - core index']
  #allocation1 [shape = 'u32[144,128]{1,0:T(1,128)}', space=vmem, size = 0x12000, scoped, tag = 'internal scratch']
  #allocation2 [shape = 'f32[1,1]{1,0:T(1,128)S(1)}', space=vmem, size = 0x200, scoped, tag = 'scoped memory for forward.1']
  %s0 = inlined_call_operand.vmem [shape: bf16[1376,48], index: 0, kind: input, shape index: {}]
  %s1 = inlined_call_operand.vmem [shape: bf16[4,48,32], index: 1, kind: input, shape index: {}]
  %s2 = inlined_call_operand.vmem [shape: bf16[1376,80], index: 2, kind: input, shape index: {}]
  %s3 = inlined_call_operand.vmem [shape: bf16[4,80,32], index: 3, kind: input, shape index: {}]
  %s4 = inlined_call_operand.vmem [shape: f32[8,32], index: 4, kind: input, shape index: {}]
  %s5 = inlined_call_operand.vmem [shape: f32[416,32], index: 5, kind: input, shape index: {}]
  %s6 = inlined_call_operand.vmem [shape: f32[416,32], index: 6, kind: input, shape index: {}]
  %s7 = inlined_call_operand.vmem [shape: bf16[8,400], index: 7, kind: input, shape index: {}]
  %s8 = inlined_call_operand.vmem [shape: bf16[400,128], index: 8, kind: input, shape index: {}]
  %s9 = inlined_call_operand.vmem [shape: f32[1,128], index: 9, kind: input, shape index: {}]
  %s10 = inlined_call_operand.vmem [shape: bf16[128,32], index: 10, kind: input, shape index: {}]
  %s11 = inlined_call_operand.vmem [shape: f32[1,32], index: 11, kind: input, shape index: {}]
  %s12 = inlined_call_operand.vmem [shape: f32[8,32], index: 12, kind: input, shape index: {}]
  %s13 = inlined_call_operand.vmem [shape: f32[1,32], index: 13, kind: input, shape index: {}]
  %s14 = inlined_call_operand.vmem [shape: f32[1,32], index: 14, kind: input, shape index: {}]
  %s15 = inlined_call_operand.<no memory space> [shape: f32[1,1], index: 15, kind: input, shape index: {}]
  %s16 = inlined_call_operand.vmem [shape: f32[8,128], index: 16, kind: output, shape index: {}]
  %s17 = sld [smem:[#allocation0]]
  $region74: #{forward.1} parent=0
    _
  %s19 = ssub.s32 1, %s17
  %s20 = scalar_select 0, %s19, %s17
  %v21 = vstv %s15
  %22 = vst [vmem:[#allocation2] sm:$0x1] %v21
  // Predicated region
  $region2: #{forward.1} parent=0 // pred_check
    _
  $region3: #{forward.1} parent=0 // pred_check_branch
    %24 = sbr.rel (0) target = $region5
  $region4: #{forward.1} parent=0 // pred_region
    _
  $region5: #{forward.1} parent=0 // pred_fallthru
    _
  // Predicated region
  $region6: #{forward.1} parent=0 // pred_check
    _
  $region7: #{forward.1} parent=0 // pred_check_branch
    %26 = sbr.rel (0) target = $region9
  $region8: #{forward.1} parent=0 // pred_region
    _
  $region9: #{forward.1} parent=0 // pred_fallthru
    _
  // Predicated region
  $region10: #{forward.1} parent=0 // pred_check
    _
  $region11: #{forward.1} parent=0 // pred_check_branch
    %28 = sbr.rel (0) target = $region13
  $region12: #{forward.1} parent=0 // pred_region
    _
  $region13: #{forward.1} parent=0 // pred_fallthru
    _
  // Predicated region
  $region14: #{forward.1} parent=0 // pred_check
    _
  $region15: #{forward.1} parent=0 // pred_check_branch
    %30 = sbr.rel (0) target = $region17
  $region16: #{forward.1} parent=0 // pred_region
    _
  $region17: #{forward.1} parent=0 // pred_fallthru
    _
  // Predicated region
  $region18: #{forward.1} parent=0 // pred_check
    _
  $region19: #{forward.1} parent=0 // pred_check_branch
    %32 = sbr.rel (0) target = $region21
  $region20: #{forward.1} parent=0 // pred_region
    _
  $region21: #{forward.1} parent=0 // pred_fallthru
    _
  // Predicated region
  $region22: #{forward.1} parent=0 // pred_check
    _
  $region23: #{forward.1} parent=0 // pred_check_branch
    %34 = sbr.rel (0) target = $region25
  $region24: #{forward.1} parent=0 // pred_region
    _
  $region25: #{forward.1} parent=0 // pred_fallthru
    _
  // Predicated region
  $region26: #{forward.1} parent=0 // pred_check
    _
  $region27: #{forward.1} parent=0 // pred_check_branch
    %36 = sbr.rel (0) target = $region29
  $region28: #{forward.1} parent=0 // pred_region
    _
  $region29: #{forward.1} parent=0 // pred_fallthru
    _
  // Predicated region
  $region30: #{forward.1} parent=0 // pred_check
    _
  $region31: #{forward.1} parent=0 // pred_check_branch
    %38 = sbr.rel (0) target = $region33
  $region32: #{forward.1} parent=0 // pred_region
    _
  $region33: #{forward.1} parent=0 // pred_fallthru
    _
  // Predicated region
  $region34: #{forward.1} parent=0 // pred_check
    _
  $region35: #{forward.1} parent=0 // pred_check_branch
    %40 = sbr.rel (0) target = $region37
  $region36: #{forward.1} parent=0 // pred_region
    _
  $region37: #{forward.1} parent=0 // pred_fallthru
    _
  // Predicated region
  $region38: #{forward.1} parent=0 // pred_check
    _
  $region39: #{forward.1} parent=0 // pred_check_branch
    %42 = sbr.rel (0) target = $region41
  $region40: #{forward.1} parent=0 // pred_region
    _
  $region41: #{forward.1} parent=0 // pred_fallthru
    _
  // Predicated region
  $region42: #{forward.1} parent=0 // pred_check
    _
  $region43: #{forward.1} parent=0 // pred_check_branch
    %44 = sbr.rel (0) target = $region45
  $region44: #{forward.1} parent=0 // pred_region
    _
  $region45: #{forward.1} parent=0 // pred_fallthru
    _
  // Predicated region
  $region46: #{forward.1} parent=0 // pred_check
    _
  $region47: #{forward.1} parent=0 // pred_check_branch
    %46 = sbr.rel (0) target = $region49
  $region48: #{forward.1} parent=0 // pred_region
    _
  $region49: #{forward.1} parent=0 // pred_fallthru
    _
  // Predicated region
  $region50: #{forward.1} parent=0 // pred_check
    _
  $region51: #{forward.1} parent=0 // pred_check_branch
    %48 = sbr.rel (0) target = $region53
  $region52: #{forward.1} parent=0 // pred_region
    _
  $region53: #{forward.1} parent=0 // pred_fallthru
    _
  // Predicated region
  $region54: #{forward.1} parent=0 // pred_check
    _
  $region55: #{forward.1} parent=0 // pred_check_branch
    %50 = sbr.rel (0) target = $region57
  $region56: #{forward.1} parent=0 // pred_region
    _
  $region57: #{forward.1} parent=0 // pred_fallthru
    _
  // Predicated region
  $region58: #{forward.1} parent=0 // pred_check
    _
  $region59: #{forward.1} parent=0 // pred_check_branch
    %52 = sbr.rel (0) target = $region61
  $region60: #{forward.1} parent=0 // pred_region
    _
  $region61: #{forward.1} parent=0 // pred_fallthru
    _
  // Predicated region
  $region62: #{forward.1} parent=0 // pred_check
    _
  $region63: #{forward.1} parent=0 // pred_check_branch
    %54 = sbr.rel (0) target = $region65
  $region64: #{forward.1} parent=0 // pred_region
    _
  $region65: #{forward.1} parent=0 // pred_fallthru
    _
  %v56 = vld [vmem:[%s0] sm:$0xf]
  %v57 = vld [vmem:[%s0 + $0x4] sm:$0xf]
  %v58 = vld [vmem:[%s0 + $0x8] sm:$0xf]
  %v59 = vld [vmem:[%s0 + $0xc] sm:$0xf]
  %v60 = vld [vmem:[%s0 + $0x10] sm:$0xf]
  %v61 = vld [vmem:[%s0 + $0x14] sm:$0xf]
  %v62 = vld [vmem:[%s0 + $0x18] sm:$0xf]
  %v63 = vld [vmem:[%s0 + $0x1c] sm:$0xf]
  %v64 = vld [vmem:[%s0 + $0x20] sm:$0xf]
  %v65 = vld [vmem:[%s0 + $0x24] sm:$0xf]
  %v66 = vld [vmem:[%s0 + $0x28] sm:$0xf]
  %v67 = vld [vmem:[%s0 + $0x2c] sm:$0xf]
  %v68 = vld [vmem:[%s0 + $0x30] sm:$0xf]
  %v69 = vld [vmem:[%s0 + $0x34] sm:$0xf]
  %v70 = vld [vmem:[%s0 + $0x38] sm:$0xf]
  %v71 = vld [vmem:[%s0 + $0x3c] sm:$0xf]
  %v72 = vld [vmem:[%s0 + $0x40] sm:$0xf]
  %v73 = vld [vmem:[%s0 + $0x44] sm:$0xf]
  %v74 = vld [vmem:[%s0 + $0x48] sm:$0xf]
  %v75 = vld [vmem:[%s0 + $0x4c] sm:$0xf]
  %v76 = vld [vmem:[%s0 + $0x50] sm:$0xf]
  %v77 = vld [vmem:[%s0 + $0x54] sm:$0xf]
  %v78 = vld [vmem:[%s0 + $0x58] sm:$0xf]
  %v79 = vld [vmem:[%s0 + $0x5c] sm:$0xf]
  %v80 = vld [vmem:[%s0 + $0x60] sm:$0xf]
  %v81 = vld [vmem:[%s0 + $0x64] sm:$0xf]
  %v82 = vld [vmem:[%s0 + $0x68] sm:$0xf]
  %v83 = vld [vmem:[%s0 + $0x6c] sm:$0xf]
  %v84 = vld [vmem:[%s0 + $0x70] sm:$0xf]
  %v85 = vld [vmem:[%s0 + $0x74] sm:$0xf]
  %v86 = vld [vmem:[%s0 + $0x78] sm:$0xf]
  %v87 = vld [vmem:[%s0 + $0x7c] sm:$0xf]
  %v88 = vld [vmem:[%s1] sm:$0xf]
  %v89 = vld [vmem:[%s1 + $0x4] sm:$0xf]
  %v90 = vld [vmem:[%s1 + $0x8] sm:$0xf]
  %v91 = vld [vmem:[%s1 + $0xc] sm:$0xf]
  %v92 = vld [vmem:[%s1 + $0x10] sm:$0xf]
  %v93 = vld [vmem:[%s1 + $0x14] sm:$0xf]
  %v126 = vunpack.c.l.b16 %v56
  %v127 = vunpack.c.l.b16 %v57
  %v128 = vunpack.c.l.b16 %v58
  %v129 = vunpack.c.l.b16 %v59
  %v130 = vunpack.c.l.b16 %v60
  %v131 = vunpack.c.l.b16 %v61
  %v132 = vunpack.c.l.b16 %v62
  %v133 = vunpack.c.l.b16 %v63
  %v134 = vunpack.c.l.b16 %v64
  %v135 = vunpack.c.l.b16 %v65
  %v136 = vunpack.c.l.b16 %v66
  %v137 = vunpack.c.l.b16 %v67
  %v138 = vunpack.c.l.b16 %v68
  %v139 = vunpack.c.l.b16 %v69
  %v140 = vunpack.c.l.b16 %v70
  %v141 = vunpack.c.l.b16 %v71
  %v142 = vunpack.c.l.b16 %v72
  %v143 = vunpack.c.l.b16 %v73
  %v144 = vunpack.c.l.b16 %v74
  %v145 = vunpack.c.l.b16 %v75
  %v146 = vunpack.c.l.b16 %v76
  %v147 = vunpack.c.l.b16 %v77
  %v148 = vunpack.c.l.b16 %v78
  %v149 = vunpack.c.l.b16 %v79
  %v150 = vunpack.c.l.b16 %v80
  %v151 = vunpack.c.l.b16 %v81
  %v152 = vunpack.c.l.b16 %v82
  %v153 = vunpack.c.l.b16 %v83
  %v154 = vunpack.c.l.b16 %v84
  %v155 = vunpack.c.l.b16 %v85
  %v156 = vunpack.c.l.b16 %v86
  %v157 = vunpack.c.l.b16 %v87
  %v158 = vpack.c.b16 %v127, %v126
  %v159 = vpack.c.b16 %v129, %v128
  %v160 = vpack.c.b16 %v131, %v130
  %v161 = vpack.c.b16 %v133, %v132
  %v162 = vpack.c.b16 %v135, %v134
  %v163 = vpack.c.b16 %v137, %v136
  %v164 = vpack.c.b16 %v139, %v138
  %v165 = vpack.c.b16 %v141, %v140
  %v166 = vpack.c.b16 %v143, %v142
  %v167 = vpack.c.b16 %v145, %v144
  %v168 = vpack.c.b16 %v147, %v146
  %v169 = vpack.c.b16 %v149, %v148
  %v170 = vpack.c.b16 %v151, %v150
  %v171 = vpack.c.b16 %v153, %v152
  %v172 = vpack.c.b16 %v155, %v154
  %v173 = vpack.c.b16 %v157, %v156
  %v180 = vunpack.c.l.b16 %v88
  %v181 = vunpack.c.l.b16 %v89
  %v182 = vunpack.c.l.b16 %v90
  %v183 = vunpack.c.l.b16 %v91
  %v184 = vunpack.c.l.b16 %v92
  %v185 = vunpack.c.l.b16 %v93
  %v186 = vpack.c.b16 %v181, %v180
  %v187 = vpack.c.b16 %v183, %v182
  %v188 = vpack.c.b16 %v185, %v184
  %vm192 = vcmask 392192
  %v194 = vsel %vm192, %v158, 0
  %v197 = vsel %vm192, %v159, 0
  %v200 = vsel %vm192, %v160, 0
  %v203 = vsel %vm192, %v161, 0
  %v206 = vsel %vm192, %v162, 0
  %v209 = vsel %vm192, %v163, 0
  %v212 = vsel %vm192, %v164, 0
  %v215 = vsel %vm192, %v165, 0
  %v218 = vsel %vm192, %v166, 0
  %v221 = vsel %vm192, %v167, 0
  %v224 = vsel %vm192, %v168, 0
  %v227 = vsel %vm192, %v169, 0
  %v230 = vsel %vm192, %v170, 0
  %v233 = vsel %vm192, %v171, 0
  %v236 = vsel %vm192, %v172, 0
  %v239 = vsel %vm192, %v173, 0
  %241 = vmatprep.subr.bf16.mxu0 0
  %242 = vmatpush1.bf16.msra.mxu0 %v186
  %243 = vmatprep.subr.bf16.mxu0 0
  %244 = vmatpush1.bf16.msra.mxu0 %v187
  %245 = vmatprep.subr.bf16.mxu0 0
  %246 = vmatpush1.bf16.msra.mxu0 %v188
  %247 = vmatprep.subr.bf16.mxu0 0
  %248 = vmatpush1.bf16.msra.mxu0 0
  %249 = vmatprep.subr.bf16.mxu0 0
  %250 = vmatpush1.bf16.msra.mxu0 0
  %251 = vmatprep.subr.bf16.mxu0 0
  %252 = vmatpush1.bf16.msra.mxu0 0
  %253 = vmatprep.subr.bf16.mxu0 0
  %254 = vmatpush1.bf16.msra.mxu0 0
  %255 = vmatprep.subr.bf16.mxu0 0
  %256 = vmatpush1.bf16.msra.mxu0 0
  %257 = vmatprep.subr.bf16.mxu0 0
  %258 = vmatpush1.bf16.msra.mxu0 0
  %259 = vmatprep.subr.bf16.mxu0 0
  %260 = vmatpush1.bf16.msra.mxu0 0
  %261 = vmatprep.subr.bf16.mxu0 0
  %262 = vmatpush1.bf16.msra.mxu0 0
  %263 = vmatprep.subr.bf16.mxu0 0
  %264 = vmatpush1.bf16.msra.mxu0 0
  %265 = vmatprep.subr.bf16.mxu0 0
  %266 = vmatpush1.bf16.msra.mxu0 0
  %267 = vmatprep.subr.bf16.mxu0 0
  %268 = vmatpush1.bf16.msra.mxu0 0
  %269 = vmatprep.subr.bf16.mxu0 0
  %270 = vmatpush1.bf16.msra.mxu0 0
  %271 = vmatprep.subr.bf16.mxu0 0
  %272 = vmatpush1.bf16.msra.mxu0 0
  %273 = vmatprep.mubr.bf16.mxu0 0
  %274 = vmatmul.mubr.bf16.gmra.mrb[0].mxu0 %v194
  %v275 = vpop.f32.mrb[0].mxu0
  %v276 = vadd.f32 0.0, %v275
  %v277 = vpop.f32.mrb[0].mxu0
  %v278 = vpop.f32.mrb[0].mxu0
  %v279 = vadd.f32 0.0, %v278
  %v280 = vpop.f32.mrb[0].mxu0
  %281 = vmatprep.mubr.bf16.mxu0 0
  %282 = vmatmul.mubr.bf16.gmra.mrb[0].mxu0 %v197
  %v283 = vpop.f32.mrb[0].mxu0
  %v284 = vadd.f32 0.0, %v283
  %v285 = vpop.f32.mrb[0].mxu0
  %v286 = vpop.f32.mrb[0].mxu0
  %v287 = vadd.f32 0.0, %v286
  %v288 = vpop.f32.mrb[0].mxu0
  %289 = vmatprep.mubr.bf16.mxu0 0
  %290 = vmatmul.mubr.bf16.gmra.mrb[0].mxu0 %v200
  %v291 = vpop.f32.mrb[0].mxu0
  %v292 = vadd.f32 0.0, %v291
  %v293 = vpop.f32.mrb[0].mxu0
  %v294 = vpop.f32.mrb[0].mxu0
  %v295 = vadd.f32 0.0, %v294
  %v296 = vpop.f32.mrb[0].mxu0
  %297 = vmatprep.mubr.bf16.mxu0 0
  %298 = vmatmul.mubr.bf16.gmra.mrb[0].mxu0 %v203
  %v299 = vpop.f32.mrb[0].mxu0
  %v300 = vadd.f32 0.0, %v299
  %v301 = vpop.f32.mrb[0].mxu0
  %v302 = vpop.f32.mrb[0].mxu0
  %v303 = vadd.f32 0.0, %v302
  %v304 = vpop.f32.mrb[0].mxu0
  %305 = vmatprep.mubr.bf16.mxu0 0
  %306 = vmatmul.mubr.bf16.gmra.mrb[0].mxu0 %v206
  %v307 = vpop.f32.mrb[0].mxu0
  %v308 = vadd.f32 0.0, %v307
  %v309 = vpop.f32.mrb[0].mxu0
  %v310 = vpop.f32.mrb[0].mxu0
  %v311 = vadd.f32 0.0, %v310
  %v312 = vpop.f32.mrb[0].mxu0
  %313 = vmatprep.mubr.bf16.mxu0 0
  %314 = vmatmul.mubr.bf16.gmra.mrb[0].mxu0 %v209
  %v315 = vpop.f32.mrb[0].mxu0
  %v316 = vadd.f32 0.0, %v315
  %v317 = vpop.f32.mrb[0].mxu0
  %v318 = vpop.f32.mrb[0].mxu0
  %v319 = vadd.f32 0.0, %v318
  %v320 = vpop.f32.mrb[0].mxu0
  %321 = vmatprep.mubr.bf16.mxu0 0
  %322 = vmatmul.mubr.bf16.gmra.mrb[0].mxu0 %v212
  %v323 = vpop.f32.mrb[0].mxu0
  %v324 = vadd.f32 0.0, %v323
  %v325 = vpop.f32.mrb[0].mxu0
  %v326 = vpop.f32.mrb[0].mxu0
  %v327 = vadd.f32 0.0, %v326
  %v328 = vpop.f32.mrb[0].mxu0
  %329 = vmatprep.mubr.bf16.mxu0 0
  %330 = vmatmul.mubr.bf16.gmra.mrb[0].mxu0 %v215
  %v331 = vpop.f32.mrb[0].mxu0
  %v332 = vadd.f32 0.0, %v331
  %v333 = vpop.f32.mrb[0].mxu0
  %v334 = vpop.f32.mrb[0].mxu0
  %v335 = vadd.f32 0.0, %v334
  %v336 = vpop.f32.mrb[0].mxu0
  %337 = vmatprep.mubr.bf16.mxu0 0
  %338 = vmatmul.mubr.bf16.gmra.mrb[0].mxu0 %v218
  %v339 = vpop.f32.mrb[0].mxu0
  %v340 = vadd.f32 0.0, %v339
  %v341 = vpop.f32.mrb[0].mxu0
  %v342 = vpop.f32.mrb[0].mxu0
  %v343 = vadd.f32 0.0, %v342
  %v344 = vpop.f32.mrb[0].mxu0
  %345 = vmatprep.mubr.bf16.mxu0 0
  %346 = vmatmul.mubr.bf16.gmra.mrb[0].mxu0 %v221
  %v347 = vpop.f32.mrb[0].mxu0
  %v348 = vadd.f32 0.0, %v347
  %v349 = vpop.f32.mrb[0].mxu0
  %v350 = vpop.f32.mrb[0].mxu0
  %v351 = vadd.f32 0.0, %v350
  %v352 = vpop.f32.mrb[0].mxu0
  %353 = vmatprep.mubr.bf16.mxu0 0
  %354 = vmatmul.mubr.bf16.gmra.mrb[0].mxu0 %v224
  %v355 = vpop.f32.mrb[0].mxu0
  %v356 = vadd.f32 0.0, %v355
  %v357 = vpop.f32.mrb[0].mxu0
  %v358 = vpop.f32.mrb[0].mxu0
  %v359 = vadd.f32 0.0, %v358
  %v360 = vpop.f32.mrb[0].mxu0
  %361 = vmatprep.mubr.bf16.mxu0 0
  %362 = vmatmul.mubr.bf16.gmra.mrb[0].mxu0 %v227
  %v363 = vpop.f32.mrb[0].mxu0
  %v364 = vadd.f32 0.0, %v363
  %v365 = vpop.f32.mrb[0].mxu0
  %v366 = vpop.f32.mrb[0].mxu0
  %v367 = vadd.f32 0.0, %v366
  %v368 = vpop.f32.mrb[0].mxu0
  %369 = vmatprep.mubr.bf16.mxu0 0
  %370 = vmatmul.mubr.bf16.gmra.mrb[0].mxu0 %v230
  %v371 = vpop.f32.mrb[0].mxu0
  %v372 = vadd.f32 0.0, %v371
  %v373 = vpop.f32.mrb[0].mxu0
  %v374 = vpop.f32.mrb[0].mxu0
  %v375 = vadd.f32 0.0, %v374
  %v376 = vpop.f32.mrb[0].mxu0
  %377 = vmatprep.mubr.bf16.mxu0 0
  %378 = vmatmul.mubr.bf16.gmra.mrb[0].mxu0 %v233
  %v379 = vpop.f32.mrb[0].mxu0
  %v380 = vadd.f32 0.0, %v379
  %v381 = vpop.f32.mrb[0].mxu0
  %v382 = vpop.f32.mrb[0].mxu0
  %v383 = vadd.f32 0.0, %v382
  %v384 = vpop.f32.mrb[0].mxu0
  %385 = vmatprep.mubr.bf16.mxu0 0
  %386 = vmatmul.mubr.bf16.gmra.mrb[0].mxu0 %v236
  %v387 = vpop.f32.mrb[0].mxu0
  %v388 = vadd.f32 0.0, %v387
  %v389 = vpop.f32.mrb[0].mxu0
  %v390 = vpop.f32.mrb[0].mxu0
  %v391 = vadd.f32 0.0, %v390
  %v392 = vpop.f32.mrb[0].mxu0
  %393 = vmatprep.mubr.bf16.mxu0 0
  %394 = vmatmul.mubr.bf16.gmra.mrb[0].mxu0 %v239
  %v395 = vpop.f32.mrb[0].mxu0
  %v396 = vadd.f32 0.0, %v395
  %v397 = vpop.f32.mrb[0].mxu0
  %v398 = vpop.f32.mrb[0].mxu0
  %v399 = vadd.f32 0.0, %v398
  %v400 = vpop.f32.mrb[0].mxu0
  %401 = vdwg.mxu0
  %v402 = vmax.f32 %v276, %v340
  %v403 = vmax.f32 %v279, %v343
  %v404 = vmax.f32 %v284, %v348
  %v405 = vmax.f32 %v287, %v351
  %v406 = vmax.f32 %v292, %v356
  %v407 = vmax.f32 %v295, %v359
  %v408 = vmax.f32 %v300, %v364
  %v409 = vmax.f32 %v303, %v367
  %v410 = vmax.f32 %v308, %v372
  %v411 = vmax.f32 %v311, %v375
  %v412 = vmax.f32 %v316, %v380
  %v413 = vmax.f32 %v319, %v383
  %v414 = vmax.f32 %v324, %v388
  %v415 = vmax.f32 %v327, %v391
  %v416 = vmax.f32 %v332, %v396
  %v417 = vmax.f32 %v335, %v399
  %v418 = vld [vmem:[%s4] sm:$0x1]
  %v419 = vlaneseq
  %v420 = vshrl.u32 %v419, 7
  %v421 = vsub.s32 0, %v420
  %v422 = vrot.slane %v418, %v421
  %v423 = vadd.f32 %v402, %v422
  %v424 = vadd.f32 %v403, %v422
  %v425 = vadd.f32 %v404, %v422
  %v426 = vadd.f32 %v405, %v422
  %v427 = vadd.f32 %v406, %v422
  %v428 = vadd.f32 %v407, %v422
  %v429 = vadd.f32 %v408, %v422
  %v430 = vadd.f32 %v409, %v422
  %v431 = vadd.f32 %v410, %v422
  %v432 = vadd.f32 %v411, %v422
  %v433 = vadd.f32 %v412, %v422
  %v434 = vadd.f32 %v413, %v422
  %v435 = vadd.f32 %v414, %v422
  %v436 = vadd.f32 %v415, %v422
  %v437 = vadd.f32 %v416, %v422
  %v438 = vadd.f32 %v417, %v422
  %v439 = vmax.f32 %v423, 0.0
  %v440 = vmax.f32 %v424, 0.0
  %v441 = vmax.f32 %v425, 0.0
  %v442 = vmax.f32 %v426, 0.0
  %v443 = vmax.f32 %v427, 0.0
  %v444 = vmax.f32 %v428, 0.0
  %v445 = vmax.f32 %v429, 0.0
  %v446 = vmax.f32 %v430, 0.0
  %v447 = vmax.f32 %v431, 0.0
  %v448 = vmax.f32 %v432, 0.0
  %v449 = vmax.f32 %v433, 0.0
  %v450 = vmax.f32 %v434, 0.0
  %v451 = vmax.f32 %v435, 0.0
  %v452 = vmax.f32 %v436, 0.0
  %v453 = vmax.f32 %v437, 0.0
  %v454 = vmax.f32 %v438, 0.0
  %v455 = vld [vmem:[%s5] sm:$0xff]
  %v456 = vld [vmem:[%s5 + $0x8] sm:$0xff]
  %v457 = vld [vmem:[%s5 + $0x10] sm:$0xff]
  %v458 = vld [vmem:[%s5 + $0x18] sm:$0xff]
  %v459 = vld [vmem:[%s5 + $0x20] sm:$0xff]
  %v460 = vld [vmem:[%s5 + $0x28] sm:$0xff]
  %v461 = vld [vmem:[%s5 + $0x30] sm:$0xff]
  %v462 = vld [vmem:[%s5 + $0x38] sm:$0xff]
  %v463 = vld [vmem:[%s5 + $0x40] sm:$0xff]
  %v464 = vld [vmem:[%s5 + $0x48] sm:$0xff]
  %v465 = vld [vmem:[%s5 + $0x50] sm:$0xff]
  %v466 = vld [vmem:[%s5 + $0x58] sm:$0xff]
  %v467 = vld [vmem:[%s5 + $0x60] sm:$0xff]
  %v468 = vld [vmem:[%s5 + $0x68] sm:$0xff]
  %v469 = vld [vmem:[%s5 + $0x70] sm:$0xff]
  %v470 = vld [vmem:[%s5 + $0x78] sm:$0xff]
  %v471 = vmul.f32 %v439, %v455
  %v472 = vmul.f32 %v440, %v456
  %v473 = vmul.f32 %v441, %v457
  %v474 = vmul.f32 %v442, %v458
  %v475 = vmul.f32 %v443, %v459
  %v476 = vmul.f32 %v444, %v460
  %v477 = vmul.f32 %v445, %v461
  %v478 = vmul.f32 %v446, %v462
  %v479 = vmul.f32 %v447, %v463
  %v480 = vmul.f32 %v448, %v464
  %v481 = vmul.f32 %v449, %v465
  %v482 = vmul.f32 %v450, %v466
  %v483 = vmul.f32 %v451, %v467
  %v484 = vmul.f32 %v452, %v468
  %v485 = vmul.f32 %v453, %v469
  %v486 = vmul.f32 %v454, %v470
  %v487 = vadd.f32 %v471, %v473
  %v488 = vadd.f32 %v472, %v474
  %v489 = vadd.f32 %v487, %v475
  %v490 = vadd.f32 %v488, %v476
  %v491 = vadd.f32 %v489, %v477
  %v492 = vadd.f32 %v490, %v478
  %v493 = vadd.f32 %v491, %v479
  %v494 = vadd.f32 %v492, %v480
  %v495 = vadd.f32 %v493, %v481
  %v496 = vadd.f32 %v494, %v482
  %v497 = vadd.f32 %v495, %v483
  %v498 = vadd.f32 %v496, %v484
  %v499 = vadd.f32 %v497, %v485
  %v500 = vadd.f32 %v498, %v486
  %v501 = vadd.f32 %v499, 0.0
  %v502 = vadd.f32 %v500, 0.0
  %v503 = vld [vmem:[%s0 + $0x80] sm:$0xf]
  %v504 = vld [vmem:[%s0 + $0x84] sm:$0xf]
  %v505 = vld [vmem:[%s0 + $0x88] sm:$0xf]
  %v506 = vld [vmem:[%s0 + $0x8c] sm:$0xf]
  %v507 = vld [vmem:[%s0 + $0x90] sm:$0xf]
  %v508 = vld [vmem:[%s0 + $0x94] sm:$0xf]
  %v509 = vld [vmem:[%s0 + $0x98] sm:$0xf]
  %v510 = vld [vmem:[%s0 + $0x9c] sm:$0xf]
  %v511 = vld [vmem:[%s0 + $0xa0] sm:$0xf]
  %v512 = vld [vmem:[%s0 + $0xa4] sm:$0xf]
  %v513 = vld [vmem:[%s0 + $0xa8] sm:$0xf]
  %v514 = vld [vmem:[%s0 + $0xac] sm:$0xf]
  %v515 = vld [vmem:[%s0 + $0xb0] sm:$0xf]
  %v516 = vld [vmem:[%s0 + $0xb4] sm:$0xf]
  %v517 = vld [vmem:[%s0 + $0xb8] sm:$0xf]
  %v518 = vld [vmem:[%s0 + $0xbc] sm:$0xf]
  %v519 = vld [vmem:[%s0 + $0xc0] sm:$0xf]
  %v520 = vld [vmem:[%s0 + $0xc4] sm:$0xf]
  %v521 = vld [vmem:[%s0 + $0xc8] sm:$0xf]
  %v522 = vld [vmem:[%s0 + $0xcc] sm:$0xf]
  %v523 = vld [vmem:[%s0 + $0xd0] sm:$0xf]
  %v524 = vld [vmem:[%s0 + $0xd4] sm:$0xf]
  %v525 = vld [vmem:[%s0 + $0xd8] sm:$0xf]
  %v526 = vld [vmem:[%s0 + $0xdc] sm:$0xf]
  %v527 = vld [vmem:[%s0 + $0xe0] sm:$0xf]
  %v528 = vld [vmem:[%s0 + $0xe4] sm:$0xf]
  %v529 = vld [vmem:[%s0 + $0xe8] sm:$0xf]
  %v530 = vld [vmem:[%s0 + $0xec] sm:$0xf]
  %v531 = vld [vmem:[%s0 + $0xf0] sm:$0xf]
  %v532 = vld [vmem:[%s0 + $0xf4] sm:$0xf]
  %v533 = vld [vmem:[%s0 + $0xf8] sm:$0xf]
  %v534 = vld [vmem:[%s0 + $0xfc] sm:$0xf]
  %v535 = vld [vmem:[%s0 + $0x100] sm:$0xf]
  %v536 = vld [vmem:[%s0 + $0x104] sm:$0xf]
  %v537 = vld [vmem:[%s0 + $0x108] sm:$0xf]
  %v538 = vld [vmem:[%s0 + $0x10c] sm:$0xf]
  %v539 = vld [vmem:[%s0 + $0x110] sm:$0xf]
  %v540 = vld [vmem:[%s0 + $0x114] sm:$0xf]
  %v541 = vld [vmem:[%s0 + $0x118] sm:$0xf]
  %v542 = vld [vmem:[%s0 + $0x11c] sm:$0xf]
  %v543 = vld [vmem:[%s0 + $0x120] sm:$0xf]
  %v544 = vld [vmem:[%s0 + $0x124] sm:$0xf]
  %s545 = scalar_lea.vmem %s1, 24
  %v546 = vld [vmem:[%s545] sm:$0xf]
  %v547 = vld [vmem:[%s545 + $0x4] sm:$0xf]
  %v548 = vld [vmem:[%s545 + $0x8] sm:$0xf]
  %v549 = vld [vmem:[%s545 + $0xc] sm:$0xf]
  %v550 = vld [vmem:[%s545 + $0x10] sm:$0xf]
  %v551 = vld [vmem:[%s545 + $0x14] sm:$0xf]
  %v594 = vunpack.c.l.b16 %v503
  %v595 = vunpack.c.l.b16 %v504
  %v596 = vunpack.c.l.b16 %v505
  %v597 = vunpack.c.l.b16 %v506
  %v598 = vunpack.c.l.b16 %v507
  %v599 = vunpack.c.l.b16 %v508
  %v600 = vunpack.c.l.b16 %v509
  %v601 = vunpack.c.l.b16 %v510
  %v602 = vunpack.c.l.b16 %v511
  %v603 = vunpack.c.l.b16 %v512
  %v604 = vunpack.c.l.b16 %v513
  %v605 = vunpack.c.l.b16 %v514
  %v606 = vunpack.c.l.b16 %v515
  %v607 = vunpack.c.l.b16 %v516
  %v608 = vunpack.c.l.b16 %v517
  %v609 = vunpack.c.l.b16 %v518
  %v610 = vunpack.c.l.b16 %v519
  %v611 = vunpack.c.l.b16 %v520
  %v612 = vunpack.c.l.b16 %v521
  %v613 = vunpack.c.l.b16 %v522
  %v614 = vunpack.c.l.b16 %v523
  %v615 = vunpack.c.l.b16 %v524
  %v616 = vunpack.c.l.b16 %v525
  %v617 = vunpack.c.l.b16 %v526
  %v618 = vunpack.c.l.b16 %v527
  %v619 = vunpack.c.l.b16 %v528
  %v620 = vunpack.c.l.b16 %v529
  %v621 = vunpack.c.l.b16 %v530
  %v622 = vunpack.c.l.b16 %v531
  %v623 = vunpack.c.l.b16 %v532
  %v624 = vunpack.c.l.b16 %v533
  %v625 = vunpack.c.l.b16 %v534
  %v626 = vunpack.c.l.b16 %v535
  %v627 = vunpack.c.l.b16 %v536
  %v628 = vunpack.c.l.b16 %v537
  %v629 = vunpack.c.l.b16 %v538
  %v630 = vunpack.c.l.b16 %v539
  %v631 = vunpack.c.l.b16 %v540
  %v632 = vunpack.c.l.b16 %v541
  %v633 = vunpack.c.l.b16 %v542
  %v634 = vunpack.c.l.b16 %v543
  %v635 = vunpack.c.l.b16 %v544
  %v636 = vpack.c.b16 %v595, %v594
  %v637 = vpack.c.b16 %v597, %v596
  %v638 = vpack.c.b16 %v599, %v598
  %v639 = vpack.c.b16 %v601, %v600
  %v640 = vpack.c.b16 %v603, %v602
  %v641 = vpack.c.b16 %v605, %v604
  %v642 = vpack.c.b16 %v607, %v606
  %v643 = vpack.c.b16 %v609, %v608
  %v644 = vpack.c.b16 %v611, %v610
  %v645 = vpack.c.b16 %v613, %v612
  %v646 = vpack.c.b16 %v615, %v614
  %v647 = vpack.c.b16 %v617, %v616
  %v648 = vpack.c.b16 %v619, %v618
  %v649 = vpack.c.b16 %v621, %v620
  %v650 = vpack.c.b16 %v623, %v622
  %v651 = vpack.c.b16 %v625, %v624
  %v652 = vpack.c.b16 %v627, %v626
  %v653 = vpack.c.b16 %v629, %v628
  %v654 = vpack.c.b16 %v631, %v630
  %v655 = vpack.c.b16 %v633, %v632
  %v656 = vpack.c.b16 %v635, %v634
  %v663 = vunpack.c.l.b16 %v546
  %v664 = vunpack.c.l.b16 %v547
  %v665 = vunpack.c.l.b16 %v548
  %v666 = vunpack.c.l.b16 %v549
  %v667 = vunpack.c.l.b16 %v550
  %v668 = vunpack.c.l.b16 %v551
  %v669 = vpack.c.b16 %v664, %v663
  %v670 = vpack.c.b16 %v666, %v665
  %v671 = vpack.c.b16 %v668, %v667
  %v676 = vsel %vm192, %v636, 0
  %v679 = vsel %vm192, %v637, 0
  %v682 = vsel %vm192, %v638, 0
  %v685 = vsel %vm192, %v639, 0
  %v688 = vsel %vm192, %v640, 0
  %v691 = vsel %vm192, %v641, 0
  %v694 = vsel %vm192, %v642, 0
  %v697 = vsel %vm192, %v643, 0
  %v700 = vsel %vm192, %v644, 0
  %v703 = vsel %vm192, %v645, 0
  %v706 = vsel %vm192, %v646, 0
  %v709 = vsel %vm192, %v647, 0
  %v712 = vsel %vm192, %v648, 0
  %v715 = vsel %vm192, %v649, 0
  %v718 = vsel %vm192, %v650, 0
  %v721 = vsel %vm192, %v651, 0
  %v724 = vsel %vm192, %v652, 0
  %v727 = vsel %vm192, %v653, 0
  %v730 = vsel %vm192, %v654, 0
  %v733 = vsel %vm192, %v655, 0
  %v736 = vsel %vm192, %v656, 0
  %738 = vmatprep.subr.bf16.mxu0 0
  %739 = vmatpush1.bf16.msra.mxu0 %v669
  %740 = vmatprep.subr.bf16.mxu0 0
  %741 = vmatpush1.bf16.msra.mxu0 %v670
  %742 = vmatprep.subr.bf16.mxu0 0
  %743 = vmatpush1.bf16.msra.mxu0 %v671
  %744 = vmatprep.subr.bf16.mxu0 0
  %745 = vmatpush1.bf16.msra.mxu0 0
  %746 = vmatprep.subr.bf16.mxu0 0
  %747 = vmatpush1.bf16.msra.mxu0 0
  %748 = vmatprep.subr.bf16.mxu0 0
  %749 = vmatpush1.bf16.msra.mxu0 0
  %750 = vmatprep.subr.bf16.mxu0 0
  %751 = vmatpush1.bf16.msra.mxu0 0
  %752 = vmatprep.subr.bf16.mxu0 0
  %753 = vmatpush1.bf16.msra.mxu0 0
  %754 = vmatprep.subr.bf16.mxu0 0
  %755 = vmatpush1.bf16.msra.mxu0 0
  %756 = vmatprep.subr.bf16.mxu0 0
  %757 = vmatpush1.bf16.msra.mxu0 0
  %758 = vmatprep.subr.bf16.mxu0 0
  %759 = vmatpush1.bf16.msra.mxu0 0
  %760 = vmatprep.subr.bf16.mxu0 0
  %761 = vmatpush1.bf16.msra.mxu0 0
  %762 = vmatprep.subr.bf16.mxu0 0
  %763 = vmatpush1.bf16.msra.mxu0 0
  %764 = vmatprep.subr.bf16.mxu0 0
  %765 = vmatpush1.bf16.msra.mxu0 0
  %766 = vmatprep.subr.bf16.mxu0 0
  %767 = vmatpush1.bf16.msra.mxu0 0
  %768 = vmatprep.subr.bf16.mxu0 0
  %769 = vmatpush1.bf16.msra.mxu0 0
  %770 = vmatprep.mubr.bf16.mxu0 0
  %771 = vmatmul.mubr.bf16.gmra.mrb[0].mxu0 %v676
  %v772 = vpop.f32.mrb[0].mxu0
  %v773 = vadd.f32 0.0, %v772
  %v774 = vpop.f32.mrb[0].mxu0
  %v775 = vpop.f32.mrb[0].mxu0
  %v776 = vadd.f32 0.0, %v775
  %v777 = vpop.f32.mrb[0].mxu0
  %778 = vmatprep.mubr.bf16.mxu0 0
  %779 = vmatmul.mubr.bf16.gmra.mrb[0].mxu0 %v679
  %v780 = vpop.f32.mrb[0].mxu0
  %v781 = vadd.f32 0.0, %v780
  %v782 = vpop.f32.mrb[0].mxu0
  %v783 = vpop.f32.mrb[0].mxu0
  %v784 = vadd.f32 0.0, %v783
  %v785 = vpop.f32.mrb[0].mxu0
  %786 = vmatprep.mubr.bf16.mxu0 0
  %787 = vmatmul.mubr.bf16.gmra.mrb[0].mxu0 %v682
  %v788 = vpop.f32.mrb[0].mxu0
  %v789 = vadd.f32 0.0, %v788
  %v790 = vpop.f32.mrb[0].mxu0
  %v791 = vpop.f32.mrb[0].mxu0
  %v792 = vadd.f32 0.0, %v791
  %v793 = vpop.f32.mrb[0].mxu0
  %794 = vmatprep.mubr.bf16.mxu0 0
  %795 = vmatmul.mubr.bf16.gmra.mrb[0].mxu0 %v685
  %v796 = vpop.f32.mrb[0].mxu0
  %v797 = vadd.f32 0.0, %v796
  %v798 = vpop.f32.mrb[0].mxu0
  %v799 = vpop.f32.mrb[0].mxu0
  %v800 = vadd.f32 0.0, %v799
  %v801 = vpop.f32.mrb[0].mxu0
  %802 = vmatprep.mubr.bf16.mxu0 0
  %803 = vmatmul.mubr.bf16.gmra.mrb[0].mxu0 %v688
  %v804 = vpop.f32.mrb[0].mxu0
  %v805 = vadd.f32 0.0, %v804
  %v806 = vpop.f32.mrb[0].mxu0
  %v807 = vpop.f32.mrb[0].mxu0
  %v808 = vadd.f32 0.0, %v807
  %v809 = vpop.f32.mrb[0].mxu0
  %810 = vmatprep.mubr.bf16.mxu0 0
  %811 = vmatmul.mubr.bf16.gmra.mrb[0].mxu0 %v691
  %v812 = vpop.f32.mrb[0].mxu0
  %v813 = vadd.f32 0.0, %v812
  %v814 = vpop.f32.mrb[0].mxu0
  %v815 = vpop.f32.mrb[0].mxu0
  %v816 = vadd.f32 0.0, %v815
  %v817 = vpop.f32.mrb[0].mxu0
  %818 = vmatprep.mubr.bf16.mxu0 0
  %819 = vmatmul.mubr.bf16.gmra.mrb[0].mxu0 %v694
  %v820 = vpop.f32.mrb[0].mxu0
  %v821 = vadd.f32 0.0, %v820
  %v822 = vpop.f32.mrb[0].mxu0
  %v823 = vpop.f32.mrb[0].mxu0
  %v824 = vadd.f32 0.0, %v823
  %v825 = vpop.f32.mrb[0].mxu0
  %826 = vmatprep.mubr.bf16.mxu0 0
  %827 = vmatmul.mubr.bf16.gmra.mrb[0].mxu0 %v697
  %v828 = vpop.f32.mrb[0].mxu0
  %v829 = vadd.f32 0.0, %v828
  %v830 = vpop.f32.mrb[0].mxu0
  %v831 = vpop.f32.mrb[0].mxu0
  %v832 = vadd.f32 0.0, %v831
  %v833 = vpop.f32.mrb[0].mxu0
  %834 = vmatprep.mubr.bf16.mxu0 0
  %835 = vmatmul.mubr.bf16.gmra.mrb[0].mxu0 %v700
  %v836 = vpop.f32.mrb[0].mxu0
  %v837 = vadd.f32 0.0, %v836
  %v838 = vpop.f32.mrb[0].mxu0
  %v839 = vpop.f32.mrb[0].mxu0
  %v840 = vadd.f32 0.0, %v839
  %v841 = vpop.f32.mrb[0].mxu0
  %842 = vmatprep.mubr.bf16.mxu0 0
  %843 = vmatmul.mubr.bf16.gmra.mrb[0].mxu0 %v703
  %v844 = vpop.f32.mrb[0].mxu0
  %v845 = vadd.f32 0.0, %v844
  %v846 = vpop.f32.mrb[0].mxu0
  %v847 = vpop.f32.mrb[0].mxu0
  %v848 = vadd.f32 0.0, %v847
  %v849 = vpop.f32.mrb[0].mxu0
  %850 = vmatprep.mubr.bf16.mxu0 0
  %851 = vmatmul.mubr.bf16.gmra.mrb[0].mxu0 %v706
  %v852 = vpop.f32.mrb[0].mxu0
  %v853 = vadd.f32 0.0, %v852
  %v854 = vpop.f32.mrb[0].mxu0
  %v855 = vpop.f32.mrb[0].mxu0
  %v856 = vadd.f32 0.0, %v855
  %v857 = vpop.f32.mrb[0].mxu0
  %858 = vmatprep.mubr.bf16.mxu0 0
  %859 = vmatmul.mubr.bf16.gmra.mrb[0].mxu0 %v709
  %v860 = vpop.f32.mrb[0].mxu0
  %v861 = vadd.f32 0.0, %v860
  %v862 = vpop.f32.mrb[0].mxu0
  %v863 = vpop.f32.mrb[0].mxu0
  %v864 = vadd.f32 0.0, %v863
  %v865 = vpop.f32.mrb[0].mxu0
  %866 = vmatprep.mubr.bf16.mxu0 0
  %867 = vmatmul.mubr.bf16.gmra.mrb[0].mxu0 %v712
  %v868 = vpop.f32.mrb[0].mxu0
  %v869 = vadd.f32 0.0, %v868
  %v870 = vpop.f32.mrb[0].mxu0
  %v871 = vpop.f32.mrb[0].mxu0
  %v872 = vadd.f32 0.0, %v871
  %v873 = vpop.f32.mrb[0].mxu0
  %874 = vmatprep.mubr.bf16.mxu0 0
  %875 = vmatmul.mubr.bf16.gmra.mrb[0].mxu0 %v715
  %v876 = vpop.f32.mrb[0].mxu0
  %v877 = vadd.f32 0.0, %v876
  %v878 = vpop.f32.mrb[0].mxu0
  %v879 = vpop.f32.mrb[0].mxu0
  %v880 = vadd.f32 0.0, %v879
  %v881 = vpop.f32.mrb[0].mxu0
  %882 = vmatprep.mubr.bf16.mxu0 0
  %883 = vmatmul.mubr.bf16.gmra.mrb[0].mxu0 %v718
  %v884 = vpop.f32.mrb[0].mxu0
  %v885 = vadd.f32 0.0, %v884
  %v886 = vpop.f32.mrb[0].mxu0
  %v887 = vpop.f32.mrb[0].mxu0
  %v888 = vadd.f32 0.0, %v887
  %v889 = vpop.f32.mrb[0].mxu0
  %890 = vmatprep.mubr.bf16.mxu0 0
  %891 = vmatmul.mubr.bf16.gmra.mrb[0].mxu0 %v721
  %v892 = vpop.f32.mrb[0].mxu0
  %v893 = vadd.f32 0.0, %v892
  %v894 = vpop.f32.mrb[0].mxu0
  %v895 = vpop.f32.mrb[0].mxu0
  %v896 = vadd.f32 0.0, %v895
  %v897 = vpop.f32.mrb[0].mxu0
  %898 = vmatprep.mubr.bf16.mxu0 0
  %899 = vmatmul.mubr.bf16.gmra.mrb[0].mxu0 %v724
  %v900 = vpop.f32.mrb[0].mxu0
  %v901 = vadd.f32 0.0, %v900
  %v902 = vpop.f32.mrb[0].mxu0
  %v903 = vpop.f32.mrb[0].mxu0
  %v904 = vadd.f32 0.0, %v903
  %v905 = vpop.f32.mrb[0].mxu0
  %906 = vmatprep.mubr.bf16.mxu0 0
  %907 = vmatmul.mubr.bf16.gmra.mrb[0].mxu0 %v727
  %v908 = vpop.f32.mrb[0].mxu0
  %v909 = vadd.f32 0.0, %v908
  %v910 = vpop.f32.mrb[0].mxu0
  %v911 = vpop.f32.mrb[0].mxu0
  %v912 = vadd.f32 0.0, %v911
  %v913 = vpop.f32.mrb[0].mxu0
  %914 = vmatprep.mubr.bf16.mxu0 0
  %915 = vmatmul.mubr.bf16.gmra.mrb[0].mxu0 %v730
  %v916 = vpop.f32.mrb[0].mxu0
  %v917 = vadd.f32 0.0, %v916
  %v918 = vpop.f32.mrb[0].mxu0
  %v919 = vpop.f32.mrb[0].mxu0
  %v920 = vadd.f32 0.0, %v919
  %v921 = vpop.f32.mrb[0].mxu0
  %922 = vmatprep.mubr.bf16.mxu0 0
  %923 = vmatmul.mubr.bf16.gmra.mrb[0].mxu0 %v733
  %v924 = vpop.f32.mrb[0].mxu0
  %v925 = vadd.f32 0.0, %v924
  %v926 = vpop.f32.mrb[0].mxu0
  %v927 = vpop.f32.mrb[0].mxu0
  %v928 = vadd.f32 0.0, %v927
  %v929 = vpop.f32.mrb[0].mxu0
  %930 = vmatprep.mubr.bf16.mxu0 0
  %931 = vmatmul.mubr.bf16.gmra.mrb[0].mxu0 %v736
  %v932 = vpop.f32.mrb[0].mxu0
  %v933 = vadd.f32 0.0, %v932
  %v934 = vpop.f32.mrb[0].mxu0
  %v935 = vpop.f32.mrb[0].mxu0
  %v936 = vadd.f32 0.0, %v935
  %v937 = vpop.f32.mrb[0].mxu0
  %938 = vdwg.mxu0
  %v939 = vmax.f32 %v773, %v829
  %v940 = vmax.f32 %v776, %v832
  %v941 = vmax.f32 %v781, %v837
  %v942 = vmax.f32 %v784, %v840
  %v943 = vmax.f32 %v789, %v845
  %v944 = vmax.f32 %v792, %v848
  %v945 = vmax.f32 %v797, %v853
  %v946 = vmax.f32 %v800, %v856
  %v947 = vmax.f32 %v805, %v861
  %v948 = vmax.f32 %v808, %v864
  %v949 = vmax.f32 %v813, %v869
  %v950 = vmax.f32 %v816, %v872
  %v951 = vmax.f32 %v821, %v877
  %v952 = vmax.f32 %v824, %v880
  %v953 = vmax.f32 %v939, %v885
  %v954 = vmax.f32 %v940, %v888
  %v955 = vmax.f32 %v941, %v893
  %v956 = vmax.f32 %v942, %v896
  %v957 = vmax.f32 %v943, %v901
  %v958 = vmax.f32 %v944, %v904
  %v959 = vmax.f32 %v945, %v909
  %v960 = vmax.f32 %v946, %v912
  %v961 = vmax.f32 %v947, %v917
  %v962 = vmax.f32 %v948, %v920
  %v963 = vmax.f32 %v949, %v925
  %v964 = vmax.f32 %v950, %v928
  %v965 = vmax.f32 %v951, %v933
  %v966 = vmax.f32 %v952, %v936
  %v967 = vld [vmem:[%s4 + $0x1] sm:$0x1]
  %v968 = vlaneseq
  %v969 = vshrl.u32 %v968, 7
  %v970 = vsub.s32 0, %v969
  %v971 = vrot.slane %v967, %v970
  %v972 = vadd.f32 %v953, %v971
  %v973 = vadd.f32 %v954, %v971
  %v974 = vadd.f32 %v955, %v971
  %v975 = vadd.f32 %v956, %v971
  %v976 = vadd.f32 %v957, %v971
  %v977 = vadd.f32 %v958, %v971
  %v978 = vadd.f32 %v959, %v971
  %v979 = vadd.f32 %v960, %v971
  %v980 = vadd.f32 %v961, %v971
  %v981 = vadd.f32 %v962, %v971
  %v982 = vadd.f32 %v963, %v971
  %v983 = vadd.f32 %v964, %v971
  %v984 = vadd.f32 %v965, %v971
  %v985 = vadd.f32 %v966, %v971
  %v986 = vmax.f32 %v972, 0.0
  %v987 = vmax.f32 %v973, 0.0
  %v988 = vmax.f32 %v974, 0.0
  %v989 = vmax.f32 %v975, 0.0
  %v990 = vmax.f32 %v976, 0.0
  %v991 = vmax.f32 %v977, 0.0
  %v992 = vmax.f32 %v978, 0.0
  %v993 = vmax.f32 %v979, 0.0
  %v994 = vmax.f32 %v980, 0.0
  %v995 = vmax.f32 %v981, 0.0
  %v996 = vmax.f32 %v982, 0.0
  %v997 = vmax.f32 %v983, 0.0
  %v998 = vmax.f32 %v984, 0.0
  %v999 = vmax.f32 %v985, 0.0
  %v1000 = vld [vmem:[%s5 + $0x80] sm:$0xff]
  %v1001 = vld [vmem:[%s5 + $0x88] sm:$0xff]
  %v1002 = vld [vmem:[%s5 + $0x90] sm:$0xff]
  %v1003 = vld [vmem:[%s5 + $0x98] sm:$0xff]
  %v1004 = vld [vmem:[%s5 + $0xa0] sm:$0xff]
  %v1005 = vld [vmem:[%s5 + $0xa8] sm:$0xff]
  %v1006 = vld [vmem:[%s5 + $0xb0] sm:$0xff]
  %v1007 = vld [vmem:[%s5 + $0xb8] sm:$0xff]
  %v1008 = vld [vmem:[%s5 + $0xc0] sm:$0xff]
  %v1009 = vld [vmem:[%s5 + $0xc8] sm:$0xff]
  %v1010 = vld [vmem:[%s5 + $0xd0] sm:$0xff]
  %v1011 = vld [vmem:[%s5 + $0xd8] sm:$0xff]
  %v1012 = vld [vmem:[%s5 + $0xe0] sm:$0xff]
  %v1013 = vld [vmem:[%s5 + $0xe8] sm:$0xff]
  %v1014 = vmul.f32 %v986, %v1000
  %v1015 = vmul.f32 %v987, %v1001
  %v1016 = vmul.f32 %v988, %v1002
  %v1017 = vmul.f32 %v989, %v1003
  %v1018 = vmul.f32 %v990, %v1004
  %v1019 = vmul.f32 %v991, %v1005
  %v1020 = vmul.f32 %v992, %v1006
  %v1021 = vmul.f32 %v993, %v1007
  %v1022 = vmul.f32 %v994, %v1008
  %v1023 = vmul.f32 %v995, %v1009
  %v1024 = vmul.f32 %v996, %v1010
  %v1025 = vmul.f32 %v997, %v1011
  %v1026 = vmul.f32 %v998, %v1012
  %v1027 = vmul.f32 %v999, %v1013
  %v1028 = vadd.f32 %v1014, %v1016
  %v1029 = vadd.f32 %v1015, %v1017
  %v1030 = vadd.f32 %v1028, %v1018
  %v1031 = vadd.f32 %v1029, %v1019
  %v1032 = vadd.f32 %v1030, %v1020
  %v1033 = vadd.f32 %v1031, %v1021
  %v1034 = vadd.f32 %v1032, %v1022
  %v1035 = vadd.f32 %v1033, %v1023
  %v1036 = vadd.f32 %v1034, %v1024
  %v1037 = vadd.f32 %v1035, %v1025
  %v1038 = vadd.f32 %v1036, %v1026
  %v1039 = vadd.f32 %v1037, %v1027
  %v1040 = vadd.f32 %v501, %v1038
  %v1041 = vadd.f32 %v502, %v1039
  %v1042 = vld [vmem:[%s0 + $0x128] sm:$0xf]
  %v1043 = vld [vmem:[%s0 + $0x12c] sm:$0xf]
  %v1044 = vld [vmem:[%s0 + $0x130] sm:$0xf]
  %v1045 = vld [vmem:[%s0 + $0x134] sm:$0xf]
  %v1046 = vld [vmem:[%s0 + $0x138] sm:$0xf]
  %v1047 = vld [vmem:[%s0 + $0x13c] sm:$0xf]
  %v1048 = vld [vmem:[%s0 + $0x140] sm:$0xf]
  %v1049 = vld [vmem:[%s0 + $0x144] sm:$0xf]
  %v1050 = vld [vmem:[%s0 + $0x148] sm:$0xf]
  %v1051 = vld [vmem:[%s0 + $0x14c] sm:$0xf]
  %v1052 = vld [vmem:[%s0 + $0x150] sm:$0xf]
  %v1053 = vld [vmem:[%s0 + $0x154] sm:$0xf]
  %v1054 = vld [vmem:[%s0 + $0x158] sm:$0xf]
  %v1055 = vld [vmem:[%s0 + $0x15c] sm:$0xf]
  %v1056 = vld [vmem:[%s0 + $0x160] sm:$0xf]
  %v1057 = vld [vmem:[%s0 + $0x164] sm:$0xf]
  %v1058 = vld [vmem:[%s0 + $0x168] sm:$0xf]
  %v1059 = vld [vmem:[%s0 + $0x16c] sm:$0xf]
  %v1060 = vld [vmem:[%s0 + $0x170] sm:$0xf]
  %v1061 = vld [vmem:[%s0 + $0x174] sm:$0xf]
  %v1062 = vld [vmem:[%s0 + $0x178] sm:$0xf]
  %v1063 = vld [vmem:[%s0 + $0x17c] sm:$0xf]
  %v1064 = vld [vmem:[%s0 + $0x180] sm:$0xf]
  %v1065 = vld [vmem:[%s0 + $0x184] sm:$0xf]
  %v1066 = vld [vmem:[%s0 + $0x188] sm:$0xf]
  %v1067 = vld [vmem:[%s0 + $0x18c] sm:$0xf]
  %v1068 = vld [vmem:[%s0 + $0x190] sm:$0xf]
  %v1069 = vld [vmem:[%s0 + $0x194] sm:$0xf]
  %v1070 = vld [vmem:[%s0 + $0x198] sm:$0xf]
  %v1071 = vld [vmem:[%s0 + $0x19c] sm:$0xf]
  %v1072 = vld [vmem:[%s0 + $0x1a0] sm:$0xf]
  %v1073 = vld [vmem:[%s0 + $0x1a4] sm:$0xf]
  %v1074 = vld [vmem:[%s0 + $0x1a8] sm:$0xf]
  %v1075 = vld [vmem:[%s0 + $0x1ac] sm:$0xf]
  %v1076 = vld [vmem:[%s0 + $0x1b0] sm:$0xf]
  %v1077 = vld [vmem:[%s0 + $0x1b4] sm:$0xf]
  %v1078 = vld [vmem:[%s0 + $0x1b8] sm:$0xf]
  %v1079 = vld [vmem:[%s0 + $0x1bc] sm:$0xf]
  %v1080 = vld [vmem:[%s0 + $0x1c0] sm:$0xf]
  %v1081 = vld [vmem:[%s0 + $0x1c4] sm:$0xf]
  %v1082 = vld [vmem:[%s0 + $0x1c8] sm:$0xf]
  %v1083 = vld [vmem:[%s0 + $0x1cc] sm:$0xf]
  %v1084 = vld [vmem:[%s0 + $0x1d0] sm:$0xf]
  %v1085 = vld [vmem:[%s0 + $0x1d4] sm:$0xf]
  %v1086 = vld [vmem:[%s0 + $0x1d8] sm:$0xf]
  %v1087 = vld [vmem:[%s0 + $0x1dc] sm:$0xf]
  %v1088 = vld [vmem:[%s0 + $0x1e0] sm:$0xf]
  %v1089 = vld [vmem:[%s0 + $0x1e4] sm:$0xf]
  %s1090 = scalar_lea.vmem %s1, 48
  %v1091 = vld [vmem:[%s1090] sm:$0xf]
  %v1092 = vld [vmem:[%s1090 + $0x4] sm:$0xf]
  %v1093 = vld [vmem:[%s1090 + $0x8] sm:$0xf]
  %v1094 = vld [vmem:[%s1090 + $0xc] sm:$0xf]
  %v1095 = vld [vmem:[%s1090 + $0x10] sm:$0xf]
  %v1096 = vld [vmem:[%s1090 + $0x14] sm:$0xf]
  %v1145 = vunpack.c.l.b16 %v1042
  %v1146 = vunpack.c.l.b16 %v1043
  %v1147 = vunpack.c.l.b16 %v1044
  %v1148 = vunpack.c.l.b16 %v1045
  %v1149 = vunpack.c.l.b16 %v1046
  %v1150 = vunpack.c.l.b16 %v1047
  %v1151 = vunpack.c.l.b16 %v1048
  %v1152 = vunpack.c.l.b16 %v1049
  %v1153 = vunpack.c.l.b16 %v1050
  %v1154 = vunpack.c.l.b16 %v1051
  %v1155 = vunpack.c.l.b16 %v1052
  %v1156 = vunpack.c.l.b16 %v1053
  %v1157 = vunpack.c.l.b16 %v1054
  %v1158 = vunpack.c.l.b16 %v1055
  %v1159 = vunpack.c.l.b16 %v1056
  %v1160 = vunpack.c.l.b16 %v1057
  %v1161 = vunpack.c.l.b16 %v1058
  %v1162 = vunpack.c.l.b16 %v1059
  %v1163 = vunpack.c.l.b16 %v1060
  %v1164 = vunpack.c.l.b16 %v1061
  %v1165 = vunpack.c.l.b16 %v1062
  %v1166 = vunpack.c.l.b16 %v1063
  %v1167 = vunpack.c.l.b16 %v1064
  %v1168 = vunpack.c.l.b16 %v1065
  %v1169 = vunpack.c.l.b16 %v1066
  %v1170 = vunpack.c.l.b16 %v1067
  %v1171 = vunpack.c.l.b16 %v1068
  %v1172 = vunpack.c.l.b16 %v1069
  %v1173 = vunpack.c.l.b16 %v1070
  %v1174 = vunpack.c.l.b16 %v1071
  %v1175 = vunpack.c.l.b16 %v1072
  %v1176 = vunpack.c.l.b16 %v1073
  %v1177 = vunpack.c.l.b16 %v1074
  %v1178 = vunpack.c.l.b16 %v1075
  %v1179 = vunpack.c.l.b16 %v1076
  %v1180 = vunpack.c.l.b16 %v1077
  %v1181 = vunpack.c.l.b16 %v1078
  %v1182 = vunpack.c.l.b16 %v1079
  %v1183 = vunpack.c.l.b16 %v1080
  %v1184 = vunpack.c.l.b16 %v1081
  %v1185 = vunpack.c.l.b16 %v1082
  %v1186 = vunpack.c.l.b16 %v1083
  %v1187 = vunpack.c.l.b16 %v1084
  %v1188 = vunpack.c.l.b16 %v1085
  %v1189 = vunpack.c.l.b16 %v1086
  %v1190 = vunpack.c.l.b16 %v1087
  %v1191 = vunpack.c.l.b16 %v1088
  %v1192 = vunpack.c.l.b16 %v1089
  %v1193 = vpack.c.b16 %v1146, %v1145
  %v1194 = vpack.c.b16 %v1148, %v1147
  %v1195 = vpack.c.b16 %v1150, %v1149
  %v1196 = vpack.c.b16 %v1152, %v1151
  %v1197 = vpack.c.b16 %v1154, %v1153
  %v1198 = vpack.c.b16 %v1156, %v1155
  %v1199 = vpack.c.b16 %v1158, %v1157
  %v1200 = vpack.c.b16 %v1160, %v1159
  %v1201 = vpack.c.b16 %v1162, %v1161
  %v1202 = vpack.c.b16 %v1164, %v1163
  %v1203 = vpack.c.b16 %v1166, %v1165
  %v1204 = vpack.c.b16 %v1168, %v1167
  %v1205 = vpack.c.b16 %v1170, %v1169
  %v1206 = vpack.c.b16 %v1172, %v1171
  %v1207 = vpack.c.b16 %v1174, %v1173
  %v1208 = vpack.c.b16 %v1176, %v1175
  %v1209 = vpack.c.b16 %v1178, %v1177
  %v1210 = vpack.c.b16 %v1180, %v1179
  %v1211 = vpack.c.b16 %v1182, %v1181
  %v1212 = vpack.c.b16 %v1184, %v1183
  %v1213 = vpack.c.b16 %v1186, %v1185
  %v1214 = vpack.c.b16 %v1188, %v1187
  %v1215 = vpack.c.b16 %v1190, %v1189
  %v1216 = vpack.c.b16 %v1192, %v1191
  %v1223 = vunpack.c.l.b16 %v1091
  %v1224 = vunpack.c.l.b16 %v1092
  %v1225 = vunpack.c.l.b16 %v1093
  %v1226 = vunpack.c.l.b16 %v1094
  %v1227 = vunpack.c.l.b16 %v1095
  %v1228 = vunpack.c.l.b16 %v1096
  %v1229 = vpack.c.b16 %v1224, %v1223
  %v1230 = vpack.c.b16 %v1226, %v1225
  %v1231 = vpack.c.b16 %v1228, %v1227
  %v1236 = vsel %vm192, %v1193, 0
  %v1239 = vsel %vm192, %v1194, 0
  %v1242 = vsel %vm192, %v1195, 0
  %v1245 = vsel %vm192, %v1196, 0
  %v1248 = vsel %vm192, %v1197, 0
  %v1251 = vsel %vm192, %v1198, 0
  %v1254 = vsel %vm192, %v1199, 0
  %v1257 = vsel %vm192, %v1200, 0
  %v1260 = vsel %vm192, %v1201, 0
  %v1263 = vsel %vm192, %v1202, 0
  %v1266 = vsel %vm192, %v1203, 0
  %v1269 = vsel %vm192, %v1204, 0
  %v1272 = vsel %vm192, %v1205, 0
  %v1275 = vsel %vm192, %v1206, 0
  %v1278 = vsel %vm192, %v1207, 0
  %v1281 = vsel %vm192, %v1208, 0
  %v1284 = vsel %vm192, %v1209, 0
  %v1287 = vsel %vm192, %v1210, 0
  %v1290 = vsel %vm192, %v1211, 0
  %v1293 = vsel %vm192, %v1212, 0
  %v1296 = vsel %vm192, %v1213, 0
  %v1299 = vsel %vm192, %v1214, 0
  %v1302 = vsel %vm192, %v1215, 0
  %v1305 = vsel %vm192, %v1216, 0
  %1307 = vmatprep.subr.bf16.mxu0 0
  %1308 = vmatpush1.bf16.msra.mxu0 %v1229
  %1309 = vmatprep.subr.bf16.mxu0 0
  %1310 = vmatpush1.bf16.msra.mxu0 %v1230
  %1311 = vmatprep.subr.bf16.mxu0 0
  %1312 = vmatpush1.bf16.msra.mxu0 %v1231
  %1313 = vmatprep.subr.bf16.mxu0 0
  %1314 = vmatpush1.bf16.msra.mxu0 0
  %1315 = vmatprep.subr.bf16.mxu0 0
  %1316 = vmatpush1.bf16.msra.mxu0 0
  %1317 = vmatprep.subr.bf16.mxu0 0
  %1318 = vmatpush1.bf16.msra.mxu0 0
  %1319 = vmatprep.subr.bf16.mxu0 0
  %1320 = vmatpush1.bf16.msra.mxu0 0
  %1321 = vmatprep.subr.bf16.mxu0 0
  %1322 = vmatpush1.bf16.msra.mxu0 0
  %1323 = vmatprep.subr.bf16.mxu0 0
  %1324 = vmatpush1.bf16.msra.mxu0 0
  %1325 = vmatprep.subr.bf16.mxu0 0
  %1326 = vmatpush1.bf16.msra.mxu0 0
  %1327 = vmatprep.subr.bf16.mxu0 0
  %1328 = vmatpush1.bf16.msra.mxu0 0
  %1329 = vmatprep.subr.bf16.mxu0 0
  %1330 = vmatpush1.bf16.msra.mxu0 0
  %1331 = vmatprep.subr.bf16.mxu0 0
  %1332 = vmatpush1.bf16.msra.mxu0 0
  %1333 = vmatprep.subr.bf16.mxu0 0
  %1334 = vmatpush1.bf16.msra.mxu0 0
  %1335 = vmatprep.subr.bf16.mxu0 0
  %1336 = vmatpush1.bf16.msra.mxu0 0
  %1337 = vmatprep.subr.bf16.mxu0 0
  %1338 = vmatpush1.bf16.msra.mxu0 0
  %1339 = vmatprep.mubr.bf16.mxu0 0
  %1340 = vmatmul.mubr.bf16.gmra.mrb[0].mxu0 %v1236
  %v1341 = vpop.f32.mrb[0].mxu0
  %v1342 = vadd.f32 0.0, %v1341
  %v1343 = vpop.f32.mrb[0].mxu0
  %v1344 = vpop.f32.mrb[0].mxu0
  %v1345 = vadd.f32 0.0, %v1344
  %v1346 = vpop.f32.mrb[0].mxu0
  %1347 = vmatprep.mubr.bf16.mxu0 0
  %1348 = vmatmul.mubr.bf16.gmra.mrb[0].mxu0 %v1239
  %v1349 = vpop.f32.mrb[0].mxu0
  %v1350 = vadd.f32 0.0, %v1349
  %v1351 = vpop.f32.mrb[0].mxu0
  %v1352 = vpop.f32.mrb[0].mxu0
  %v1353 = vadd.f32 0.0, %v1352
  %v1354 = vpop.f32.mrb[0].mxu0
  %1355 = vmatprep.mubr.bf16.mxu0 0
  %1356 = vmatmul.mubr.bf16.gmra.mrb[0].mxu0 %v1242
  %v1357 = vpop.f32.mrb[0].mxu0
  %v1358 = vadd.f32 0.0, %v1357
  %v1359 = vpop.f32.mrb[0].mxu0
  %v1360 = vpop.f32.mrb[0].mxu0
  %v1361 = vadd.f32 0.0, %v1360
  %v1362 = vpop.f32.mrb[0].mxu0
  %1363 = vmatprep.mubr.bf16.mxu0 0
  %1364 = vmatmul.mubr.bf16.gmra.mrb[0].mxu0 %v1245
  %v1365 = vpop.f32.mrb[0].mxu0
  %v1366 = vadd.f32 0.0, %v1365
  %v1367 = vpop.f32.mrb[0].mxu0
  %v1368 = vpop.f32.mrb[0].mxu0
  %v1369 = vadd.f32 0.0, %v1368
  %v1370 = vpop.f32.mrb[0].mxu0
  %1371 = vmatprep.mubr.bf16.mxu0 0
  %1372 = vmatmul.mubr.bf16.gmra.mrb[0].mxu0 %v1248
  %v1373 = vpop.f32.mrb[0].mxu0
  %v1374 = vadd.f32 0.0, %v1373
  %v1375 = vpop.f32.mrb[0].mxu0
  %v1376 = vpop.f32.mrb[0].mxu0
  %v1377 = vadd.f32 0.0, %v1376
  %v1378 = vpop.f32.mrb[0].mxu0
  %1379 = vmatprep.mubr.bf16.mxu0 0
  %1380 = vmatmul.mubr.bf16.gmra.mrb[0].mxu0 %v1251
  %v1381 = vpop.f32.mrb[0].mxu0
  %v1382 = vadd.f32 0.0, %v1381
  %v1383 = vpop.f32.mrb[0].mxu0
  %v1384 = vpop.f32.mrb[0].mxu0
  %v1385 = vadd.f32 0.0, %v1384
  %v1386 = vpop.f32.mrb[0].mxu0
  %1387 = vmatprep.mubr.bf16.mxu0 0
  %1388 = vmatmul.mubr.bf16.gmra.mrb[0].mxu0 %v1254
  %v1389 = vpop.f32.mrb[0].mxu0
  %v1390 = vadd.f32 0.0, %v1389
  %v1391 = vpop.f32.mrb[0].mxu0
  %v1392 = vpop.f32.mrb[0].mxu0
  %v1393 = vadd.f32 0.0, %v1392
  %v1394 = vpop.f32.mrb[0].mxu0
  %1395 = vmatprep.mubr.bf16.mxu0 0
  %1396 = vmatmul.mubr.bf16.gmra.mrb[0].mxu0 %v1257
  %v1397 = vpop.f32.mrb[0].mxu0
  %v1398 = vadd.f32 0.0, %v1397
  %v1399 = vpop.f32.mrb[0].mxu0
  %v1400 = vpop.f32.mrb[0].mxu0
  %v1401 = vadd.f32 0.0, %v1400
  %v1402 = vpop.f32.mrb[0].mxu0
  %1403 = vmatprep.mubr.bf16.mxu0 0
  %1404 = vmatmul.mubr.bf16.gmra.mrb[0].mxu0 %v1260
  %v1405 = vpop.f32.mrb[0].mxu0
  %v1406 = vadd.f32 0.0, %v1405
  %v1407 = vpop.f32.mrb[0].mxu0
  %v1408 = vpop.f32.mrb[0].mxu0
  %v1409 = vadd.f32 0.0, %v1408
  %v1410 = vpop.f32.mrb[0].mxu0
  %1411 = vmatprep.mubr.bf16.mxu0 0
  %1412 = vmatmul.mubr.bf16.gmra.mrb[0].mxu0 %v1263
  %v1413 = vpop.f32.mrb[0].mxu0
  %v1414 = vadd.f32 0.0, %v1413
  %v1415 = vpop.f32.mrb[0].mxu0
  %v1416 = vpop.f32.mrb[0].mxu0
  %v1417 = vadd.f32 0.0, %v1416
  %v1418 = vpop.f32.mrb[0].mxu0
  %1419 = vmatprep.mubr.bf16.mxu0 0
  %1420 = vmatmul.mubr.bf16.gmra.mrb[0].mxu0 %v1266
  %v1421 = vpop.f32.mrb[0].mxu0
  %v1422 = vadd.f32 0.0, %v1421
  %v1423 = vpop.f32.mrb[0].mxu0
  %v1424 = vpop.f32.mrb[0].mxu0
  %v1425 = vadd.f32 0.0, %v1424
  %v1426 = vpop.f32.mrb[0].mxu0
  %1427 = vmatprep.mubr.bf16.mxu0 0
  %1428 = vmatmul.mubr.bf16.gmra.mrb[0].mxu0 %v1269
  %v1429 = vpop.f32.mrb[0].mxu0
  %v1430 = vadd.f32 0.0, %v1429
  %v1431 = vpop.f32.mrb[0].mxu0
  %v1432 = vpop.f32.mrb[0].mxu0
  %v1433 = vadd.f32 0.0, %v1432
  %v1434 = vpop.f32.mrb[0].mxu0
  %1435 = vmatprep.mubr.bf16.mxu0 0
  %1436 = vmatmul.mubr.bf16.gmra.mrb[0].mxu0 %v1272
  %v1437 = vpop.f32.mrb[0].mxu0
  %v1438 = vadd.f32 0.0, %v1437
  %v1439 = vpop.f32.mrb[0].mxu0
  %v1440 = vpop.f32.mrb[0].mxu0
  %v1441 = vadd.f32 0.0, %v1440
  %v1442 = vpop.f32.mrb[0].mxu0
  %1443 = vmatprep.mubr.bf16.mxu0 0
  %1444 = vmatmul.mubr.bf16.gmra.mrb[0].mxu0 %v1275
  %v1445 = vpop.f32.mrb[0].mxu0
  %v1446 = vadd.f32 0.0, %v1445
  %v1447 = vpop.f32.mrb[0].mxu0
  %v1448 = vpop.f32.mrb[0].mxu0
  %v1449 = vadd.f32 0.0, %v1448
  %v1450 = vpop.f32.mrb[0].mxu0
  %1451 = vmatprep.mubr.bf16.mxu0 0
  %1452 = vmatmul.mubr.bf16.gmra.mrb[0].mxu0 %v1278
  %v1453 = vpop.f32.mrb[0].mxu0
  %v1454 = vadd.f32 0.0, %v1453
  %v1455 = vpop.f32.mrb[0].mxu0
  %v1456 = vpop.f32.mrb[0].mxu0
  %v1457 = vadd.f32 0.0, %v1456
  %v1458 = vpop.f32.mrb[0].mxu0
  %1459 = vmatprep.mubr.bf16.mxu0 0
  %1460 = vmatmul.mubr.bf16.gmra.mrb[0].mxu0 %v1281
  %v1461 = vpop.f32.mrb[0].mxu0
  %v1462 = vadd.f32 0.0, %v1461
  %v1463 = vpop.f32.mrb[0].mxu0
  %v1464 = vpop.f32.mrb[0].mxu0
  %v1465 = vadd.f32 0.0, %v1464
  %v1466 = vpop.f32.mrb[0].mxu0
  %1467 = vmatprep.mubr.bf16.mxu0 0
  %1468 = vmatmul.mubr.bf16.gmra.mrb[0].mxu0 %v1284
  %v1469 = vpop.f32.mrb[0].mxu0
  %v1470 = vadd.f32 0.0, %v1469
  %v1471 = vpop.f32.mrb[0].mxu0
  %v1472 = vpop.f32.mrb[0].mxu0
  %v1473 = vadd.f32 0.0, %v1472
  %v1474 = vpop.f32.mrb[0].mxu0
  %1475 = vmatprep.mubr.bf16.mxu0 0
  %1476 = vmatmul.mubr.bf16.gmra.mrb[0].mxu0 %v1287
  %v1477 = vpop.f32.mrb[0].mxu0
  %v1478 = vadd.f32 0.0, %v1477
  %v1479 = vpop.f32.mrb[0].mxu0
  %v1480 = vpop.f32.mrb[0].mxu0
  %v1481 = vadd.f32 0.0, %v1480
  %v1482 = vpop.f32.mrb[0].mxu0
  %1483 = vmatprep.mubr.bf16.mxu0 0
  %1484 = vmatmul.mubr.bf16.gmra.mrb[0].mxu0 %v1290
  %v1485 = vpop.f32.mrb[0].mxu0
  %v1486 = vadd.f32 0.0, %v1485
  %v1487 = vpop.f32.mrb[0].mxu0
  %v1488 = vpop.f32.mrb[0].mxu0
  %v1489 = vadd.f32 0.0, %v1488
  %v1490 = vpop.f32.mrb[0].mxu0
  %1491 = vmatprep.mubr.bf16.mxu0 0
  %1492 = vmatmul.mubr.bf16.gmra.mrb[0].mxu0 %v1293
  %v1493 = vpop.f32.mrb[0].mxu0
  %v1494 = vadd.f32 0.0, %v1493
  %v1495 = vpop.f32.mrb[0].mxu0
  %v1496 = vpop.f32.mrb[0].mxu0
  %v1497 = vadd.f32 0.0, %v1496
  %v1498 = vpop.f32.mrb[0].mxu0
  %1499 = vmatprep.mubr.bf16.mxu0 0
  %1500 = vmatmul.mubr.bf16.gmra.mrb[0].mxu0 %v1296
  %v1501 = vpop.f32.mrb[0].mxu0
  %v1502 = vadd.f32 0.0, %v1501
  %v1503 = vpop.f32.mrb[0].mxu0
  %v1504 = vpop.f32.mrb[0].mxu0
  %v1505 = vadd.f32 0.0, %v1504
  %v1506 = vpop.f32.mrb[0].mxu0
  %1507 = vmatprep.mubr.bf16.mxu0 0
  %1508 = vmatmul.mubr.bf16.gmra.mrb[0].mxu0 %v1299
  %v1509 = vpop.f32.mrb[0].mxu0
  %v1510 = vadd.f32 0.0, %v1509
  %v1511 = vpop.f32.mrb[0].mxu0
  %v1512 = vpop.f32.mrb[0].mxu0
  %v1513 = vadd.f32 0.0, %v1512
  %v1514 = vpop.f32.mrb[0].mxu0
  %1515 = vmatprep.mubr.bf16.mxu0 0
  %1516 = vmatmul.mubr.bf16.gmra.mrb[0].mxu0 %v1302
  %v1517 = vpop.f32.mrb[0].mxu0
  %v1518 = vadd.f32 0.0, %v1517
  %v1519 = vpop.f32.mrb[0].mxu0
  %v1520 = vpop.f32.mrb[0].mxu0
  %v1521 = vadd.f32 0.0, %v1520
  %v1522 = vpop.f32.mrb[0].mxu0
  %1523 = vmatprep.mubr.bf16.mxu0 0
  %1524 = vmatmul.mubr.bf16.gmra.mrb[0].mxu0 %v1305
  %v1525 = vpop.f32.mrb[0].mxu0
  %v1526 = vadd.f32 0.0, %v1525
  %v1527 = vpop.f32.mrb[0].mxu0
  %v1528 = vpop.f32.mrb[0].mxu0
  %v1529 = vadd.f32 0.0, %v1528
  %v1530 = vpop.f32.mrb[0].mxu0
  %1531 = vdwg.mxu0
  %v1532 = vmax.f32 %v1342, %v1390
  %v1533 = vmax.f32 %v1345, %v1393
  %v1534 = vmax.f32 %v1350, %v1398
  %v1535 = vmax.f32 %v1353, %v1401
  %v1536 = vmax.f32 %v1358, %v1406
  %v1537 = vmax.f32 %v1361, %v1409
  %v1538 = vmax.f32 %v1366, %v1414
  %v1539 = vmax.f32 %v1369, %v1417
  %v1540 = vmax.f32 %v1374, %v1422
  %v1541 = vmax.f32 %v1377, %v1425
  %v1542 = vmax.f32 %v1382, %v1430
  %v1543 = vmax.f32 %v1385, %v1433
  %v1544 = vmax.f32 %v1532, %v1438
  %v1545 = vmax.f32 %v1533, %v1441
  %v1546 = vmax.f32 %v1534, %v1446
  %v1547 = vmax.f32 %v1535, %v1449
  %v1548 = vmax.f32 %v1536, %v1454
  %v1549 = vmax.f32 %v1537, %v1457
  %v1550 = vmax.f32 %v1538, %v1462
  %v1551 = vmax.f32 %v1539, %v1465
  %v1552 = vmax.f32 %v1540, %v1470
  %v1553 = vmax.f32 %v1541, %v1473
  %v1554 = vmax.f32 %v1542, %v1478
  %v1555 = vmax.f32 %v1543, %v1481
  %v1556 = vmax.f32 %v1544, %v1486
  %v1557 = vmax.f32 %v1545, %v1489
  %v1558 = vmax.f32 %v1546, %v1494
  %v1559 = vmax.f32 %v1547, %v1497
  %v1560 = vmax.f32 %v1548, %v1502
  %v1561 = vmax.f32 %v1549, %v1505
  %v1562 = vmax.f32 %v1550, %v1510
  %v1563 = vmax.f32 %v1551, %v1513
  %v1564 = vmax.f32 %v1552, %v1518
  %v1565 = vmax.f32 %v1553, %v1521
  %v1566 = vmax.f32 %v1554, %v1526
  %v1567 = vmax.f32 %v1555, %v1529
  %v1568 = vld [vmem:[%s4 + $0x2] sm:$0x1]
  %v1569 = vlaneseq
  %v1570 = vshrl.u32 %v1569, 7
  %v1571 = vsub.s32 0, %v1570
  %v1572 = vrot.slane %v1568, %v1571
  %v1573 = vadd.f32 %v1556, %v1572
  %v1574 = vadd.f32 %v1557, %v1572
  %v1575 = vadd.f32 %v1558, %v1572
  %v1576 = vadd.f32 %v1559, %v1572
  %v1577 = vadd.f32 %v1560, %v1572
  %v1578 = vadd.f32 %v1561, %v1572
  %v1579 = vadd.f32 %v1562, %v1572
  %v1580 = vadd.f32 %v1563, %v1572
  %v1581 = vadd.f32 %v1564, %v1572
  %v1582 = vadd.f32 %v1565, %v1572
  %v1583 = vadd.f32 %v1566, %v1572
  %v1584 = vadd.f32 %v1567, %v1572
  %v1585 = vmax.f32 %v1573, 0.0
  %v1586 = vmax.f32 %v1574, 0.0
  %v1587 = vmax.f32 %v1575, 0.0
  %v1588 = vmax.f32 %v1576, 0.0
  %v1589 = vmax.f32 %v1577, 0.0
  %v1590 = vmax.f32 %v1578, 0.0
  %v1591 = vmax.f32 %v1579, 0.0
  %v1592 = vmax.f32 %v1580, 0.0
  %v1593 = vmax.f32 %v1581, 0.0
  %v1594 = vmax.f32 %v1582, 0.0
  %v1595 = vmax.f32 %v1583, 0.0
  %v1596 = vmax.f32 %v1584, 0.0
  %v1597 = vld [vmem:[%s5 + $0xf0] sm:$0xff]
  %v1598 = vld [vmem:[%s5 + $0xf8] sm:$0xff]
  %v1599 = vld [vmem:[%s5 + $0x100] sm:$0xff]
  %v1600 = vld [vmem:[%s5 + $0x108] sm:$0xff]
  %v1601 = vld [vmem:[%s5 + $0x110] sm:$0xff]
  %v1602 = vld [vmem:[%s5 + $0x118] sm:$0xff]
  %v1603 = vld [vmem:[%s5 + $0x120] sm:$0xff]
  %v1604 = vld [vmem:[%s5 + $0x128] sm:$0xff]
  %v1605 = vld [vmem:[%s5 + $0x130] sm:$0xff]
  %v1606 = vld [vmem:[%s5 + $0x138] sm:$0xff]
  %v1607 = vld [vmem:[%s5 + $0x140] sm:$0xff]
  %v1608 = vld [vmem:[%s5 + $0x148] sm:$0xff]
  %v1609 = vmul.f32 %v1585, %v1597
  %v1610 = vmul.f32 %v1586, %v1598
  %v1611 = vmul.f32 %v1587, %v1599
  %v1612 = vmul.f32 %v1588, %v1600
  %v1613 = vmul.f32 %v1589, %v1601
  %v1614 = vmul.f32 %v1590, %v1602
  %v1615 = vmul.f32 %v1591, %v1603
  %v1616 = vmul.f32 %v1592, %v1604
  %v1617 = vmul.f32 %v1593, %v1605
  %v1618 = vmul.f32 %v1594, %v1606
  %v1619 = vmul.f32 %v1595, %v1607
  %v1620 = vmul.f32 %v1596, %v1608
  %v1621 = vadd.f32 %v1609, %v1611
  %v1622 = vadd.f32 %v1610, %v1612
  %v1623 = vadd.f32 %v1621, %v1613
  %v1624 = vadd.f32 %v1622, %v1614
  %v1625 = vadd.f32 %v1623, %v1615
  %v1626 = vadd.f32 %v1624, %v1616
  %v1627 = vadd.f32 %v1625, %v1617
  %v1628 = vadd.f32 %v1626, %v1618
  %v1629 = vadd.f32 %v1627, %v1619
  %v1630 = vadd.f32 %v1628, %v1620
  %v1631 = vadd.f32 %v1040, %v1629
  %v1632 = vadd.f32 %v1041, %v1630
  %v1633 = vld [vmem:[%s0 + $0x1e8] sm:$0xf]
  %v1634 = vld [vmem:[%s0 + $0x1ec] sm:$0xf]
  %v1635 = vld [vmem:[%s0 + $0x1f0] sm:$0xf]
  %v1636 = vld [vmem:[%s0 + $0x1f4] sm:$0xf]
  %v1637 = vld [vmem:[%s0 + $0x1f8] sm:$0xf]
  %v1638 = vld [vmem:[%s0 + $0x1fc] sm:$0xf]
  %v1639 = vld [vmem:[%s0 + $0x200] sm:$0xf]
  %v1640 = vld [vmem:[%s0 + $0x204] sm:$0xf]
  %v1641 = vld [vmem:[%s0 + $0x208] sm:$0xf]
  %v1642 = vld [vmem:[%s0 + $0x20c] sm:$0xf]
  %v1643 = vld [vmem:[%s0 + $0x210] sm:$0xf]
  %v1644 = vld [vmem:[%s0 + $0x214] sm:$0xf]
  %v1645 = vld [vmem:[%s0 + $0x218] sm:$0xf]
  %v1646 = vld [vmem:[%s0 + $0x21c] sm:$0xf]
  %v1647 = vld [vmem:[%s0 + $0x220] sm:$0xf]
  %v1648 = vld [vmem:[%s0 + $0x224] sm:$0xf]
  %v1649 = vld [vmem:[%s0 + $0x228] sm:$0xf]
  %v1650 = vld [vmem:[%s0 + $0x22c] sm:$0xf]
  %v1651 = vld [vmem:[%s0 + $0x230] sm:$0xf]
  %v1652 = vld [vmem:[%s0 + $0x234] sm:$0xf]
  %v1653 = vld [vmem:[%s0 + $0x238] sm:$0xf]
  %v1654 = vld [vmem:[%s0 + $0x23c] sm:$0xf]
  %v1655 = vld [vmem:[%s0 + $0x240] sm:$0xf]
  %v1656 = vld [vmem:[%s0 + $0x244] sm:$0xf]
  %v1657 = vld [vmem:[%s0 + $0x248] sm:$0xf]
  %v1658 = vld [vmem:[%s0 + $0x24c] sm:$0xf]
  %v1659 = vld [vmem:[%s0 + $0x250] sm:$0xf]
  %v1660 = vld [vmem:[%s0 + $0x254] sm:$0xf]
  %v1661 = vld [vmem:[%s0 + $0x258] sm:$0xf]
  %v1662 = vld [vmem:[%s0 + $0x25c] sm:$0xf]
  %v1663 = vld [vmem:[%s0 + $0x260] sm:$0xf]
  %v1664 = vld [vmem:[%s0 + $0x264] sm:$0xf]
  %v1665 = vld [vmem:[%s0 + $0x268] sm:$0xf]
  %v1666 = vld [vmem:[%s0 + $0x26c] sm:$0xf]
  %v1667 = vld [vmem:[%s0 + $0x270] sm:$0xf]
  %v1668 = vld [vmem:[%s0 + $0x274] sm:$0xf]
  %v1669 = vld [vmem:[%s0 + $0x278] sm:$0xf]
  %v1670 = vld [vmem:[%s0 + $0x27c] sm:$0xf]
  %v1671 = vld [vmem:[%s0 + $0x280] sm:$0xf]
  %v1672 = vld [vmem:[%s0 + $0x284] sm:$0xf]
  %v1673 = vld [vmem:[%s0 + $0x288] sm:$0xf]
  %v1674 = vld [vmem:[%s0 + $0x28c] sm:$0xf]
  %v1675 = vld [vmem:[%s0 + $0x290] sm:$0xf]
  %v1676 = vld [vmem:[%s0 + $0x294] sm:$0xf]
  %v1677 = vld [vmem:[%s0 + $0x298] sm:$0xf]
  %v1678 = vld [vmem:[%s0 + $0x29c] sm:$0xf]
  %v1679 = vld [vmem:[%s0 + $0x2a0] sm:$0xf]
  %v1680 = vld [vmem:[%s0 + $0x2a4] sm:$0xf]
  %v1681 = vld [vmem:[%s0 + $0x2a8] sm:$0xf]
  %v1682 = vld [vmem:[%s0 + $0x2ac] sm:$0xf]
  %s1683 = scalar_lea.vmem %s1, 72
  %v1684 = vld [vmem:[%s1683] sm:$0xf]
  %v1685 = vld [vmem:[%s1683 + $0x4] sm:$0xf]
  %v1686 = vld [vmem:[%s1683 + $0x8] sm:$0xf]
  %v1687 = vld [vmem:[%s1683 + $0xc] sm:$0xf]
  %v1688 = vld [vmem:[%s1683 + $0x10] sm:$0xf]
  %v1689 = vld [vmem:[%s1683 + $0x14] sm:$0xf]
  %v1740 = vunpack.c.l.b16 %v1633
  %v1741 = vunpack.c.l.b16 %v1634
  %v1742 = vunpack.c.l.b16 %v1635
  %v1743 = vunpack.c.l.b16 %v1636
  %v1744 = vunpack.c.l.b16 %v1637
  %v1745 = vunpack.c.l.b16 %v1638
  %v1746 = vunpack.c.l.b16 %v1639
  %v1747 = vunpack.c.l.b16 %v1640
  %v1748 = vunpack.c.l.b16 %v1641
  %v1749 = vunpack.c.l.b16 %v1642
  %v1750 = vunpack.c.l.b16 %v1643
  %v1751 = vunpack.c.l.b16 %v1644
  %v1752 = vunpack.c.l.b16 %v1645
  %v1753 = vunpack.c.l.b16 %v1646
  %v1754 = vunpack.c.l.b16 %v1647
  %v1755 = vunpack.c.l.b16 %v1648
  %v1756 = vunpack.c.l.b16 %v1649
  %v1757 = vunpack.c.l.b16 %v1650
  %v1758 = vunpack.c.l.b16 %v1651
  %v1759 = vunpack.c.l.b16 %v1652
  %v1760 = vunpack.c.l.b16 %v1653
  %v1761 = vunpack.c.l.b16 %v1654
  %v1762 = vunpack.c.l.b16 %v1655
  %v1763 = vunpack.c.l.b16 %v1656
  %v1764 = vunpack.c.l.b16 %v1657
  %v1765 = vunpack.c.l.b16 %v1658
  %v1766 = vunpack.c.l.b16 %v1659
  %v1767 = vunpack.c.l.b16 %v1660
  %v1768 = vunpack.c.l.b16 %v1661
  %v1769 = vunpack.c.l.b16 %v1662
  %v1770 = vunpack.c.l.b16 %v1663
  %v1771 = vunpack.c.l.b16 %v1664
  %v1772 = vunpack.c.l.b16 %v1665
  %v1773 = vunpack.c.l.b16 %v1666
  %v1774 = vunpack.c.l.b16 %v1667
  %v1775 = vunpack.c.l.b16 %v1668
  %v1776 = vunpack.c.l.b16 %v1669
  %v1777 = vunpack.c.l.b16 %v1670
  %v1778 = vunpack.c.l.b16 %v1671
  %v1779 = vunpack.c.l.b16 %v1672
  %v1780 = vunpack.c.l.b16 %v1673
  %v1781 = vunpack.c.l.b16 %v1674
  %v1782 = vunpack.c.l.b16 %v1675
  %v1783 = vunpack.c.l.b16 %v1676
  %v1784 = vunpack.c.l.b16 %v1677
  %v1785 = vunpack.c.l.b16 %v1678
  %v1786 = vunpack.c.l.b16 %v1679
  %v1787 = vunpack.c.l.b16 %v1680
  %v1788 = vunpack.c.l.b16 %v1681
  %v1789 = vunpack.c.l.b16 %v1682
  %v1790 = vpack.c.b16 %v1741, %v1740
  %v1791 = vpack.c.b16 %v1743, %v1742
  %v1792 = vpack.c.b16 %v1745, %v1744
  %v1793 = vpack.c.b16 %v1747, %v1746
  %v1794 = vpack.c.b16 %v1749, %v1748
  %v1795 = vpack.c.b16 %v1751, %v1750
  %v1796 = vpack.c.b16 %v1753, %v1752
  %v1797 = vpack.c.b16 %v1755, %v1754
  %v1798 = vpack.c.b16 %v1757, %v1756
  %v1799 = vpack.c.b16 %v1759, %v1758
  %v1800 = vpack.c.b16 %v1761, %v1760
  %v1801 = vpack.c.b16 %v1763, %v1762
  %v1802 = vpack.c.b16 %v1765, %v1764
  %v1803 = vpack.c.b16 %v1767, %v1766
  %v1804 = vpack.c.b16 %v1769, %v1768
  %v1805 = vpack.c.b16 %v1771, %v1770
  %v1806 = vpack.c.b16 %v1773, %v1772
  %v1807 = vpack.c.b16 %v1775, %v1774
  %v1808 = vpack.c.b16 %v1777, %v1776
  %v1809 = vpack.c.b16 %v1779, %v1778
  %v1810 = vpack.c.b16 %v1781, %v1780
  %v1811 = vpack.c.b16 %v1783, %v1782
  %v1812 = vpack.c.b16 %v1785, %v1784
  %v1813 = vpack.c.b16 %v1787, %v1786
  %v1814 = vpack.c.b16 %v1789, %v1788
  %v1821 = vunpack.c.l.b16 %v1684
  %v1822 = vunpack.c.l.b16 %v1685
  %v1823 = vunpack.c.l.b16 %v1686
  %v1824 = vunpack.c.l.b16 %v1687
  %v1825 = vunpack.c.l.b16 %v1688
  %v1826 = vunpack.c.l.b16 %v1689
  %v1827 = vpack.c.b16 %v1822, %v1821
  %v1828 = vpack.c.b16 %v1824, %v1823
  %v1829 = vpack.c.b16 %v1826, %v1825
  %v1834 = vsel %vm192, %v1790, 0
  %v1837 = vsel %vm192, %v1791, 0
  %v1840 = vsel %vm192, %v1792, 0
  %v1843 = vsel %vm192, %v1793, 0
  %v1846 = vsel %vm192, %v1794, 0
  %v1849 = vsel %vm192, %v1795, 0
  %v1852 = vsel %vm192, %v1796, 0
  %v1855 = vsel %vm192, %v1797, 0
  %v1858 = vsel %vm192, %v1798, 0
  %v1861 = vsel %vm192, %v1799, 0
  %v1864 = vsel %vm192, %v1800, 0
  %v1867 = vsel %vm192, %v1801, 0
  %v1870 = vsel %vm192, %v1802, 0
  %v1873 = vsel %vm192, %v1803, 0
  %v1876 = vsel %vm192, %v1804, 0
  %v1879 = vsel %vm192, %v1805, 0
  %v1882 = vsel %vm192, %v1806, 0
  %v1885 = vsel %vm192, %v1807, 0
  %v1888 = vsel %vm192, %v1808, 0
  %v1891 = vsel %vm192, %v1809, 0
  %v1894 = vsel %vm192, %v1810, 0
  %v1897 = vsel %vm192, %v1811, 0
  %v1900 = vsel %vm192, %v1812, 0
  %v1903 = vsel %vm192, %v1813, 0
  %v1906 = vsel %vm192, %v1814, 0
  %1908 = vmatprep.subr.bf16.mxu0 0
  %1909 = vmatpush1.bf16.msra.mxu0 %v1827
  %1910 = vmatprep.subr.bf16.mxu0 0
  %1911 = vmatpush1.bf16.msra.mxu0 %v1828
  %1912 = vmatprep.subr.bf16.mxu0 0
  %1913 = vmatpush1.bf16.msra.mxu0 %v1829
  %1914 = vmatprep.subr.bf16.mxu0 0
  %1915 = vmatpush1.bf16.msra.mxu0 0
  %1916 = vmatprep.subr.bf16.mxu0 0
  %1917 = vmatpush1.bf16.msra.mxu0 0
  %1918 = vmatprep.subr.bf16.mxu0 0
  %1919 = vmatpush1.bf16.msra.mxu0 0
  %1920 = vmatprep.subr.bf16.mxu0 0
  %1921 = vmatpush1.bf16.msra.mxu0 0
  %1922 = vmatprep.subr.bf16.mxu0 0
  %1923 = vmatpush1.bf16.msra.mxu0 0
  %1924 = vmatprep.subr.bf16.mxu0 0
  %1925 = vmatpush1.bf16.msra.mxu0 0
  %1926 = vmatprep.subr.bf16.mxu0 0
  %1927 = vmatpush1.bf16.msra.mxu0 0
  %1928 = vmatprep.subr.bf16.mxu0 0
  %1929 = vmatpush1.bf16.msra.mxu0 0
  %1930 = vmatprep.subr.bf16.mxu0 0
  %1931 = vmatpush1.bf16.msra.mxu0 0
  %1932 = vmatprep.subr.bf16.mxu0 0
  %1933 = vmatpush1.bf16.msra.mxu0 0
  %1934 = vmatprep.subr.bf16.mxu0 0
  %1935 = vmatpush1.bf16.msra.mxu0 0
  %1936 = vmatprep.subr.bf16.mxu0 0
  %1937 = vmatpush1.bf16.msra.mxu0 0
  %1938 = vmatprep.subr.bf16.mxu0 0
  %1939 = vmatpush1.bf16.msra.mxu0 0
  %1940 = vmatprep.mubr.bf16.mxu0 0
  %1941 = vmatmul.mubr.bf16.gmra.mrb[0].mxu0 %v1834
  %v1942 = vpop.f32.mrb[0].mxu0
  %v1943 = vadd.f32 0.0, %v1942
  %v1944 = vpop.f32.mrb[0].mxu0
  %v1945 = vpop.f32.mrb[0].mxu0
  %v1946 = vadd.f32 0.0, %v1945
  %v1947 = vpop.f32.mrb[0].mxu0
  %1948 = vmatprep.mubr.bf16.mxu0 0
  %1949 = vmatmul.mubr.bf16.gmra.mrb[0].mxu0 %v1837
  %v1950 = vpop.f32.mrb[0].mxu0
  %v1951 = vadd.f32 0.0, %v1950
  %v1952 = vpop.f32.mrb[0].mxu0
  %v1953 = vpop.f32.mrb[0].mxu0
  %v1954 = vadd.f32 0.0, %v1953
  %v1955 = vpop.f32.mrb[0].mxu0
  %1956 = vmatprep.mubr.bf16.mxu0 0
  %1957 = vmatmul.mubr.bf16.gmra.mrb[0].mxu0 %v1840
  %v1958 = vpop.f32.mrb[0].mxu0
  %v1959 = vadd.f32 0.0, %v1958
  %v1960 = vpop.f32.mrb[0].mxu0
  %v1961 = vpop.f32.mrb[0].mxu0
  %v1962 = vadd.f32 0.0, %v1961
  %v1963 = vpop.f32.mrb[0].mxu0
  %1964 = vmatprep.mubr.bf16.mxu0 0
  %1965 = vmatmul.mubr.bf16.gmra.mrb[0].mxu0 %v1843
  %v1966 = vpop.f32.mrb[0].mxu0
  %v1967 = vadd.f32 0.0, %v1966
  %v1968 = vpop.f32.mrb[0].mxu0
  %v1969 = vpop.f32.mrb[0].mxu0
  %v1970 = vadd.f32 0.0, %v1969
  %v1971 = vpop.f32.mrb[0].mxu0
  %1972 = vmatprep.mubr.bf16.mxu0 0
  %1973 = vmatmul.mubr.bf16.gmra.mrb[0].mxu0 %v1846
  %v1974 = vpop.f32.mrb[0].mxu0
  %v1975 = vadd.f32 0.0, %v1974
  %v1976 = vpop.f32.mrb[0].mxu0
  %v1977 = vpop.f32.mrb[0].mxu0
  %v1978 = vadd.f32 0.0, %v1977
  %v1979 = vpop.f32.mrb[0].mxu0
  %1980 = vmatprep.mubr.bf16.mxu0 0
  %1981 = vmatmul.mubr.bf16.gmra.mrb[0].mxu0 %v1849
  %v1982 = vpop.f32.mrb[0].mxu0
  %v1983 = vadd.f32 0.0, %v1982
  %v1984 = vpop.f32.mrb[0].mxu0
  %v1985 = vpop.f32.mrb[0].mxu0
  %v1986 = vadd.f32 0.0, %v1985
  %v1987 = vpop.f32.mrb[0].mxu0
  %1988 = vmatprep.mubr.bf16.mxu0 0
  %1989 = vmatmul.mubr.bf16.gmra.mrb[0].mxu0 %v1852
  %v1990 = vpop.f32.mrb[0].mxu0
  %v1991 = vadd.f32 0.0, %v1990
  %v1992 = vpop.f32.mrb[0].mxu0
  %v1993 = vpop.f32.mrb[0].mxu0
  %v1994 = vadd.f32 0.0, %v1993
  %v1995 = vpop.f32.mrb[0].mxu0
  %1996 = vmatprep.mubr.bf16.mxu0 0
  %1997 = vmatmul.mubr.bf16.gmra.mrb[0].mxu0 %v1855
  %v1998 = vpop.f32.mrb[0].mxu0
  %v1999 = vadd.f32 0.0, %v1998
  %v2000 = vpop.f32.mrb[0].mxu0
  %v2001 = vpop.f32.mrb[0].mxu0
  %v2002 = vadd.f32 0.0, %v2001
  %v2003 = vpop.f32.mrb[0].mxu0
  %2004 = vmatprep.mubr.bf16.mxu0 0
  %2005 = vmatmul.mubr.bf16.gmra.mrb[0].mxu0 %v1858
  %v2006 = vpop.f32.mrb[0].mxu0
  %v2007 = vadd.f32 0.0, %v2006
  %v2008 = vpop.f32.mrb[0].mxu0
  %v2009 = vpop.f32.mrb[0].mxu0
  %v2010 = vadd.f32 0.0, %v2009
  %v2011 = vpop.f32.mrb[0].mxu0
  %2012 = vmatprep.mubr.bf16.mxu0 0
  %2013 = vmatmul.mubr.bf16.gmra.mrb[0].mxu0 %v1861
  %v2014 = vpop.f32.mrb[0].mxu0
  %v2015 = vadd.f32 0.0, %v2014
  %v2016 = vpop.f32.mrb[0].mxu0
  %v2017 = vpop.f32.mrb[0].mxu0
  %v2018 = vadd.f32 0.0, %v2017
  %v2019 = vpop.f32.mrb[0].mxu0
  %2020 = vmatprep.mubr.bf16.mxu0 0
  %2021 = vmatmul.mubr.bf16.gmra.mrb[0].mxu0 %v1864
  %v2022 = vpop.f32.mrb[0].mxu0
  %v2023 = vadd.f32 0.0, %v2022
  %v2024 = vpop.f32.mrb[0].mxu0
  %v2025 = vpop.f32.mrb[0].mxu0
  %v2026 = vadd.f32 0.0, %v2025
  %v2027 = vpop.f32.mrb[0].mxu0
  %2028 = vmatprep.mubr.bf16.mxu0 0
  %2029 = vmatmul.mubr.bf16.gmra.mrb[0].mxu0 %v1867
  %v2030 = vpop.f32.mrb[0].mxu0
  %v2031 = vadd.f32 0.0, %v2030
  %v2032 = vpop.f32.mrb[0].mxu0
  %v2033 = vpop.f32.mrb[0].mxu0
  %v2034 = vadd.f32 0.0, %v2033
  %v2035 = vpop.f32.mrb[0].mxu0
  %2036 = vmatprep.mubr.bf16.mxu0 0
  %2037 = vmatmul.mubr.bf16.gmra.mrb[0].mxu0 %v1870
  %v2038 = vpop.f32.mrb[0].mxu0
  %v2039 = vadd.f32 0.0, %v2038
  %v2040 = vpop.f32.mrb[0].mxu0
  %v2041 = vpop.f32.mrb[0].mxu0
  %v2042 = vadd.f32 0.0, %v2041
  %v2043 = vpop.f32.mrb[0].mxu0
  %2044 = vmatprep.mubr.bf16.mxu0 0
  %2045 = vmatmul.mubr.bf16.gmra.mrb[0].mxu0 %v1873
  %v2046 = vpop.f32.mrb[0].mxu0
  %v2047 = vadd.f32 0.0, %v2046
  %v2048 = vpop.f32.mrb[0].mxu0
  %v2049 = vpop.f32.mrb[0].mxu0
  %v2050 = vadd.f32 0.0, %v2049
  %v2051 = vpop.f32.mrb[0].mxu0
  %2052 = vmatprep.mubr.bf16.mxu0 0
  %2053 = vmatmul.mubr.bf16.gmra.mrb[0].mxu0 %v1876
  %v2054 = vpop.f32.mrb[0].mxu0
  %v2055 = vadd.f32 0.0, %v2054
  %v2056 = vpop.f32.mrb[0].mxu0
  %v2057 = vpop.f32.mrb[0].mxu0
  %v2058 = vadd.f32 0.0, %v2057
  %v2059 = vpop.f32.mrb[0].mxu0
  %2060 = vmatprep.mubr.bf16.mxu0 0
  %2061 = vmatmul.mubr.bf16.gmra.mrb[0].mxu0 %v1879
  %v2062 = vpop.f32.mrb[0].mxu0
  %v2063 = vadd.f32 0.0, %v2062
  %v2064 = vpop.f32.mrb[0].mxu0
  %v2065 = vpop.f32.mrb[0].mxu0
  %v2066 = vadd.f32 0.0, %v2065
  %v2067 = vpop.f32.mrb[0].mxu0
  %2068 = vmatprep.mubr.bf16.mxu0 0
  %2069 = vmatmul.mubr.bf16.gmra.mrb[0].mxu0 %v1882
  %v2070 = vpop.f32.mrb[0].mxu0
  %v2071 = vadd.f32 0.0, %v2070
  %v2072 = vpop.f32.mrb[0].mxu0
  %v2073 = vpop.f32.mrb[0].mxu0
  %v2074 = vadd.f32 0.0, %v2073
  %v2075 = vpop.f32.mrb[0].mxu0
  %2076 = vmatprep.mubr.bf16.mxu0 0
  %2077 = vmatmul.mubr.bf16.gmra.mrb[0].mxu0 %v1885
  %v2078 = vpop.f32.mrb[0].mxu0
  %v2079 = vadd.f32 0.0, %v2078
  %v2080 = vpop.f32.mrb[0].mxu0
  %v2081 = vpop.f32.mrb[0].mxu0
  %v2082 = vadd.f32 0.0, %v2081
  %v2083 = vpop.f32.mrb[0].mxu0
  %2084 = vmatprep.mubr.bf16.mxu0 0
  %2085 = vmatmul.mubr.bf16.gmra.mrb[0].mxu0 %v1888
  %v2086 = vpop.f32.mrb[0].mxu0
  %v2087 = vadd.f32 0.0, %v2086
  %v2088 = vpop.f32.mrb[0].mxu0
  %v2089 = vpop.f32.mrb[0].mxu0
  %v2090 = vadd.f32 0.0, %v2089
  %v2091 = vpop.f32.mrb[0].mxu0
  %2092 = vmatprep.mubr.bf16.mxu0 0
  %2093 = vmatmul.mubr.bf16.gmra.mrb[0].mxu0 %v1891
  %v2094 = vpop.f32.mrb[0].mxu0
  %v2095 = vadd.f32 0.0, %v2094
  %v2096 = vpop.f32.mrb[0].mxu0
  %v2097 = vpop.f32.mrb[0].mxu0
  %v2098 = vadd.f32 0.0, %v2097
  %v2099 = vpop.f32.mrb[0].mxu0
  %2100 = vmatprep.mubr.bf16.mxu0 0
  %2101 = vmatmul.mubr.bf16.gmra.mrb[0].mxu0 %v1894
  %v2102 = vpop.f32.mrb[0].mxu0
  %v2103 = vadd.f32 0.0, %v2102
  %v2104 = vpop.f32.mrb[0].mxu0
  %v2105 = vpop.f32.mrb[0].mxu0
  %v2106 = vadd.f32 0.0, %v2105
  %v2107 = vpop.f32.mrb[0].mxu0
  %2108 = vmatprep.mubr.bf16.mxu0 0
  %2109 = vmatmul.mubr.bf16.gmra.mrb[0].mxu0 %v1897
  %v2110 = vpop.f32.mrb[0].mxu0
  %v2111 = vadd.f32 0.0, %v2110
  %v2112 = vpop.f32.mrb[0].mxu0
  %v2113 = vpop.f32.mrb[0].mxu0
  %v2114 = vadd.f32 0.0, %v2113
  %v2115 = vpop.f32.mrb[0].mxu0
  %2116 = vmatprep.mubr.bf16.mxu0 0
  %2117 = vmatmul.mubr.bf16.gmra.mrb[0].mxu0 %v1900
  %v2118 = vpop.f32.mrb[0].mxu0
  %v2119 = vadd.f32 0.0, %v2118
  %v2120 = vpop.f32.mrb[0].mxu0
  %v2121 = vpop.f32.mrb[0].mxu0
  %v2122 = vadd.f32 0.0, %v2121
  %v2123 = vpop.f32.mrb[0].mxu0
  %2124 = vmatprep.mubr.bf16.mxu0 0
  %2125 = vmatmul.mubr.bf16.gmra.mrb[0].mxu0 %v1903
  %v2126 = vpop.f32.mrb[0].mxu0
  %v2127 = vadd.f32 0.0, %v2126
  %v2128 = vpop.f32.mrb[0].mxu0
  %v2129 = vpop.f32.mrb[0].mxu0
  %v2130 = vadd.f32 0.0, %v2129
  %v2131 = vpop.f32.mrb[0].mxu0
  %2132 = vmatprep.mubr.bf16.mxu0 0
  %2133 = vmatmul.mubr.bf16.gmra.mrb[0].mxu0 %v1906
  %v2134 = vpop.f32.mrb[0].mxu0
  %v2135 = vadd.f32 0.0, %v2134
  %v2136 = vpop.f32.mrb[0].mxu0
  %v2137 = vpop.f32.mrb[0].mxu0
  %v2138 = vadd.f32 0.0, %v2137
  %v2139 = vpop.f32.mrb[0].mxu0
  %2140 = vdwg.mxu0
  %v2141 = vmax.f32 %v1943, %v1983
  %v2142 = vmax.f32 %v1946, %v1986
  %v2143 = vmax.f32 %v1951, %v1991
  %v2144 = vmax.f32 %v1954, %v1994
  %v2145 = vmax.f32 %v1959, %v1999
  %v2146 = vmax.f32 %v1962, %v2002
  %v2147 = vmax.f32 %v1967, %v2007
  %v2148 = vmax.f32 %v1970, %v2010
  %v2149 = vmax.f32 %v1975, %v2015
  %v2150 = vmax.f32 %v1978, %v2018
  %v2151 = vmax.f32 %v2141, %v2023
  %v2152 = vmax.f32 %v2142, %v2026
  %v2153 = vmax.f32 %v2143, %v2031
  %v2154 = vmax.f32 %v2144, %v2034
  %v2155 = vmax.f32 %v2145, %v2039
  %v2156 = vmax.f32 %v2146, %v2042
  %v2157 = vmax.f32 %v2147, %v2047
  %v2158 = vmax.f32 %v2148, %v2050
  %v2159 = vmax.f32 %v2149, %v2055
  %v2160 = vmax.f32 %v2150, %v2058
  %v2161 = vmax.f32 %v2151, %v2063
  %v2162 = vmax.f32 %v2152, %v2066
  %v2163 = vmax.f32 %v2153, %v2071
  %v2164 = vmax.f32 %v2154, %v2074
  %v2165 = vmax.f32 %v2155, %v2079
  %v2166 = vmax.f32 %v2156, %v2082
  %v2167 = vmax.f32 %v2157, %v2087
  %v2168 = vmax.f32 %v2158, %v2090
  %v2169 = vmax.f32 %v2159, %v2095
  %v2170 = vmax.f32 %v2160, %v2098
  %v2171 = vmax.f32 %v2161, %v2103
  %v2172 = vmax.f32 %v2162, %v2106
  %v2173 = vmax.f32 %v2163, %v2111
  %v2174 = vmax.f32 %v2164, %v2114
  %v2175 = vmax.f32 %v2165, %v2119
  %v2176 = vmax.f32 %v2166, %v2122
  %v2177 = vmax.f32 %v2167, %v2127
  %v2178 = vmax.f32 %v2168, %v2130
  %v2179 = vmax.f32 %v2169, %v2135
  %v2180 = vmax.f32 %v2170, %v2138
  %v2181 = vld [vmem:[%s4 + $0x3] sm:$0x1]
  %v2182 = vlaneseq
  %v2183 = vshrl.u32 %v2182, 7
  %v2184 = vsub.s32 0, %v2183
  %v2185 = vrot.slane %v2181, %v2184
  %v2186 = vadd.f32 %v2171, %v2185
  %v2187 = vadd.f32 %v2172, %v2185
  %v2188 = vadd.f32 %v2173, %v2185
  %v2189 = vadd.f32 %v2174, %v2185
  %v2190 = vadd.f32 %v2175, %v2185
  %v2191 = vadd.f32 %v2176, %v2185
  %v2192 = vadd.f32 %v2177, %v2185
  %v2193 = vadd.f32 %v2178, %v2185
  %v2194 = vadd.f32 %v2179, %v2185
  %v2195 = vadd.f32 %v2180, %v2185
  %v2196 = vmax.f32 %v2186, 0.0
  %v2197 = vmax.f32 %v2187, 0.0
  %v2198 = vmax.f32 %v2188, 0.0
  %v2199 = vmax.f32 %v2189, 0.0
  %v2200 = vmax.f32 %v2190, 0.0
  %v2201 = vmax.f32 %v2191, 0.0
  %v2202 = vmax.f32 %v2192, 0.0
  %v2203 = vmax.f32 %v2193, 0.0
  %v2204 = vmax.f32 %v2194, 0.0
  %v2205 = vmax.f32 %v2195, 0.0
  %v2206 = vld [vmem:[%s5 + $0x150] sm:$0xff]
  %v2207 = vld [vmem:[%s5 + $0x158] sm:$0xff]
  %v2208 = vld [vmem:[%s5 + $0x160] sm:$0xff]
  %v2209 = vld [vmem:[%s5 + $0x168] sm:$0xff]
  %v2210 = vld [vmem:[%s5 + $0x170] sm:$0xff]
  %v2211 = vld [vmem:[%s5 + $0x178] sm:$0xff]
  %v2212 = vld [vmem:[%s5 + $0x180] sm:$0xff]
  %v2213 = vld [vmem:[%s5 + $0x188] sm:$0xff]
  %v2214 = vld [vmem:[%s5 + $0x190] sm:$0xff]
  %v2215 = vld [vmem:[%s5 + $0x198] sm:$0xff]
  %v2216 = vmul.f32 %v2196, %v2206
  %v2217 = vmul.f32 %v2197, %v2207
  %v2218 = vmul.f32 %v2198, %v2208
  %v2219 = vmul.f32 %v2199, %v2209
  %v2220 = vmul.f32 %v2200, %v2210
  %v2221 = vmul.f32 %v2201, %v2211
  %v2222 = vmul.f32 %v2202, %v2212
  %v2223 = vmul.f32 %v2203, %v2213
  %v2224 = vmul.f32 %v2204, %v2214
  %v2225 = vmul.f32 %v2205, %v2215
  %v2226 = vadd.f32 %v2216, %v2218
  %v2227 = vadd.f32 %v2217, %v2219
  %v2228 = vadd.f32 %v2226, %v2220
  %v2229 = vadd.f32 %v2227, %v2221
  %v2230 = vadd.f32 %v2228, %v2222
  %v2231 = vadd.f32 %v2229, %v2223
  %v2232 = vadd.f32 %v2230, %v2224
  %v2233 = vadd.f32 %v2231, %v2225
  %v2234 = vadd.f32 %v1631, %v2232
  %v2235 = vadd.f32 %v1632, %v2233
  %v2236 = vld [vmem:[%s2] sm:$0xf]
  %v2237 = vld [vmem:[%s2 + $0x4] sm:$0xf]
  %v2238 = vld [vmem:[%s2 + $0x8] sm:$0xf]
  %v2239 = vld [vmem:[%s2 + $0xc] sm:$0xf]
  %v2240 = vld [vmem:[%s2 + $0x10] sm:$0xf]
  %v2241 = vld [vmem:[%s2 + $0x14] sm:$0xf]
  %v2242 = vld [vmem:[%s2 + $0x18] sm:$0xf]
  %v2243 = vld [vmem:[%s2 + $0x1c] sm:$0xf]
  %v2244 = vld [vmem:[%s2 + $0x20] sm:$0xf]
  %v2245 = vld [vmem:[%s2 + $0x24] sm:$0xf]
  %v2246 = vld [vmem:[%s2 + $0x28] sm:$0xf]
  %v2247 = vld [vmem:[%s2 + $0x2c] sm:$0xf]
  %v2248 = vld [vmem:[%s2 + $0x30] sm:$0xf]
  %v2249 = vld [vmem:[%s2 + $0x34] sm:$0xf]
  %v2250 = vld [vmem:[%s2 + $0x38] sm:$0xf]
  %v2251 = vld [vmem:[%s2 + $0x3c] sm:$0xf]
  %v2252 = vld [vmem:[%s2 + $0x40] sm:$0xf]
  %v2253 = vld [vmem:[%s2 + $0x44] sm:$0xf]
  %v2254 = vld [vmem:[%s2 + $0x48] sm:$0xf]
  %v2255 = vld [vmem:[%s2 + $0x4c] sm:$0xf]
  %v2256 = vld [vmem:[%s2 + $0x50] sm:$0xf]
  %v2257 = vld [vmem:[%s2 + $0x54] sm:$0xf]
  %v2258 = vld [vmem:[%s2 + $0x58] sm:$0xf]
  %v2259 = vld [vmem:[%s2 + $0x5c] sm:$0xf]
  %v2260 = vld [vmem:[%s2 + $0x60] sm:$0xf]
  %v2261 = vld [vmem:[%s2 + $0x64] sm:$0xf]
  %v2262 = vld [vmem:[%s2 + $0x68] sm:$0xf]
  %v2263 = vld [vmem:[%s2 + $0x6c] sm:$0xf]
  %v2264 = vld [vmem:[%s2 + $0x70] sm:$0xf]
  %v2265 = vld [vmem:[%s2 + $0x74] sm:$0xf]
  %v2266 = vld [vmem:[%s2 + $0x78] sm:$0xf]
  %v2267 = vld [vmem:[%s2 + $0x7c] sm:$0xf]
  %v2268 = vld [vmem:[%s3] sm:$0xf]
  %v2269 = vld [vmem:[%s3 + $0x4] sm:$0xf]
  %v2270 = vld [vmem:[%s3 + $0x8] sm:$0xf]
  %v2271 = vld [vmem:[%s3 + $0xc] sm:$0xf]
  %v2272 = vld [vmem:[%s3 + $0x10] sm:$0xf]
  %v2273 = vld [vmem:[%s3 + $0x14] sm:$0xf]
  %v2274 = vld [vmem:[%s3 + $0x18] sm:$0xf]
  %v2275 = vld [vmem:[%s3 + $0x1c] sm:$0xf]
  %v2276 = vld [vmem:[%s3 + $0x20] sm:$0xf]
  %v2277 = vld [vmem:[%s3 + $0x24] sm:$0xf]
  %v2310 = vunpack.c.l.b16 %v2236
  %v2311 = vunpack.c.l.b16 %v2237
  %v2312 = vunpack.c.l.b16 %v2238
  %v2313 = vunpack.c.l.b16 %v2239
  %v2314 = vunpack.c.l.b16 %v2240
  %v2315 = vunpack.c.l.b16 %v2241
  %v2316 = vunpack.c.l.b16 %v2242
  %v2317 = vunpack.c.l.b16 %v2243
  %v2318 = vunpack.c.l.b16 %v2244
  %v2319 = vunpack.c.l.b16 %v2245
  %v2320 = vunpack.c.l.b16 %v2246
  %v2321 = vunpack.c.l.b16 %v2247
  %v2322 = vunpack.c.l.b16 %v2248
  %v2323 = vunpack.c.l.b16 %v2249
  %v2324 = vunpack.c.l.b16 %v2250
  %v2325 = vunpack.c.l.b16 %v2251
  %v2326 = vunpack.c.l.b16 %v2252
  %v2327 = vunpack.c.l.b16 %v2253
  %v2328 = vunpack.c.l.b16 %v2254
  %v2329 = vunpack.c.l.b16 %v2255
  %v2330 = vunpack.c.l.b16 %v2256
  %v2331 = vunpack.c.l.b16 %v2257
  %v2332 = vunpack.c.l.b16 %v2258
  %v2333 = vunpack.c.l.b16 %v2259
  %v2334 = vunpack.c.l.b16 %v2260
  %v2335 = vunpack.c.l.b16 %v2261
  %v2336 = vunpack.c.l.b16 %v2262
  %v2337 = vunpack.c.l.b16 %v2263
  %v2338 = vunpack.c.l.b16 %v2264
  %v2339 = vunpack.c.l.b16 %v2265
  %v2340 = vunpack.c.l.b16 %v2266
  %v2341 = vunpack.c.l.b16 %v2267
  %v2342 = vpack.c.b16 %v2311, %v2310
  %v2343 = vpack.c.b16 %v2313, %v2312
  %v2344 = vpack.c.b16 %v2315, %v2314
  %v2345 = vpack.c.b16 %v2317, %v2316
  %v2346 = vpack.c.b16 %v2319, %v2318
  %v2347 = vpack.c.b16 %v2321, %v2320
  %v2348 = vpack.c.b16 %v2323, %v2322
  %v2349 = vpack.c.b16 %v2325, %v2324
  %v2350 = vpack.c.b16 %v2327, %v2326
  %v2351 = vpack.c.b16 %v2329, %v2328
  %v2352 = vpack.c.b16 %v2331, %v2330
  %v2353 = vpack.c.b16 %v2333, %v2332
  %v2354 = vpack.c.b16 %v2335, %v2334
  %v2355 = vpack.c.b16 %v2337, %v2336
  %v2356 = vpack.c.b16 %v2339, %v2338
  %v2357 = vpack.c.b16 %v2341, %v2340
  %v2368 = vunpack.c.l.b16 %v2268
  %v2369 = vunpack.c.l.b16 %v2269
  %v2370 = vunpack.c.l.b16 %v2270
  %v2371 = vunpack.c.l.b16 %v2271
  %v2372 = vunpack.c.l.b16 %v2272
  %v2373 = vunpack.c.l.b16 %v2273
  %v2374 = vunpack.c.l.b16 %v2274
  %v2375 = vunpack.c.l.b16 %v2275
  %v2376 = vunpack.c.l.b16 %v2276
  %v2377 = vunpack.c.l.b16 %v2277
  %v2378 = vpack.c.b16 %v2369, %v2368
  %v2379 = vpack.c.b16 %v2371, %v2370
  %v2380 = vpack.c.b16 %v2373, %v2372
  %v2381 = vpack.c.b16 %v2375, %v2374
  %v2382 = vpack.c.b16 %v2377, %v2376
  %vm2388 = vcmask 654336
  %v2390 = vsel %vm2388, %v2342, 0
  %v2393 = vsel %vm2388, %v2343, 0
  %v2396 = vsel %vm2388, %v2344, 0
  %v2399 = vsel %vm2388, %v2345, 0
  %v2402 = vsel %vm2388, %v2346, 0
  %v2405 = vsel %vm2388, %v2347, 0
  %v2408 = vsel %vm2388, %v2348, 0
  %v2411 = vsel %vm2388, %v2349, 0
  %v2414 = vsel %vm2388, %v2350, 0
  %v2417 = vsel %vm2388, %v2351, 0
  %v2420 = vsel %vm2388, %v2352, 0
  %v2423 = vsel %vm2388, %v2353, 0
  %v2426 = vsel %vm2388, %v2354, 0
  %v2429 = vsel %vm2388, %v2355, 0
  %v2432 = vsel %vm2388, %v2356, 0
  %v2435 = vsel %vm2388, %v2357, 0
  %2437 = vmatprep.subr.bf16.mxu0 0
  %2438 = vmatpush1.bf16.msra.mxu0 %v2378
  %2439 = vmatprep.subr.bf16.mxu0 0
  %2440 = vmatpush1.bf16.msra.mxu0 %v2379
  %2441 = vmatprep.subr.bf16.mxu0 0
  %2442 = vmatpush1.bf16.msra.mxu0 %v2380
  %2443 = vmatprep.subr.bf16.mxu0 0
  %2444 = vmatpush1.bf16.msra.mxu0 %v2381
  %2445 = vmatprep.subr.bf16.mxu0 0
  %2446 = vmatpush1.bf16.msra.mxu0 %v2382
  %2447 = vmatprep.subr.bf16.mxu0 0
  %2448 = vmatpush1.bf16.msra.mxu0 0
  %2449 = vmatprep.subr.bf16.mxu0 0
  %2450 = vmatpush1.bf16.msra.mxu0 0
  %2451 = vmatprep.subr.bf16.mxu0 0
  %2452 = vmatpush1.bf16.msra.mxu0 0
  %2453 = vmatprep.subr.bf16.mxu0 0
  %2454 = vmatpush1.bf16.msra.mxu0 0
  %2455 = vmatprep.subr.bf16.mxu0 0
  %2456 = vmatpush1.bf16.msra.mxu0 0
  %2457 = vmatprep.subr.bf16.mxu0 0
  %2458 = vmatpush1.bf16.msra.mxu0 0
  %2459 = vmatprep.subr.bf16.mxu0 0
  %2460 = vmatpush1.bf16.msra.mxu0 0
  %2461 = vmatprep.subr.bf16.mxu0 0
  %2462 = vmatpush1.bf16.msra.mxu0 0
  %2463 = vmatprep.subr.bf16.mxu0 0
  %2464 = vmatpush1.bf16.msra.mxu0 0
  %2465 = vmatprep.subr.bf16.mxu0 0
  %2466 = vmatpush1.bf16.msra.mxu0 0
  %2467 = vmatprep.subr.bf16.mxu0 0
  %2468 = vmatpush1.bf16.msra.mxu0 0
  %2469 = vmatprep.mubr.bf16.mxu0 0
  %2470 = vmatmul.mubr.bf16.gmra.mrb[0].mxu0 %v2390
  %v2471 = vpop.f32.mrb[0].mxu0
  %v2472 = vadd.f32 0.0, %v2471
  %v2473 = vpop.f32.mrb[0].mxu0
  %v2474 = vpop.f32.mrb[0].mxu0
  %v2475 = vadd.f32 0.0, %v2474
  %v2476 = vpop.f32.mrb[0].mxu0
  %2477 = vmatprep.mubr.bf16.mxu0 0
  %2478 = vmatmul.mubr.bf16.gmra.mrb[0].mxu0 %v2393
  %v2479 = vpop.f32.mrb[0].mxu0
  %v2480 = vadd.f32 0.0, %v2479
  %v2481 = vpop.f32.mrb[0].mxu0
  %v2482 = vpop.f32.mrb[0].mxu0
  %v2483 = vadd.f32 0.0, %v2482
  %v2484 = vpop.f32.mrb[0].mxu0
  %2485 = vmatprep.mubr.bf16.mxu0 0
  %2486 = vmatmul.mubr.bf16.gmra.mrb[0].mxu0 %v2396
  %v2487 = vpop.f32.mrb[0].mxu0
  %v2488 = vadd.f32 0.0, %v2487
  %v2489 = vpop.f32.mrb[0].mxu0
  %v2490 = vpop.f32.mrb[0].mxu0
  %v2491 = vadd.f32 0.0, %v2490
  %v2492 = vpop.f32.mrb[0].mxu0
  %2493 = vmatprep.mubr.bf16.mxu0 0
  %2494 = vmatmul.mubr.bf16.gmra.mrb[0].mxu0 %v2399
  %v2495 = vpop.f32.mrb[0].mxu0
  %v2496 = vadd.f32 0.0, %v2495
  %v2497 = vpop.f32.mrb[0].mxu0
  %v2498 = vpop.f32.mrb[0].mxu0
  %v2499 = vadd.f32 0.0, %v2498
  %v2500 = vpop.f32.mrb[0].mxu0
  %2501 = vmatprep.mubr.bf16.mxu0 0
  %2502 = vmatmul.mubr.bf16.gmra.mrb[0].mxu0 %v2402
  %v2503 = vpop.f32.mrb[0].mxu0
  %v2504 = vadd.f32 0.0, %v2503
  %v2505 = vpop.f32.mrb[0].mxu0
  %v2506 = vpop.f32.mrb[0].mxu0
  %v2507 = vadd.f32 0.0, %v2506
  %v2508 = vpop.f32.mrb[0].mxu0
  %2509 = vmatprep.mubr.bf16.mxu0 0
  %2510 = vmatmul.mubr.bf16.gmra.mrb[0].mxu0 %v2405
  %v2511 = vpop.f32.mrb[0].mxu0
  %v2512 = vadd.f32 0.0, %v2511
  %v2513 = vpop.f32.mrb[0].mxu0
  %v2514 = vpop.f32.mrb[0].mxu0
  %v2515 = vadd.f32 0.0, %v2514
  %v2516 = vpop.f32.mrb[0].mxu0
  %2517 = vmatprep.mubr.bf16.mxu0 0
  %2518 = vmatmul.mubr.bf16.gmra.mrb[0].mxu0 %v2408
  %v2519 = vpop.f32.mrb[0].mxu0
  %v2520 = vadd.f32 0.0, %v2519
  %v2521 = vpop.f32.mrb[0].mxu0
  %v2522 = vpop.f32.mrb[0].mxu0
  %v2523 = vadd.f32 0.0, %v2522
  %v2524 = vpop.f32.mrb[0].mxu0
  %2525 = vmatprep.mubr.bf16.mxu0 0
  %2526 = vmatmul.mubr.bf16.gmra.mrb[0].mxu0 %v2411
  %v2527 = vpop.f32.mrb[0].mxu0
  %v2528 = vadd.f32 0.0, %v2527
  %v2529 = vpop.f32.mrb[0].mxu0
  %v2530 = vpop.f32.mrb[0].mxu0
  %v2531 = vadd.f32 0.0, %v2530
  %v2532 = vpop.f32.mrb[0].mxu0
  %2533 = vmatprep.mubr.bf16.mxu0 0
  %2534 = vmatmul.mubr.bf16.gmra.mrb[0].mxu0 %v2414
  %v2535 = vpop.f32.mrb[0].mxu0
  %v2536 = vadd.f32 0.0, %v2535
  %v2537 = vpop.f32.mrb[0].mxu0
  %v2538 = vpop.f32.mrb[0].mxu0
  %v2539 = vadd.f32 0.0, %v2538
  %v2540 = vpop.f32.mrb[0].mxu0
  %2541 = vmatprep.mubr.bf16.mxu0 0
  %2542 = vmatmul.mubr.bf16.gmra.mrb[0].mxu0 %v2417
  %v2543 = vpop.f32.mrb[0].mxu0
  %v2544 = vadd.f32 0.0, %v2543
  %v2545 = vpop.f32.mrb[0].mxu0
  %v2546 = vpop.f32.mrb[0].mxu0
  %v2547 = vadd.f32 0.0, %v2546
  %v2548 = vpop.f32.mrb[0].mxu0
  %2549 = vmatprep.mubr.bf16.mxu0 0
  %2550 = vmatmul.mubr.bf16.gmra.mrb[0].mxu0 %v2420
  %v2551 = vpop.f32.mrb[0].mxu0
  %v2552 = vadd.f32 0.0, %v2551
  %v2553 = vpop.f32.mrb[0].mxu0
  %v2554 = vpop.f32.mrb[0].mxu0
  %v2555 = vadd.f32 0.0, %v2554
  %v2556 = vpop.f32.mrb[0].mxu0
  %2557 = vmatprep.mubr.bf16.mxu0 0
  %2558 = vmatmul.mubr.bf16.gmra.mrb[0].mxu0 %v2423
  %v2559 = vpop.f32.mrb[0].mxu0
  %v2560 = vadd.f32 0.0, %v2559
  %v2561 = vpop.f32.mrb[0].mxu0
  %v2562 = vpop.f32.mrb[0].mxu0
  %v2563 = vadd.f32 0.0, %v2562
  %v2564 = vpop.f32.mrb[0].mxu0
  %2565 = vmatprep.mubr.bf16.mxu0 0
  %2566 = vmatmul.mubr.bf16.gmra.mrb[0].mxu0 %v2426
  %v2567 = vpop.f32.mrb[0].mxu0
  %v2568 = vadd.f32 0.0, %v2567
  %v2569 = vpop.f32.mrb[0].mxu0
  %v2570 = vpop.f32.mrb[0].mxu0
  %v2571 = vadd.f32 0.0, %v2570
  %v2572 = vpop.f32.mrb[0].mxu0
  %2573 = vmatprep.mubr.bf16.mxu0 0
  %2574 = vmatmul.mubr.bf16.gmra.mrb[0].mxu0 %v2429
  %v2575 = vpop.f32.mrb[0].mxu0
  %v2576 = vadd.f32 0.0, %v2575
  %v2577 = vpop.f32.mrb[0].mxu0
  %v2578 = vpop.f32.mrb[0].mxu0
  %v2579 = vadd.f32 0.0, %v2578
  %v2580 = vpop.f32.mrb[0].mxu0
  %2581 = vmatprep.mubr.bf16.mxu0 0
  %2582 = vmatmul.mubr.bf16.gmra.mrb[0].mxu0 %v2432
  %v2583 = vpop.f32.mrb[0].mxu0
  %v2584 = vadd.f32 0.0, %v2583
  %v2585 = vpop.f32.mrb[0].mxu0
  %v2586 = vpop.f32.mrb[0].mxu0
  %v2587 = vadd.f32 0.0, %v2586
  %v2588 = vpop.f32.mrb[0].mxu0
  %2589 = vmatprep.mubr.bf16.mxu0 0
  %2590 = vmatmul.mubr.bf16.gmra.mrb[0].mxu0 %v2435
  %v2591 = vpop.f32.mrb[0].mxu0
  %v2592 = vadd.f32 0.0, %v2591
  %v2593 = vpop.f32.mrb[0].mxu0
  %v2594 = vpop.f32.mrb[0].mxu0
  %v2595 = vadd.f32 0.0, %v2594
  %v2596 = vpop.f32.mrb[0].mxu0
  %2597 = vdwg.mxu0
  %v2598 = vmax.f32 %v2472, %v2536
  %v2599 = vmax.f32 %v2475, %v2539
  %v2600 = vmax.f32 %v2480, %v2544
  %v2601 = vmax.f32 %v2483, %v2547
  %v2602 = vmax.f32 %v2488, %v2552
  %v2603 = vmax.f32 %v2491, %v2555
  %v2604 = vmax.f32 %v2496, %v2560
  %v2605 = vmax.f32 %v2499, %v2563
  %v2606 = vmax.f32 %v2504, %v2568
  %v2607 = vmax.f32 %v2507, %v2571
  %v2608 = vmax.f32 %v2512, %v2576
  %v2609 = vmax.f32 %v2515, %v2579
  %v2610 = vmax.f32 %v2520, %v2584
  %v2611 = vmax.f32 %v2523, %v2587
  %v2612 = vmax.f32 %v2528, %v2592
  %v2613 = vmax.f32 %v2531, %v2595
  %v2614 = vld [vmem:[%s4 + $0x4] sm:$0x1]
  %v2615 = vlaneseq
  %v2616 = vshrl.u32 %v2615, 7
  %v2617 = vsub.s32 0, %v2616
  %v2618 = vrot.slane %v2614, %v2617
  %v2619 = vadd.f32 %v2598, %v2618
  %v2620 = vadd.f32 %v2599, %v2618
  %v2621 = vadd.f32 %v2600, %v2618
  %v2622 = vadd.f32 %v2601, %v2618
  %v2623 = vadd.f32 %v2602, %v2618
  %v2624 = vadd.f32 %v2603, %v2618
  %v2625 = vadd.f32 %v2604, %v2618
  %v2626 = vadd.f32 %v2605, %v2618
  %v2627 = vadd.f32 %v2606, %v2618
  %v2628 = vadd.f32 %v2607, %v2618
  %v2629 = vadd.f32 %v2608, %v2618
  %v2630 = vadd.f32 %v2609, %v2618
  %v2631 = vadd.f32 %v2610, %v2618
  %v2632 = vadd.f32 %v2611, %v2618
  %v2633 = vadd.f32 %v2612, %v2618
  %v2634 = vadd.f32 %v2613, %v2618
  %v2635 = vmax.f32 %v2619, 0.0
  %v2636 = vmax.f32 %v2620, 0.0
  %v2637 = vmax.f32 %v2621, 0.0
  %v2638 = vmax.f32 %v2622, 0.0
  %v2639 = vmax.f32 %v2623, 0.0
  %v2640 = vmax.f32 %v2624, 0.0
  %v2641 = vmax.f32 %v2625, 0.0
  %v2642 = vmax.f32 %v2626, 0.0
  %v2643 = vmax.f32 %v2627, 0.0
  %v2644 = vmax.f32 %v2628, 0.0
  %v2645 = vmax.f32 %v2629, 0.0
  %v2646 = vmax.f32 %v2630, 0.0
  %v2647 = vmax.f32 %v2631, 0.0
  %v2648 = vmax.f32 %v2632, 0.0
  %v2649 = vmax.f32 %v2633, 0.0
  %v2650 = vmax.f32 %v2634, 0.0
  %v2651 = vld [vmem:[%s6] sm:$0xff]
  %v2652 = vld [vmem:[%s6 + $0x8] sm:$0xff]
  %v2653 = vld [vmem:[%s6 + $0x10] sm:$0xff]
  %v2654 = vld [vmem:[%s6 + $0x18] sm:$0xff]
  %v2655 = vld [vmem:[%s6 + $0x20] sm:$0xff]
  %v2656 = vld [vmem:[%s6 + $0x28] sm:$0xff]
  %v2657 = vld [vmem:[%s6 + $0x30] sm:$0xff]
  %v2658 = vld [vmem:[%s6 + $0x38] sm:$0xff]
  %v2659 = vld [vmem:[%s6 + $0x40] sm:$0xff]
  %v2660 = vld [vmem:[%s6 + $0x48] sm:$0xff]
  %v2661 = vld [vmem:[%s6 + $0x50] sm:$0xff]
  %v2662 = vld [vmem:[%s6 + $0x58] sm:$0xff]
  %v2663 = vld [vmem:[%s6 + $0x60] sm:$0xff]
  %v2664 = vld [vmem:[%s6 + $0x68] sm:$0xff]
  %v2665 = vld [vmem:[%s6 + $0x70] sm:$0xff]
  %v2666 = vld [vmem:[%s6 + $0x78] sm:$0xff]
  %v2667 = vmul.f32 %v2635, %v2651
  %v2668 = vmul.f32 %v2636, %v2652
  %v2669 = vmul.f32 %v2637, %v2653
  %v2670 = vmul.f32 %v2638, %v2654
  %v2671 = vmul.f32 %v2639, %v2655
  %v2672 = vmul.f32 %v2640, %v2656
  %v2673 = vmul.f32 %v2641, %v2657
  %v2674 = vmul.f32 %v2642, %v2658
  %v2675 = vmul.f32 %v2643, %v2659
  %v2676 = vmul.f32 %v2644, %v2660
  %v2677 = vmul.f32 %v2645, %v2661
  %v2678 = vmul.f32 %v2646, %v2662
  %v2679 = vmul.f32 %v2647, %v2663
  %v2680 = vmul.f32 %v2648, %v2664
  %v2681 = vmul.f32 %v2649, %v2665
  %v2682 = vmul.f32 %v2650, %v2666
  %v2683 = vadd.f32 %v2667, %v2669
  %v2684 = vadd.f32 %v2668, %v2670
  %v2685 = vadd.f32 %v2683, %v2671
  %v2686 = vadd.f32 %v2684, %v2672
  %v2687 = vadd.f32 %v2685, %v2673
  %v2688 = vadd.f32 %v2686, %v2674
  %v2689 = vadd.f32 %v2687, %v2675
  %v2690 = vadd.f32 %v2688, %v2676
  %v2691 = vadd.f32 %v2689, %v2677
  %v2692 = vadd.f32 %v2690, %v2678
  %v2693 = vadd.f32 %v2691, %v2679
  %v2694 = vadd.f32 %v2692, %v2680
  %v2695 = vadd.f32 %v2693, %v2681
  %v2696 = vadd.f32 %v2694, %v2682
  %v2697 = vadd.f32 %v2695, 0.0
  %v2698 = vadd.f32 %v2696, 0.0
  %v2699 = vld [vmem:[%s2 + $0x80] sm:$0xf]
  %v2700 = vld [vmem:[%s2 + $0x84] sm:$0xf]
  %v2701 = vld [vmem:[%s2 + $0x88] sm:$0xf]
  %v2702 = vld [vmem:[%s2 + $0x8c] sm:$0xf]
  %v2703 = vld [vmem:[%s2 + $0x90] sm:$0xf]
  %v2704 = vld [vmem:[%s2 + $0x94] sm:$0xf]
  %v2705 = vld [vmem:[%s2 + $0x98] sm:$0xf]
  %v2706 = vld [vmem:[%s2 + $0x9c] sm:$0xf]
  %v2707 = vld [vmem:[%s2 + $0xa0] sm:$0xf]
  %v2708 = vld [vmem:[%s2 + $0xa4] sm:$0xf]
  %v2709 = vld [vmem:[%s2 + $0xa8] sm:$0xf]
  %v2710 = vld [vmem:[%s2 + $0xac] sm:$0xf]
  %v2711 = vld [vmem:[%s2 + $0xb0] sm:$0xf]
  %v2712 = vld [vmem:[%s2 + $0xb4] sm:$0xf]
  %v2713 = vld [vmem:[%s2 + $0xb8] sm:$0xf]
  %v2714 = vld [vmem:[%s2 + $0xbc] sm:$0xf]
  %v2715 = vld [vmem:[%s2 + $0xc0] sm:$0xf]
  %v2716 = vld [vmem:[%s2 + $0xc4] sm:$0xf]
  %v2717 = vld [vmem:[%s2 + $0xc8] sm:$0xf]
  %v2718 = vld [vmem:[%s2 + $0xcc] sm:$0xf]
  %v2719 = vld [vmem:[%s2 + $0xd0] sm:$0xf]
  %v2720 = vld [vmem:[%s2 + $0xd4] sm:$0xf]
  %v2721 = vld [vmem:[%s2 + $0xd8] sm:$0xf]
  %v2722 = vld [vmem:[%s2 + $0xdc] sm:$0xf]
  %v2723 = vld [vmem:[%s2 + $0xe0] sm:$0xf]
  %v2724 = vld [vmem:[%s2 + $0xe4] sm:$0xf]
  %v2725 = vld [vmem:[%s2 + $0xe8] sm:$0xf]
  %v2726 = vld [vmem:[%s2 + $0xec] sm:$0xf]
  %v2727 = vld [vmem:[%s2 + $0xf0] sm:$0xf]
  %v2728 = vld [vmem:[%s2 + $0xf4] sm:$0xf]
  %v2729 = vld [vmem:[%s2 + $0xf8] sm:$0xf]
  %v2730 = vld [vmem:[%s2 + $0xfc] sm:$0xf]
  %v2731 = vld [vmem:[%s2 + $0x100] sm:$0xf]
  %v2732 = vld [vmem:[%s2 + $0x104] sm:$0xf]
  %v2733 = vld [vmem:[%s2 + $0x108] sm:$0xf]
  %v2734 = vld [vmem:[%s2 + $0x10c] sm:$0xf]
  %v2735 = vld [vmem:[%s2 + $0x110] sm:$0xf]
  %v2736 = vld [vmem:[%s2 + $0x114] sm:$0xf]
  %v2737 = vld [vmem:[%s2 + $0x118] sm:$0xf]
  %v2738 = vld [vmem:[%s2 + $0x11c] sm:$0xf]
  %v2739 = vld [vmem:[%s2 + $0x120] sm:$0xf]
  %v2740 = vld [vmem:[%s2 + $0x124] sm:$0xf]
  %s2741 = scalar_lea.vmem %s3, 40
  %v2742 = vld [vmem:[%s2741] sm:$0xf]
  %v2743 = vld [vmem:[%s2741 + $0x4] sm:$0xf]
  %v2744 = vld [vmem:[%s2741 + $0x8] sm:$0xf]
  %v2745 = vld [vmem:[%s2741 + $0xc] sm:$0xf]
  %v2746 = vld [vmem:[%s2741 + $0x10] sm:$0xf]
  %v2747 = vld [vmem:[%s2741 + $0x14] sm:$0xf]
  %v2748 = vld [vmem:[%s2741 + $0x18] sm:$0xf]
  %v2749 = vld [vmem:[%s2741 + $0x1c] sm:$0xf]
  %v2750 = vld [vmem:[%s2741 + $0x20] sm:$0xf]
  %v2751 = vld [vmem:[%s2741 + $0x24] sm:$0xf]
  %v2794 = vunpack.c.l.b16 %v2699
  %v2795 = vunpack.c.l.b16 %v2700
  %v2796 = vunpack.c.l.b16 %v2701
  %v2797 = vunpack.c.l.b16 %v2702
  %v2798 = vunpack.c.l.b16 %v2703
  %v2799 = vunpack.c.l.b16 %v2704
  %v2800 = vunpack.c.l.b16 %v2705
  %v2801 = vunpack.c.l.b16 %v2706
  %v2802 = vunpack.c.l.b16 %v2707
  %v2803 = vunpack.c.l.b16 %v2708
  %v2804 = vunpack.c.l.b16 %v2709
  %v2805 = vunpack.c.l.b16 %v2710
  %v2806 = vunpack.c.l.b16 %v2711
  %v2807 = vunpack.c.l.b16 %v2712
  %v2808 = vunpack.c.l.b16 %v2713
  %v2809 = vunpack.c.l.b16 %v2714
  %v2810 = vunpack.c.l.b16 %v2715
  %v2811 = vunpack.c.l.b16 %v2716
  %v2812 = vunpack.c.l.b16 %v2717
  %v2813 = vunpack.c.l.b16 %v2718
  %v2814 = vunpack.c.l.b16 %v2719
  %v2815 = vunpack.c.l.b16 %v2720
  %v2816 = vunpack.c.l.b16 %v2721
  %v2817 = vunpack.c.l.b16 %v2722
  %v2818 = vunpack.c.l.b16 %v2723
  %v2819 = vunpack.c.l.b16 %v2724
  %v2820 = vunpack.c.l.b16 %v2725
  %v2821 = vunpack.c.l.b16 %v2726
  %v2822 = vunpack.c.l.b16 %v2727
  %v2823 = vunpack.c.l.b16 %v2728
  %v2824 = vunpack.c.l.b16 %v2729
  %v2825 = vunpack.c.l.b16 %v2730
  %v2826 = vunpack.c.l.b16 %v2731
  %v2827 = vunpack.c.l.b16 %v2732
  %v2828 = vunpack.c.l.b16 %v2733
  %v2829 = vunpack.c.l.b16 %v2734
  %v2830 = vunpack.c.l.b16 %v2735
  %v2831 = vunpack.c.l.b16 %v2736
  %v2832 = vunpack.c.l.b16 %v2737
  %v2833 = vunpack.c.l.b16 %v2738
  %v2834 = vunpack.c.l.b16 %v2739
  %v2835 = vunpack.c.l.b16 %v2740
  %v2836 = vpack.c.b16 %v2795, %v2794
  %v2837 = vpack.c.b16 %v2797, %v2796
  %v2838 = vpack.c.b16 %v2799, %v2798
  %v2839 = vpack.c.b16 %v2801, %v2800
  %v2840 = vpack.c.b16 %v2803, %v2802
  %v2841 = vpack.c.b16 %v2805, %v2804
  %v2842 = vpack.c.b16 %v2807, %v2806
  %v2843 = vpack.c.b16 %v2809, %v2808
  %v2844 = vpack.c.b16 %v2811, %v2810
  %v2845 = vpack.c.b16 %v2813, %v2812
  %v2846 = vpack.c.b16 %v2815, %v2814
  %v2847 = vpack.c.b16 %v2817, %v2816
  %v2848 = vpack.c.b16 %v2819, %v2818
  %v2849 = vpack.c.b16 %v2821, %v2820
  %v2850 = vpack.c.b16 %v2823, %v2822
  %v2851 = vpack.c.b16 %v2825, %v2824
  %v2852 = vpack.c.b16 %v2827, %v2826
  %v2853 = vpack.c.b16 %v2829, %v2828
  %v2854 = vpack.c.b16 %v2831, %v2830
  %v2855 = vpack.c.b16 %v2833, %v2832
  %v2856 = vpack.c.b16 %v2835, %v2834
  %v2867 = vunpack.c.l.b16 %v2742
  %v2868 = vunpack.c.l.b16 %v2743
  %v2869 = vunpack.c.l.b16 %v2744
  %v2870 = vunpack.c.l.b16 %v2745
  %v2871 = vunpack.c.l.b16 %v2746
  %v2872 = vunpack.c.l.b16 %v2747
  %v2873 = vunpack.c.l.b16 %v2748
  %v2874 = vunpack.c.l.b16 %v2749
  %v2875 = vunpack.c.l.b16 %v2750
  %v2876 = vunpack.c.l.b16 %v2751
  %v2877 = vpack.c.b16 %v2868, %v2867
  %v2878 = vpack.c.b16 %v2870, %v2869
  %v2879 = vpack.c.b16 %v2872, %v2871
  %v2880 = vpack.c.b16 %v2874, %v2873
  %v2881 = vpack.c.b16 %v2876, %v2875
  %v2888 = vsel %vm2388, %v2836, 0
  %v2891 = vsel %vm2388, %v2837, 0
  %v2894 = vsel %vm2388, %v2838, 0
  %v2897 = vsel %vm2388, %v2839, 0
  %v2900 = vsel %vm2388, %v2840, 0
  %v2903 = vsel %vm2388, %v2841, 0
  %v2906 = vsel %vm2388, %v2842, 0
  %v2909 = vsel %vm2388, %v2843, 0
  %v2912 = vsel %vm2388, %v2844, 0
  %v2915 = vsel %vm2388, %v2845, 0
  %v2918 = vsel %vm2388, %v2846, 0
  %v2921 = vsel %vm2388, %v2847, 0
  %v2924 = vsel %vm2388, %v2848, 0
  %v2927 = vsel %vm2388, %v2849, 0
  %v2930 = vsel %vm2388, %v2850, 0
  %v2933 = vsel %vm2388, %v2851, 0
  %v2936 = vsel %vm2388, %v2852, 0
  %v2939 = vsel %vm2388, %v2853, 0
  %v2942 = vsel %vm2388, %v2854, 0
  %v2945 = vsel %vm2388, %v2855, 0
  %v2948 = vsel %vm2388, %v2856, 0
  %2950 = vmatprep.subr.bf16.mxu0 0
  %2951 = vmatpush1.bf16.msra.mxu0 %v2877
  %2952 = vmatprep.subr.bf16.mxu0 0
  %2953 = vmatpush1.bf16.msra.mxu0 %v2878
  %2954 = vmatprep.subr.bf16.mxu0 0
  %2955 = vmatpush1.bf16.msra.mxu0 %v2879
  %2956 = vmatprep.subr.bf16.mxu0 0
  %2957 = vmatpush1.bf16.msra.mxu0 %v2880
  %2958 = vmatprep.subr.bf16.mxu0 0
  %2959 = vmatpush1.bf16.msra.mxu0 %v2881
  %2960 = vmatprep.subr.bf16.mxu0 0
  %2961 = vmatpush1.bf16.msra.mxu0 0
  %2962 = vmatprep.subr.bf16.mxu0 0
  %2963 = vmatpush1.bf16.msra.mxu0 0
  %2964 = vmatprep.subr.bf16.mxu0 0
  %2965 = vmatpush1.bf16.msra.mxu0 0
  %2966 = vmatprep.subr.bf16.mxu0 0
  %2967 = vmatpush1.bf16.msra.mxu0 0
  %2968 = vmatprep.subr.bf16.mxu0 0
  %2969 = vmatpush1.bf16.msra.mxu0 0
  %2970 = vmatprep.subr.bf16.mxu0 0
  %2971 = vmatpush1.bf16.msra.mxu0 0
  %2972 = vmatprep.subr.bf16.mxu0 0
  %2973 = vmatpush1.bf16.msra.mxu0 0
  %2974 = vmatprep.subr.bf16.mxu0 0
  %2975 = vmatpush1.bf16.msra.mxu0 0
  %2976 = vmatprep.subr.bf16.mxu0 0
  %2977 = vmatpush1.bf16.msra.mxu0 0
  %2978 = vmatprep.subr.bf16.mxu0 0
  %2979 = vmatpush1.bf16.msra.mxu0 0
  %2980 = vmatprep.subr.bf16.mxu0 0
  %2981 = vmatpush1.bf16.msra.mxu0 0
  %2982 = vmatprep.mubr.bf16.mxu0 0
  %2983 = vmatmul.mubr.bf16.gmra.mrb[0].mxu0 %v2888
  %v2984 = vpop.f32.mrb[0].mxu0
  %v2985 = vadd.f32 0.0, %v2984
  %v2986 = vpop.f32.mrb[0].mxu0
  %v2987 = vpop.f32.mrb[0].mxu0
  %v2988 = vadd.f32 0.0, %v2987
  %v2989 = vpop.f32.mrb[0].mxu0
  %2990 = vmatprep.mubr.bf16.mxu0 0
  %2991 = vmatmul.mubr.bf16.gmra.mrb[0].mxu0 %v2891
  %v2992 = vpop.f32.mrb[0].mxu0
  %v2993 = vadd.f32 0.0, %v2992
  %v2994 = vpop.f32.mrb[0].mxu0
  %v2995 = vpop.f32.mrb[0].mxu0
  %v2996 = vadd.f32 0.0, %v2995
  %v2997 = vpop.f32.mrb[0].mxu0
  %2998 = vmatprep.mubr.bf16.mxu0 0
  %2999 = vmatmul.mubr.bf16.gmra.mrb[0].mxu0 %v2894
  %v3000 = vpop.f32.mrb[0].mxu0
  %v3001 = vadd.f32 0.0, %v3000
  %v3002 = vpop.f32.mrb[0].mxu0
  %v3003 = vpop.f32.mrb[0].mxu0
  %v3004 = vadd.f32 0.0, %v3003
  %v3005 = vpop.f32.mrb[0].mxu0
  %3006 = vmatprep.mubr.bf16.mxu0 0
  %3007 = vmatmul.mubr.bf16.gmra.mrb[0].mxu0 %v2897
  %v3008 = vpop.f32.mrb[0].mxu0
  %v3009 = vadd.f32 0.0, %v3008
  %v3010 = vpop.f32.mrb[0].mxu0
  %v3011 = vpop.f32.mrb[0].mxu0
  %v3012 = vadd.f32 0.0, %v3011
  %v3013 = vpop.f32.mrb[0].mxu0
  %3014 = vmatprep.mubr.bf16.mxu0 0
  %3015 = vmatmul.mubr.bf16.gmra.mrb[0].mxu0 %v2900
  %v3016 = vpop.f32.mrb[0].mxu0
  %v3017 = vadd.f32 0.0, %v3016
  %v3018 = vpop.f32.mrb[0].mxu0
  %v3019 = vpop.f32.mrb[0].mxu0
  %v3020 = vadd.f32 0.0, %v3019
  %v3021 = vpop.f32.mrb[0].mxu0
  %3022 = vmatprep.mubr.bf16.mxu0 0
  %3023 = vmatmul.mubr.bf16.gmra.mrb[0].mxu0 %v2903
  %v3024 = vpop.f32.mrb[0].mxu0
  %v3025 = vadd.f32 0.0, %v3024
  %v3026 = vpop.f32.mrb[0].mxu0
  %v3027 = vpop.f32.mrb[0].mxu0
  %v3028 = vadd.f32 0.0, %v3027
  %v3029 = vpop.f32.mrb[0].mxu0
  %3030 = vmatprep.mubr.bf16.mxu0 0
  %3031 = vmatmul.mubr.bf16.gmra.mrb[0].mxu0 %v2906
  %v3032 = vpop.f32.mrb[0].mxu0
  %v3033 = vadd.f32 0.0, %v3032
  %v3034 = vpop.f32.mrb[0].mxu0
  %v3035 = vpop.f32.mrb[0].mxu0
  %v3036 = vadd.f32 0.0, %v3035
  %v3037 = vpop.f32.mrb[0].mxu0
  %3038 = vmatprep.mubr.bf16.mxu0 0
  %3039 = vmatmul.mubr.bf16.gmra.mrb[0].mxu0 %v2909
  %v3040 = vpop.f32.mrb[0].mxu0
  %v3041 = vadd.f32 0.0, %v3040
  %v3042 = vpop.f32.mrb[0].mxu0
  %v3043 = vpop.f32.mrb[0].mxu0
  %v3044 = vadd.f32 0.0, %v3043
  %v3045 = vpop.f32.mrb[0].mxu0
  %3046 = vmatprep.mubr.bf16.mxu0 0
  %3047 = vmatmul.mubr.bf16.gmra.mrb[0].mxu0 %v2912
  %v3048 = vpop.f32.mrb[0].mxu0
  %v3049 = vadd.f32 0.0, %v3048
  %v3050 = vpop.f32.mrb[0].mxu0
  %v3051 = vpop.f32.mrb[0].mxu0
  %v3052 = vadd.f32 0.0, %v3051
  %v3053 = vpop.f32.mrb[0].mxu0
  %3054 = vmatprep.mubr.bf16.mxu0 0
  %3055 = vmatmul.mubr.bf16.gmra.mrb[0].mxu0 %v2915
  %v3056 = vpop.f32.mrb[0].mxu0
  %v3057 = vadd.f32 0.0, %v3056
  %v3058 = vpop.f32.mrb[0].mxu0
  %v3059 = vpop.f32.mrb[0].mxu0
  %v3060 = vadd.f32 0.0, %v3059
  %v3061 = vpop.f32.mrb[0].mxu0
  %3062 = vmatprep.mubr.bf16.mxu0 0
  %3063 = vmatmul.mubr.bf16.gmra.mrb[0].mxu0 %v2918
  %v3064 = vpop.f32.mrb[0].mxu0
  %v3065 = vadd.f32 0.0, %v3064
  %v3066 = vpop.f32.mrb[0].mxu0
  %v3067 = vpop.f32.mrb[0].mxu0
  %v3068 = vadd.f32 0.0, %v3067
  %v3069 = vpop.f32.mrb[0].mxu0
  %3070 = vmatprep.mubr.bf16.mxu0 0
  %3071 = vmatmul.mubr.bf16.gmra.mrb[0].mxu0 %v2921
  %v3072 = vpop.f32.mrb[0].mxu0
  %v3073 = vadd.f32 0.0, %v3072
  %v3074 = vpop.f32.mrb[0].mxu0
  %v3075 = vpop.f32.mrb[0].mxu0
  %v3076 = vadd.f32 0.0, %v3075
  %v3077 = vpop.f32.mrb[0].mxu0
  %3078 = vmatprep.mubr.bf16.mxu0 0
  %3079 = vmatmul.mubr.bf16.gmra.mrb[0].mxu0 %v2924
  %v3080 = vpop.f32.mrb[0].mxu0
  %v3081 = vadd.f32 0.0, %v3080
  %v3082 = vpop.f32.mrb[0].mxu0
  %v3083 = vpop.f32.mrb[0].mxu0
  %v3084 = vadd.f32 0.0, %v3083
  %v3085 = vpop.f32.mrb[0].mxu0
  %3086 = vmatprep.mubr.bf16.mxu0 0
  %3087 = vmatmul.mubr.bf16.gmra.mrb[0].mxu0 %v2927
  %v3088 = vpop.f32.mrb[0].mxu0
  %v3089 = vadd.f32 0.0, %v3088
  %v3090 = vpop.f32.mrb[0].mxu0
  %v3091 = vpop.f32.mrb[0].mxu0
  %v3092 = vadd.f32 0.0, %v3091
  %v3093 = vpop.f32.mrb[0].mxu0
  %3094 = vmatprep.mubr.bf16.mxu0 0
  %3095 = vmatmul.mubr.bf16.gmra.mrb[0].mxu0 %v2930
  %v3096 = vpop.f32.mrb[0].mxu0
  %v3097 = vadd.f32 0.0, %v3096
  %v3098 = vpop.f32.mrb[0].mxu0
  %v3099 = vpop.f32.mrb[0].mxu0
  %v3100 = vadd.f32 0.0, %v3099
  %v3101 = vpop.f32.mrb[0].mxu0
  %3102 = vmatprep.mubr.bf16.mxu0 0
  %3103 = vmatmul.mubr.bf16.gmra.mrb[0].mxu0 %v2933
  %v3104 = vpop.f32.mrb[0].mxu0
  %v3105 = vadd.f32 0.0, %v3104
  %v3106 = vpop.f32.mrb[0].mxu0
  %v3107 = vpop.f32.mrb[0].mxu0
  %v3108 = vadd.f32 0.0, %v3107
  %v3109 = vpop.f32.mrb[0].mxu0
  %3110 = vmatprep.mubr.bf16.mxu0 0
  %3111 = vmatmul.mubr.bf16.gmra.mrb[0].mxu0 %v2936
  %v3112 = vpop.f32.mrb[0].mxu0
  %v3113 = vadd.f32 0.0, %v3112
  %v3114 = vpop.f32.mrb[0].mxu0
  %v3115 = vpop.f32.mrb[0].mxu0
  %v3116 = vadd.f32 0.0, %v3115
  %v3117 = vpop.f32.mrb[0].mxu0
  %3118 = vmatprep.mubr.bf16.mxu0 0
  %3119 = vmatmul.mubr.bf16.gmra.mrb[0].mxu0 %v2939
  %v3120 = vpop.f32.mrb[0].mxu0
  %v3121 = vadd.f32 0.0, %v3120
  %v3122 = vpop.f32.mrb[0].mxu0
  %v3123 = vpop.f32.mrb[0].mxu0
  %v3124 = vadd.f32 0.0, %v3123
  %v3125 = vpop.f32.mrb[0].mxu0
  %3126 = vmatprep.mubr.bf16.mxu0 0
  %3127 = vmatmul.mubr.bf16.gmra.mrb[0].mxu0 %v2942
  %v3128 = vpop.f32.mrb[0].mxu0
  %v3129 = vadd.f32 0.0, %v3128
  %v3130 = vpop.f32.mrb[0].mxu0
  %v3131 = vpop.f32.mrb[0].mxu0
  %v3132 = vadd.f32 0.0, %v3131
  %v3133 = vpop.f32.mrb[0].mxu0
  %3134 = vmatprep.mubr.bf16.mxu0 0
  %3135 = vmatmul.mubr.bf16.gmra.mrb[0].mxu0 %v2945
  %v3136 = vpop.f32.mrb[0].mxu0
  %v3137 = vadd.f32 0.0, %v3136
  %v3138 = vpop.f32.mrb[0].mxu0
  %v3139 = vpop.f32.mrb[0].mxu0
  %v3140 = vadd.f32 0.0, %v3139
  %v3141 = vpop.f32.mrb[0].mxu0
  %3142 = vmatprep.mubr.bf16.mxu0 0
  %3143 = vmatmul.mubr.bf16.gmra.mrb[0].mxu0 %v2948
  %v3144 = vpop.f32.mrb[0].mxu0
  %v3145 = vadd.f32 0.0, %v3144
  %v3146 = vpop.f32.mrb[0].mxu0
  %v3147 = vpop.f32.mrb[0].mxu0
  %v3148 = vadd.f32 0.0, %v3147
  %v3149 = vpop.f32.mrb[0].mxu0
  %3150 = vdwg.mxu0
  %v3151 = vmax.f32 %v2985, %v3041
  %v3152 = vmax.f32 %v2988, %v3044
  %v3153 = vmax.f32 %v2993, %v3049
  %v3154 = vmax.f32 %v2996, %v3052
  %v3155 = vmax.f32 %v3001, %v3057
  %v3156 = vmax.f32 %v3004, %v3060
  %v3157 = vmax.f32 %v3009, %v3065
  %v3158 = vmax.f32 %v3012, %v3068
  %v3159 = vmax.f32 %v3017, %v3073
  %v3160 = vmax.f32 %v3020, %v3076
  %v3161 = vmax.f32 %v3025, %v3081
  %v3162 = vmax.f32 %v3028, %v3084
  %v3163 = vmax.f32 %v3033, %v3089
  %v3164 = vmax.f32 %v3036, %v3092
  %v3165 = vmax.f32 %v3151, %v3097
  %v3166 = vmax.f32 %v3152, %v3100
  %v3167 = vmax.f32 %v3153, %v3105
  %v3168 = vmax.f32 %v3154, %v3108
  %v3169 = vmax.f32 %v3155, %v3113
  %v3170 = vmax.f32 %v3156, %v3116
  %v3171 = vmax.f32 %v3157, %v3121
  %v3172 = vmax.f32 %v3158, %v3124
  %v3173 = vmax.f32 %v3159, %v3129
  %v3174 = vmax.f32 %v3160, %v3132
  %v3175 = vmax.f32 %v3161, %v3137
  %v3176 = vmax.f32 %v3162, %v3140
  %v3177 = vmax.f32 %v3163, %v3145
  %v3178 = vmax.f32 %v3164, %v3148
  %v3179 = vld [vmem:[%s4 + $0x5] sm:$0x1]
  %v3180 = vlaneseq
  %v3181 = vshrl.u32 %v3180, 7
  %v3182 = vsub.s32 0, %v3181
  %v3183 = vrot.slane %v3179, %v3182
  %v3184 = vadd.f32 %v3165, %v3183
  %v3185 = vadd.f32 %v3166, %v3183
  %v3186 = vadd.f32 %v3167, %v3183
  %v3187 = vadd.f32 %v3168, %v3183
  %v3188 = vadd.f32 %v3169, %v3183
  %v3189 = vadd.f32 %v3170, %v3183
  %v3190 = vadd.f32 %v3171, %v3183
  %v3191 = vadd.f32 %v3172, %v3183
  %v3192 = vadd.f32 %v3173, %v3183
  %v3193 = vadd.f32 %v3174, %v3183
  %v3194 = vadd.f32 %v3175, %v3183
  %v3195 = vadd.f32 %v3176, %v3183
  %v3196 = vadd.f32 %v3177, %v3183
  %v3197 = vadd.f32 %v3178, %v3183
  %v3198 = vmax.f32 %v3184, 0.0
  %v3199 = vmax.f32 %v3185, 0.0
  %v3200 = vmax.f32 %v3186, 0.0
  %v3201 = vmax.f32 %v3187, 0.0
  %v3202 = vmax.f32 %v3188, 0.0
  %v3203 = vmax.f32 %v3189, 0.0
  %v3204 = vmax.f32 %v3190, 0.0
  %v3205 = vmax.f32 %v3191, 0.0
  %v3206 = vmax.f32 %v3192, 0.0
  %v3207 = vmax.f32 %v3193, 0.0
  %v3208 = vmax.f32 %v3194, 0.0
  %v3209 = vmax.f32 %v3195, 0.0
  %v3210 = vmax.f32 %v3196, 0.0
  %v3211 = vmax.f32 %v3197, 0.0
  %v3212 = vld [vmem:[%s6 + $0x80] sm:$0xff]
  %v3213 = vld [vmem:[%s6 + $0x88] sm:$0xff]
  %v3214 = vld [vmem:[%s6 + $0x90] sm:$0xff]
  %v3215 = vld [vmem:[%s6 + $0x98] sm:$0xff]
  %v3216 = vld [vmem:[%s6 + $0xa0] sm:$0xff]
  %v3217 = vld [vmem:[%s6 + $0xa8] sm:$0xff]
  %v3218 = vld [vmem:[%s6 + $0xb0] sm:$0xff]
  %v3219 = vld [vmem:[%s6 + $0xb8] sm:$0xff]
  %v3220 = vld [vmem:[%s6 + $0xc0] sm:$0xff]
  %v3221 = vld [vmem:[%s6 + $0xc8] sm:$0xff]
  %v3222 = vld [vmem:[%s6 + $0xd0] sm:$0xff]
  %v3223 = vld [vmem:[%s6 + $0xd8] sm:$0xff]
  %v3224 = vld [vmem:[%s6 + $0xe0] sm:$0xff]
  %v3225 = vld [vmem:[%s6 + $0xe8] sm:$0xff]
  %v3226 = vmul.f32 %v3198, %v3212
  %v3227 = vmul.f32 %v3199, %v3213
  %v3228 = vmul.f32 %v3200, %v3214
  %v3229 = vmul.f32 %v3201, %v3215
  %v3230 = vmul.f32 %v3202, %v3216
  %v3231 = vmul.f32 %v3203, %v3217
  %v3232 = vmul.f32 %v3204, %v3218
  %v3233 = vmul.f32 %v3205, %v3219
  %v3234 = vmul.f32 %v3206, %v3220
  %v3235 = vmul.f32 %v3207, %v3221
  %v3236 = vmul.f32 %v3208, %v3222
  %v3237 = vmul.f32 %v3209, %v3223
  %v3238 = vmul.f32 %v3210, %v3224
  %v3239 = vmul.f32 %v3211, %v3225
  %v3240 = vadd.f32 %v3226, %v3228
  %v3241 = vadd.f32 %v3227, %v3229
  %v3242 = vadd.f32 %v3240, %v3230
  %v3243 = vadd.f32 %v3241, %v3231
  %v3244 = vadd.f32 %v3242, %v3232
  %v3245 = vadd.f32 %v3243, %v3233
  %v3246 = vadd.f32 %v3244, %v3234
  %v3247 = vadd.f32 %v3245, %v3235
  %v3248 = vadd.f32 %v3246, %v3236
  %v3249 = vadd.f32 %v3247, %v3237
  %v3250 = vadd.f32 %v3248, %v3238
  %v3251 = vadd.f32 %v3249, %v3239
  %v3252 = vadd.f32 %v2697, %v3250
  %v3253 = vadd.f32 %v2698, %v3251
  %v3254 = vld [vmem:[%s2 + $0x128] sm:$0xf]
  %v3255 = vld [vmem:[%s2 + $0x12c] sm:$0xf]
  %v3256 = vld [vmem:[%s2 + $0x130] sm:$0xf]
  %v3257 = vld [vmem:[%s2 + $0x134] sm:$0xf]
  %v3258 = vld [vmem:[%s2 + $0x138] sm:$0xf]
  %v3259 = vld [vmem:[%s2 + $0x13c] sm:$0xf]
  %v3260 = vld [vmem:[%s2 + $0x140] sm:$0xf]
  %v3261 = vld [vmem:[%s2 + $0x144] sm:$0xf]
  %v3262 = vld [vmem:[%s2 + $0x148] sm:$0xf]
  %v3263 = vld [vmem:[%s2 + $0x14c] sm:$0xf]
  %v3264 = vld [vmem:[%s2 + $0x150] sm:$0xf]
  %v3265 = vld [vmem:[%s2 + $0x154] sm:$0xf]
  %v3266 = vld [vmem:[%s2 + $0x158] sm:$0xf]
  %v3267 = vld [vmem:[%s2 + $0x15c] sm:$0xf]
  %v3268 = vld [vmem:[%s2 + $0x160] sm:$0xf]
  %v3269 = vld [vmem:[%s2 + $0x164] sm:$0xf]
  %v3270 = vld [vmem:[%s2 + $0x168] sm:$0xf]
  %v3271 = vld [vmem:[%s2 + $0x16c] sm:$0xf]
  %v3272 = vld [vmem:[%s2 + $0x170] sm:$0xf]
  %v3273 = vld [vmem:[%s2 + $0x174] sm:$0xf]
  %v3274 = vld [vmem:[%s2 + $0x178] sm:$0xf]
  %v3275 = vld [vmem:[%s2 + $0x17c] sm:$0xf]
  %v3276 = vld [vmem:[%s2 + $0x180] sm:$0xf]
  %v3277 = vld [vmem:[%s2 + $0x184] sm:$0xf]
  %v3278 = vld [vmem:[%s2 + $0x188] sm:$0xf]
  %v3279 = vld [vmem:[%s2 + $0x18c] sm:$0xf]
  %v3280 = vld [vmem:[%s2 + $0x190] sm:$0xf]
  %v3281 = vld [vmem:[%s2 + $0x194] sm:$0xf]
  %v3282 = vld [vmem:[%s2 + $0x198] sm:$0xf]
  %v3283 = vld [vmem:[%s2 + $0x19c] sm:$0xf]
  %v3284 = vld [vmem:[%s2 + $0x1a0] sm:$0xf]
  %v3285 = vld [vmem:[%s2 + $0x1a4] sm:$0xf]
  %v3286 = vld [vmem:[%s2 + $0x1a8] sm:$0xf]
  %v3287 = vld [vmem:[%s2 + $0x1ac] sm:$0xf]
  %v3288 = vld [vmem:[%s2 + $0x1b0] sm:$0xf]
  %v3289 = vld [vmem:[%s2 + $0x1b4] sm:$0xf]
  %v3290 = vld [vmem:[%s2 + $0x1b8] sm:$0xf]
  %v3291 = vld [vmem:[%s2 + $0x1bc] sm:$0xf]
  %v3292 = vld [vmem:[%s2 + $0x1c0] sm:$0xf]
  %v3293 = vld [vmem:[%s2 + $0x1c4] sm:$0xf]
  %v3294 = vld [vmem:[%s2 + $0x1c8] sm:$0xf]
  %v3295 = vld [vmem:[%s2 + $0x1cc] sm:$0xf]
  %v3296 = vld [vmem:[%s2 + $0x1d0] sm:$0xf]
  %v3297 = vld [vmem:[%s2 + $0x1d4] sm:$0xf]
  %v3298 = vld [vmem:[%s2 + $0x1d8] sm:$0xf]
  %v3299 = vld [vmem:[%s2 + $0x1dc] sm:$0xf]
  %v3300 = vld [vmem:[%s2 + $0x1e0] sm:$0xf]
  %v3301 = vld [vmem:[%s2 + $0x1e4] sm:$0xf]
  %s3302 = scalar_lea.vmem %s3, 80
  %v3303 = vld [vmem:[%s3302] sm:$0xf]
  %v3304 = vld [vmem:[%s3302 + $0x4] sm:$0xf]
  %v3305 = vld [vmem:[%s3302 + $0x8] sm:$0xf]
  %v3306 = vld [vmem:[%s3302 + $0xc] sm:$0xf]
  %v3307 = vld [vmem:[%s3302 + $0x10] sm:$0xf]
  %v3308 = vld [vmem:[%s3302 + $0x14] sm:$0xf]
  %v3309 = vld [vmem:[%s3302 + $0x18] sm:$0xf]
  %v3310 = vld [vmem:[%s3302 + $0x1c] sm:$0xf]
  %v3311 = vld [vmem:[%s3302 + $0x20] sm:$0xf]
  %v3312 = vld [vmem:[%s3302 + $0x24] sm:$0xf]
  %v3361 = vunpack.c.l.b16 %v3254
  %v3362 = vunpack.c.l.b16 %v3255
  %v3363 = vunpack.c.l.b16 %v3256
  %v3364 = vunpack.c.l.b16 %v3257
  %v3365 = vunpack.c.l.b16 %v3258
  %v3366 = vunpack.c.l.b16 %v3259
  %v3367 = vunpack.c.l.b16 %v3260
  %v3368 = vunpack.c.l.b16 %v3261
  %v3369 = vunpack.c.l.b16 %v3262
  %v3370 = vunpack.c.l.b16 %v3263
  %v3371 = vunpack.c.l.b16 %v3264
  %v3372 = vunpack.c.l.b16 %v3265
  %v3373 = vunpack.c.l.b16 %v3266
  %v3374 = vunpack.c.l.b16 %v3267
  %v3375 = vunpack.c.l.b16 %v3268
  %v3376 = vunpack.c.l.b16 %v3269
  %v3377 = vunpack.c.l.b16 %v3270
  %v3378 = vunpack.c.l.b16 %v3271
  %v3379 = vunpack.c.l.b16 %v3272
  %v3380 = vunpack.c.l.b16 %v3273
  %v3381 = vunpack.c.l.b16 %v3274
  %v3382 = vunpack.c.l.b16 %v3275
  %v3383 = vunpack.c.l.b16 %v3276
  %v3384 = vunpack.c.l.b16 %v3277
  %v3385 = vunpack.c.l.b16 %v3278
  %v3386 = vunpack.c.l.b16 %v3279
  %v3387 = vunpack.c.l.b16 %v3280
  %v3388 = vunpack.c.l.b16 %v3281
  %v3389 = vunpack.c.l.b16 %v3282
  %v3390 = vunpack.c.l.b16 %v3283
  %v3391 = vunpack.c.l.b16 %v3284
  %v3392 = vunpack.c.l.b16 %v3285
  %v3393 = vunpack.c.l.b16 %v3286
  %v3394 = vunpack.c.l.b16 %v3287
  %v3395 = vunpack.c.l.b16 %v3288
  %v3396 = vunpack.c.l.b16 %v3289
  %v3397 = vunpack.c.l.b16 %v3290
  %v3398 = vunpack.c.l.b16 %v3291
  %v3399 = vunpack.c.l.b16 %v3292
  %v3400 = vunpack.c.l.b16 %v3293
  %v3401 = vunpack.c.l.b16 %v3294
  %v3402 = vunpack.c.l.b16 %v3295
  %v3403 = vunpack.c.l.b16 %v3296
  %v3404 = vunpack.c.l.b16 %v3297
  %v3405 = vunpack.c.l.b16 %v3298
  %v3406 = vunpack.c.l.b16 %v3299
  %v3407 = vunpack.c.l.b16 %v3300
  %v3408 = vunpack.c.l.b16 %v3301
  %v3409 = vpack.c.b16 %v3362, %v3361
  %v3410 = vpack.c.b16 %v3364, %v3363
  %v3411 = vpack.c.b16 %v3366, %v3365
  %v3412 = vpack.c.b16 %v3368, %v3367
  %v3413 = vpack.c.b16 %v3370, %v3369
  %v3414 = vpack.c.b16 %v3372, %v3371
  %v3415 = vpack.c.b16 %v3374, %v3373
  %v3416 = vpack.c.b16 %v3376, %v3375
  %v3417 = vpack.c.b16 %v3378, %v3377
  %v3418 = vpack.c.b16 %v3380, %v3379
  %v3419 = vpack.c.b16 %v3382, %v3381
  %v3420 = vpack.c.b16 %v3384, %v3383
  %v3421 = vpack.c.b16 %v3386, %v3385
  %v3422 = vpack.c.b16 %v3388, %v3387
  %v3423 = vpack.c.b16 %v3390, %v3389
  %v3424 = vpack.c.b16 %v3392, %v3391
  %v3425 = vpack.c.b16 %v3394, %v3393
  %v3426 = vpack.c.b16 %v3396, %v3395
  %v3427 = vpack.c.b16 %v3398, %v3397
  %v3428 = vpack.c.b16 %v3400, %v3399
  %v3429 = vpack.c.b16 %v3402, %v3401
  %v3430 = vpack.c.b16 %v3404, %v3403
  %v3431 = vpack.c.b16 %v3406, %v3405
  %v3432 = vpack.c.b16 %v3408, %v3407
  %v3443 = vunpack.c.l.b16 %v3303
  %v3444 = vunpack.c.l.b16 %v3304
  %v3445 = vunpack.c.l.b16 %v3305
  %v3446 = vunpack.c.l.b16 %v3306
  %v3447 = vunpack.c.l.b16 %v3307
  %v3448 = vunpack.c.l.b16 %v3308
  %v3449 = vunpack.c.l.b16 %v3309
  %v3450 = vunpack.c.l.b16 %v3310
  %v3451 = vunpack.c.l.b16 %v3311
  %v3452 = vunpack.c.l.b16 %v3312
  %v3453 = vpack.c.b16 %v3444, %v3443
  %v3454 = vpack.c.b16 %v3446, %v3445
  %v3455 = vpack.c.b16 %v3448, %v3447
  %v3456 = vpack.c.b16 %v3450, %v3449
  %v3457 = vpack.c.b16 %v3452, %v3451
  %v3464 = vsel %vm2388, %v3409, 0
  %v3467 = vsel %vm2388, %v3410, 0
  %v3470 = vsel %vm2388, %v3411, 0
  %v3473 = vsel %vm2388, %v3412, 0
  %v3476 = vsel %vm2388, %v3413, 0
  %v3479 = vsel %vm2388, %v3414, 0
  %v3482 = vsel %vm2388, %v3415, 0
  %v3485 = vsel %vm2388, %v3416, 0
  %v3488 = vsel %vm2388, %v3417, 0
  %v3491 = vsel %vm2388, %v3418, 0
  %v3494 = vsel %vm2388, %v3419, 0
  %v3497 = vsel %vm2388, %v3420, 0
  %v3500 = vsel %vm2388, %v3421, 0
  %v3503 = vsel %vm2388, %v3422, 0
  %v3506 = vsel %vm2388, %v3423, 0
  %v3509 = vsel %vm2388, %v3424, 0
  %v3512 = vsel %vm2388, %v3425, 0
  %v3515 = vsel %vm2388, %v3426, 0
  %v3518 = vsel %vm2388, %v3427, 0
  %v3521 = vsel %vm2388, %v3428, 0
  %v3524 = vsel %vm2388, %v3429, 0
  %v3527 = vsel %vm2388, %v3430, 0
  %v3530 = vsel %vm2388, %v3431, 0
  %v3533 = vsel %vm2388, %v3432, 0
  %3535 = vmatprep.subr.bf16.mxu0 0
  %3536 = vmatpush1.bf16.msra.mxu0 %v3453
  %3537 = vmatprep.subr.bf16.mxu0 0
  %3538 = vmatpush1.bf16.msra.mxu0 %v3454
  %3539 = vmatprep.subr.bf16.mxu0 0
  %3540 = vmatpush1.bf16.msra.mxu0 %v3455
  %3541 = vmatprep.subr.bf16.mxu0 0
  %3542 = vmatpush1.bf16.msra.mxu0 %v3456
  %3543 = vmatprep.subr.bf16.mxu0 0
  %3544 = vmatpush1.bf16.msra.mxu0 %v3457
  %3545 = vmatprep.subr.bf16.mxu0 0
  %3546 = vmatpush1.bf16.msra.mxu0 0
  %3547 = vmatprep.subr.bf16.mxu0 0
  %3548 = vmatpush1.bf16.msra.mxu0 0
  %3549 = vmatprep.subr.bf16.mxu0 0
  %3550 = vmatpush1.bf16.msra.mxu0 0
  %3551 = vmatprep.subr.bf16.mxu0 0
  %3552 = vmatpush1.bf16.msra.mxu0 0
  %3553 = vmatprep.subr.bf16.mxu0 0
  %3554 = vmatpush1.bf16.msra.mxu0 0
  %3555 = vmatprep.subr.bf16.mxu0 0
  %3556 = vmatpush1.bf16.msra.mxu0 0
  %3557 = vmatprep.subr.bf16.mxu0 0
  %3558 = vmatpush1.bf16.msra.mxu0 0
  %3559 = vmatprep.subr.bf16.mxu0 0
  %3560 = vmatpush1.bf16.msra.mxu0 0
  %3561 = vmatprep.subr.bf16.mxu0 0
  %3562 = vmatpush1.bf16.msra.mxu0 0
  %3563 = vmatprep.subr.bf16.mxu0 0
  %3564 = vmatpush1.bf16.msra.mxu0 0
  %3565 = vmatprep.subr.bf16.mxu0 0
  %3566 = vmatpush1.bf16.msra.mxu0 0
  %3567 = vmatprep.mubr.bf16.mxu0 0
  %3568 = vmatmul.mubr.bf16.gmra.mrb[0].mxu0 %v3464
  %v3569 = vpop.f32.mrb[0].mxu0
  %v3570 = vadd.f32 0.0, %v3569
  %v3571 = vpop.f32.mrb[0].mxu0
  %v3572 = vpop.f32.mrb[0].mxu0
  %v3573 = vadd.f32 0.0, %v3572
  %v3574 = vpop.f32.mrb[0].mxu0
  %3575 = vmatprep.mubr.bf16.mxu0 0
  %3576 = vmatmul.mubr.bf16.gmra.mrb[0].mxu0 %v3467
  %v3577 = vpop.f32.mrb[0].mxu0
  %v3578 = vadd.f32 0.0, %v3577
  %v3579 = vpop.f32.mrb[0].mxu0
  %v3580 = vpop.f32.mrb[0].mxu0
  %v3581 = vadd.f32 0.0, %v3580
  %v3582 = vpop.f32.mrb[0].mxu0
  %3583 = vmatprep.mubr.bf16.mxu0 0
  %3584 = vmatmul.mubr.bf16.gmra.mrb[0].mxu0 %v3470
  %v3585 = vpop.f32.mrb[0].mxu0
  %v3586 = vadd.f32 0.0, %v3585
  %v3587 = vpop.f32.mrb[0].mxu0
  %v3588 = vpop.f32.mrb[0].mxu0
  %v3589 = vadd.f32 0.0, %v3588
  %v3590 = vpop.f32.mrb[0].mxu0
  %3591 = vmatprep.mubr.bf16.mxu0 0
  %3592 = vmatmul.mubr.bf16.gmra.mrb[0].mxu0 %v3473
  %v3593 = vpop.f32.mrb[0].mxu0
  %v3594 = vadd.f32 0.0, %v3593
  %v3595 = vpop.f32.mrb[0].mxu0
  %v3596 = vpop.f32.mrb[0].mxu0
  %v3597 = vadd.f32 0.0, %v3596
  %v3598 = vpop.f32.mrb[0].mxu0
  %3599 = vmatprep.mubr.bf16.mxu0 0
  %3600 = vmatmul.mubr.bf16.gmra.mrb[0].mxu0 %v3476
  %v3601 = vpop.f32.mrb[0].mxu0
  %v3602 = vadd.f32 0.0, %v3601
  %v3603 = vpop.f32.mrb[0].mxu0
  %v3604 = vpop.f32.mrb[0].mxu0
  %v3605 = vadd.f32 0.0, %v3604
  %v3606 = vpop.f32.mrb[0].mxu0
  %3607 = vmatprep.mubr.bf16.mxu0 0
  %3608 = vmatmul.mubr.bf16.gmra.mrb[0].mxu0 %v3479
  %v3609 = vpop.f32.mrb[0].mxu0
  %v3610 = vadd.f32 0.0, %v3609
  %v3611 = vpop.f32.mrb[0].mxu0
  %v3612 = vpop.f32.mrb[0].mxu0
  %v3613 = vadd.f32 0.0, %v3612
  %v3614 = vpop.f32.mrb[0].mxu0
  %3615 = vmatprep.mubr.bf16.mxu0 0
  %3616 = vmatmul.mubr.bf16.gmra.mrb[0].mxu0 %v3482
  %v3617 = vpop.f32.mrb[0].mxu0
  %v3618 = vadd.f32 0.0, %v3617
  %v3619 = vpop.f32.mrb[0].mxu0
  %v3620 = vpop.f32.mrb[0].mxu0
  %v3621 = vadd.f32 0.0, %v3620
  %v3622 = vpop.f32.mrb[0].mxu0
  %3623 = vmatprep.mubr.bf16.mxu0 0
  %3624 = vmatmul.mubr.bf16.gmra.mrb[0].mxu0 %v3485
  %v3625 = vpop.f32.mrb[0].mxu0
  %v3626 = vadd.f32 0.0, %v3625
  %v3627 = vpop.f32.mrb[0].mxu0
  %v3628 = vpop.f32.mrb[0].mxu0
  %v3629 = vadd.f32 0.0, %v3628
  %v3630 = vpop.f32.mrb[0].mxu0
  %3631 = vmatprep.mubr.bf16.mxu0 0
  %3632 = vmatmul.mubr.bf16.gmra.mrb[0].mxu0 %v3488
  %v3633 = vpop.f32.mrb[0].mxu0
  %v3634 = vadd.f32 0.0, %v3633
  %v3635 = vpop.f32.mrb[0].mxu0
  %v3636 = vpop.f32.mrb[0].mxu0
  %v3637 = vadd.f32 0.0, %v3636
  %v3638 = vpop.f32.mrb[0].mxu0
  %3639 = vmatprep.mubr.bf16.mxu0 0
  %3640 = vmatmul.mubr.bf16.gmra.mrb[0].mxu0 %v3491
  %v3641 = vpop.f32.mrb[0].mxu0
  %v3642 = vadd.f32 0.0, %v3641
  %v3643 = vpop.f32.mrb[0].mxu0
  %v3644 = vpop.f32.mrb[0].mxu0
  %v3645 = vadd.f32 0.0, %v3644
  %v3646 = vpop.f32.mrb[0].mxu0
  %3647 = vmatprep.mubr.bf16.mxu0 0
  %3648 = vmatmul.mubr.bf16.gmra.mrb[0].mxu0 %v3494
  %v3649 = vpop.f32.mrb[0].mxu0
  %v3650 = vadd.f32 0.0, %v3649
  %v3651 = vpop.f32.mrb[0].mxu0
  %v3652 = vpop.f32.mrb[0].mxu0
  %v3653 = vadd.f32 0.0, %v3652
  %v3654 = vpop.f32.mrb[0].mxu0
  %3655 = vmatprep.mubr.bf16.mxu0 0
  %3656 = vmatmul.mubr.bf16.gmra.mrb[0].mxu0 %v3497
  %v3657 = vpop.f32.mrb[0].mxu0
  %v3658 = vadd.f32 0.0, %v3657
  %v3659 = vpop.f32.mrb[0].mxu0
  %v3660 = vpop.f32.mrb[0].mxu0
  %v3661 = vadd.f32 0.0, %v3660
  %v3662 = vpop.f32.mrb[0].mxu0
  %3663 = vmatprep.mubr.bf16.mxu0 0
  %3664 = vmatmul.mubr.bf16.gmra.mrb[0].mxu0 %v3500
  %v3665 = vpop.f32.mrb[0].mxu0
  %v3666 = vadd.f32 0.0, %v3665
  %v3667 = vpop.f32.mrb[0].mxu0
  %v3668 = vpop.f32.mrb[0].mxu0
  %v3669 = vadd.f32 0.0, %v3668
  %v3670 = vpop.f32.mrb[0].mxu0
  %3671 = vmatprep.mubr.bf16.mxu0 0
  %3672 = vmatmul.mubr.bf16.gmra.mrb[0].mxu0 %v3503
  %v3673 = vpop.f32.mrb[0].mxu0
  %v3674 = vadd.f32 0.0, %v3673
  %v3675 = vpop.f32.mrb[0].mxu0
  %v3676 = vpop.f32.mrb[0].mxu0
  %v3677 = vadd.f32 0.0, %v3676
  %v3678 = vpop.f32.mrb[0].mxu0
  %3679 = vmatprep.mubr.bf16.mxu0 0
  %3680 = vmatmul.mubr.bf16.gmra.mrb[0].mxu0 %v3506
  %v3681 = vpop.f32.mrb[0].mxu0
  %v3682 = vadd.f32 0.0, %v3681
  %v3683 = vpop.f32.mrb[0].mxu0
  %v3684 = vpop.f32.mrb[0].mxu0
  %v3685 = vadd.f32 0.0, %v3684
  %v3686 = vpop.f32.mrb[0].mxu0
  %3687 = vmatprep.mubr.bf16.mxu0 0
  %3688 = vmatmul.mubr.bf16.gmra.mrb[0].mxu0 %v3509
  %v3689 = vpop.f32.mrb[0].mxu0
  %v3690 = vadd.f32 0.0, %v3689
  %v3691 = vpop.f32.mrb[0].mxu0
  %v3692 = vpop.f32.mrb[0].mxu0
  %v3693 = vadd.f32 0.0, %v3692
  %v3694 = vpop.f32.mrb[0].mxu0
  %3695 = vmatprep.mubr.bf16.mxu0 0
  %3696 = vmatmul.mubr.bf16.gmra.mrb[0].mxu0 %v3512
  %v3697 = vpop.f32.mrb[0].mxu0
  %v3698 = vadd.f32 0.0, %v3697
  %v3699 = vpop.f32.mrb[0].mxu0
  %v3700 = vpop.f32.mrb[0].mxu0
  %v3701 = vadd.f32 0.0, %v3700
  %v3702 = vpop.f32.mrb[0].mxu0
  %3703 = vmatprep.mubr.bf16.mxu0 0
  %3704 = vmatmul.mubr.bf16.gmra.mrb[0].mxu0 %v3515
  %v3705 = vpop.f32.mrb[0].mxu0
  %v3706 = vadd.f32 0.0, %v3705
  %v3707 = vpop.f32.mrb[0].mxu0
  %v3708 = vpop.f32.mrb[0].mxu0
  %v3709 = vadd.f32 0.0, %v3708
  %v3710 = vpop.f32.mrb[0].mxu0
  %3711 = vmatprep.mubr.bf16.mxu0 0
  %3712 = vmatmul.mubr.bf16.gmra.mrb[0].mxu0 %v3518
  %v3713 = vpop.f32.mrb[0].mxu0
  %v3714 = vadd.f32 0.0, %v3713
  %v3715 = vpop.f32.mrb[0].mxu0
  %v3716 = vpop.f32.mrb[0].mxu0
  %v3717 = vadd.f32 0.0, %v3716
  %v3718 = vpop.f32.mrb[0].mxu0
  %3719 = vmatprep.mubr.bf16.mxu0 0
  %3720 = vmatmul.mubr.bf16.gmra.mrb[0].mxu0 %v3521
  %v3721 = vpop.f32.mrb[0].mxu0
  %v3722 = vadd.f32 0.0, %v3721
  %v3723 = vpop.f32.mrb[0].mxu0
  %v3724 = vpop.f32.mrb[0].mxu0
  %v3725 = vadd.f32 0.0, %v3724
  %v3726 = vpop.f32.mrb[0].mxu0
  %3727 = vmatprep.mubr.bf16.mxu0 0
  %3728 = vmatmul.mubr.bf16.gmra.mrb[0].mxu0 %v3524
  %v3729 = vpop.f32.mrb[0].mxu0
  %v3730 = vadd.f32 0.0, %v3729
  %v3731 = vpop.f32.mrb[0].mxu0
  %v3732 = vpop.f32.mrb[0].mxu0
  %v3733 = vadd.f32 0.0, %v3732
  %v3734 = vpop.f32.mrb[0].mxu0
  %3735 = vmatprep.mubr.bf16.mxu0 0
  %3736 = vmatmul.mubr.bf16.gmra.mrb[0].mxu0 %v3527
  %v3737 = vpop.f32.mrb[0].mxu0
  %v3738 = vadd.f32 0.0, %v3737
  %v3739 = vpop.f32.mrb[0].mxu0
  %v3740 = vpop.f32.mrb[0].mxu0
  %v3741 = vadd.f32 0.0, %v3740
  %v3742 = vpop.f32.mrb[0].mxu0
  %3743 = vmatprep.mubr.bf16.mxu0 0
  %3744 = vmatmul.mubr.bf16.gmra.mrb[0].mxu0 %v3530
  %v3745 = vpop.f32.mrb[0].mxu0
  %v3746 = vadd.f32 0.0, %v3745
  %v3747 = vpop.f32.mrb[0].mxu0
  %v3748 = vpop.f32.mrb[0].mxu0
  %v3749 = vadd.f32 0.0, %v3748
  %v3750 = vpop.f32.mrb[0].mxu0
  %3751 = vmatprep.mubr.bf16.mxu0 0
  %3752 = vmatmul.mubr.bf16.gmra.mrb[0].mxu0 %v3533
  %v3753 = vpop.f32.mrb[0].mxu0
  %v3754 = vadd.f32 0.0, %v3753
  %v3755 = vpop.f32.mrb[0].mxu0
  %v3756 = vpop.f32.mrb[0].mxu0
  %v3757 = vadd.f32 0.0, %v3756
  %v3758 = vpop.f32.mrb[0].mxu0
  %3759 = vdwg.mxu0
  %v3760 = vmax.f32 %v3570, %v3618
  %v3761 = vmax.f32 %v3573, %v3621
  %v3762 = vmax.f32 %v3578, %v3626
  %v3763 = vmax.f32 %v3581, %v3629
  %v3764 = vmax.f32 %v3586, %v3634
  %v3765 = vmax.f32 %v3589, %v3637
  %v3766 = vmax.f32 %v3594, %v3642
  %v3767 = vmax.f32 %v3597, %v3645
  %v3768 = vmax.f32 %v3602, %v3650
  %v3769 = vmax.f32 %v3605, %v3653
  %v3770 = vmax.f32 %v3610, %v3658
  %v3771 = vmax.f32 %v3613, %v3661
  %v3772 = vmax.f32 %v3760, %v3666
  %v3773 = vmax.f32 %v3761, %v3669
  %v3774 = vmax.f32 %v3762, %v3674
  %v3775 = vmax.f32 %v3763, %v3677
  %v3776 = vmax.f32 %v3764, %v3682
  %v3777 = vmax.f32 %v3765, %v3685
  %v3778 = vmax.f32 %v3766, %v3690
  %v3779 = vmax.f32 %v3767, %v3693
  %v3780 = vmax.f32 %v3768, %v3698
  %v3781 = vmax.f32 %v3769, %v3701
  %v3782 = vmax.f32 %v3770, %v3706
  %v3783 = vmax.f32 %v3771, %v3709
  %v3784 = vmax.f32 %v3772, %v3714
  %v3785 = vmax.f32 %v3773, %v3717
  %v3786 = vmax.f32 %v3774, %v3722
  %v3787 = vmax.f32 %v3775, %v3725
  %v3788 = vmax.f32 %v3776, %v3730
  %v3789 = vmax.f32 %v3777, %v3733
  %v3790 = vmax.f32 %v3778, %v3738
  %v3791 = vmax.f32 %v3779, %v3741
  %v3792 = vmax.f32 %v3780, %v3746
  %v3793 = vmax.f32 %v3781, %v3749
  %v3794 = vmax.f32 %v3782, %v3754
  %v3795 = vmax.f32 %v3783, %v3757
  %v3796 = vld [vmem:[%s4 + $0x6] sm:$0x1]
  %v3797 = vlaneseq
  %v3798 = vshrl.u32 %v3797, 7
  %v3799 = vsub.s32 0, %v3798
  %v3800 = vrot.slane %v3796, %v3799
  %v3801 = vadd.f32 %v3784, %v3800
  %v3802 = vadd.f32 %v3785, %v3800
  %v3803 = vadd.f32 %v3786, %v3800
  %v3804 = vadd.f32 %v3787, %v3800
  %v3805 = vadd.f32 %v3788, %v3800
  %v3806 = vadd.f32 %v3789, %v3800
  %v3807 = vadd.f32 %v3790, %v3800
  %v3808 = vadd.f32 %v3791, %v3800
  %v3809 = vadd.f32 %v3792, %v3800
  %v3810 = vadd.f32 %v3793, %v3800
  %v3811 = vadd.f32 %v3794, %v3800
  %v3812 = vadd.f32 %v3795, %v3800
  %v3813 = vmax.f32 %v3801, 0.0
  %v3814 = vmax.f32 %v3802, 0.0
  %v3815 = vmax.f32 %v3803, 0.0
  %v3816 = vmax.f32 %v3804, 0.0
  %v3817 = vmax.f32 %v3805, 0.0
  %v3818 = vmax.f32 %v3806, 0.0
  %v3819 = vmax.f32 %v3807, 0.0
  %v3820 = vmax.f32 %v3808, 0.0
  %v3821 = vmax.f32 %v3809, 0.0
  %v3822 = vmax.f32 %v3810, 0.0
  %v3823 = vmax.f32 %v3811, 0.0
  %v3824 = vmax.f32 %v3812, 0.0
  %v3825 = vld [vmem:[%s6 + $0xf0] sm:$0xff]
  %v3826 = vld [vmem:[%s6 + $0xf8] sm:$0xff]
  %v3827 = vld [vmem:[%s6 + $0x100] sm:$0xff]
  %v3828 = vld [vmem:[%s6 + $0x108] sm:$0xff]
  %v3829 = vld [vmem:[%s6 + $0x110] sm:$0xff]
  %v3830 = vld [vmem:[%s6 + $0x118] sm:$0xff]
  %v3831 = vld [vmem:[%s6 + $0x120] sm:$0xff]
  %v3832 = vld [vmem:[%s6 + $0x128] sm:$0xff]
  %v3833 = vld [vmem:[%s6 + $0x130] sm:$0xff]
  %v3834 = vld [vmem:[%s6 + $0x138] sm:$0xff]
  %v3835 = vld [vmem:[%s6 + $0x140] sm:$0xff]
  %v3836 = vld [vmem:[%s6 + $0x148] sm:$0xff]
  %v3837 = vmul.f32 %v3813, %v3825
  %v3838 = vmul.f32 %v3814, %v3826
  %v3839 = vmul.f32 %v3815, %v3827
  %v3840 = vmul.f32 %v3816, %v3828
  %v3841 = vmul.f32 %v3817, %v3829
  %v3842 = vmul.f32 %v3818, %v3830
  %v3843 = vmul.f32 %v3819, %v3831
  %v3844 = vmul.f32 %v3820, %v3832
  %v3845 = vmul.f32 %v3821, %v3833
  %v3846 = vmul.f32 %v3822, %v3834
  %v3847 = vmul.f32 %v3823, %v3835
  %v3848 = vmul.f32 %v3824, %v3836
  %v3849 = vadd.f32 %v3837, %v3839
  %v3850 = vadd.f32 %v3838, %v3840
  %v3851 = vadd.f32 %v3849, %v3841
  %v3852 = vadd.f32 %v3850, %v3842
  %v3853 = vadd.f32 %v3851, %v3843
  %v3854 = vadd.f32 %v3852, %v3844
  %v3855 = vadd.f32 %v3853, %v3845
  %v3856 = vadd.f32 %v3854, %v3846
  %v3857 = vadd.f32 %v3855, %v3847
  %v3858 = vadd.f32 %v3856, %v3848
  %v3859 = vadd.f32 %v3252, %v3857
  %v3860 = vadd.f32 %v3253, %v3858
  %v3861 = vld [vmem:[%s2 + $0x1e8] sm:$0xf]
  %v3862 = vld [vmem:[%s2 + $0x1ec] sm:$0xf]
  %v3863 = vld [vmem:[%s2 + $0x1f0] sm:$0xf]
  %v3864 = vld [vmem:[%s2 + $0x1f4] sm:$0xf]
  %v3865 = vld [vmem:[%s2 + $0x1f8] sm:$0xf]
  %v3866 = vld [vmem:[%s2 + $0x1fc] sm:$0xf]
  %v3867 = vld [vmem:[%s2 + $0x200] sm:$0xf]
  %v3868 = vld [vmem:[%s2 + $0x204] sm:$0xf]
  %v3869 = vld [vmem:[%s2 + $0x208] sm:$0xf]
  %v3870 = vld [vmem:[%s2 + $0x20c] sm:$0xf]
  %v3871 = vld [vmem:[%s2 + $0x210] sm:$0xf]
  %v3872 = vld [vmem:[%s2 + $0x214] sm:$0xf]
  %v3873 = vld [vmem:[%s2 + $0x218] sm:$0xf]
  %v3874 = vld [vmem:[%s2 + $0x21c] sm:$0xf]
  %v3875 = vld [vmem:[%s2 + $0x220] sm:$0xf]
  %v3876 = vld [vmem:[%s2 + $0x224] sm:$0xf]
  %v3877 = vld [vmem:[%s2 + $0x228] sm:$0xf]
  %v3878 = vld [vmem:[%s2 + $0x22c] sm:$0xf]
  %v3879 = vld [vmem:[%s2 + $0x230] sm:$0xf]
  %v3880 = vld [vmem:[%s2 + $0x234] sm:$0xf]
  %v3881 = vld [vmem:[%s2 + $0x238] sm:$0xf]
  %v3882 = vld [vmem:[%s2 + $0x23c] sm:$0xf]
  %v3883 = vld [vmem:[%s2 + $0x240] sm:$0xf]
  %v3884 = vld [vmem:[%s2 + $0x244] sm:$0xf]
  %v3885 = vld [vmem:[%s2 + $0x248] sm:$0xf]
  %v3886 = vld [vmem:[%s2 + $0x24c] sm:$0xf]
  %v3887 = vld [vmem:[%s2 + $0x250] sm:$0xf]
  %v3888 = vld [vmem:[%s2 + $0x254] sm:$0xf]
  %v3889 = vld [vmem:[%s2 + $0x258] sm:$0xf]
  %v3890 = vld [vmem:[%s2 + $0x25c] sm:$0xf]
  %v3891 = vld [vmem:[%s2 + $0x260] sm:$0xf]
  %v3892 = vld [vmem:[%s2 + $0x264] sm:$0xf]
  %v3893 = vld [vmem:[%s2 + $0x268] sm:$0xf]
  %v3894 = vld [vmem:[%s2 + $0x26c] sm:$0xf]
  %v3895 = vld [vmem:[%s2 + $0x270] sm:$0xf]
  %v3896 = vld [vmem:[%s2 + $0x274] sm:$0xf]
  %v3897 = vld [vmem:[%s2 + $0x278] sm:$0xf]
  %v3898 = vld [vmem:[%s2 + $0x27c] sm:$0xf]
  %v3899 = vld [vmem:[%s2 + $0x280] sm:$0xf]
  %v3900 = vld [vmem:[%s2 + $0x284] sm:$0xf]
  %v3901 = vld [vmem:[%s2 + $0x288] sm:$0xf]
  %v3902 = vld [vmem:[%s2 + $0x28c] sm:$0xf]
  %v3903 = vld [vmem:[%s2 + $0x290] sm:$0xf]
  %v3904 = vld [vmem:[%s2 + $0x294] sm:$0xf]
  %v3905 = vld [vmem:[%s2 + $0x298] sm:$0xf]
  %v3906 = vld [vmem:[%s2 + $0x29c] sm:$0xf]
  %v3907 = vld [vmem:[%s2 + $0x2a0] sm:$0xf]
  %v3908 = vld [vmem:[%s2 + $0x2a4] sm:$0xf]
  %v3909 = vld [vmem:[%s2 + $0x2a8] sm:$0xf]
  %v3910 = vld [vmem:[%s2 + $0x2ac] sm:$0xf]
  %s3911 = scalar_lea.vmem %s3, 120
  %v3912 = vld [vmem:[%s3911] sm:$0xf]
  %v3913 = vld [vmem:[%s3911 + $0x4] sm:$0xf]
  %v3914 = vld [vmem:[%s3911 + $0x8] sm:$0xf]
  %v3915 = vld [vmem:[%s3911 + $0xc] sm:$0xf]
  %v3916 = vld [vmem:[%s3911 + $0x10] sm:$0xf]
  %v3917 = vld [vmem:[%s3911 + $0x14] sm:$0xf]
  %v3918 = vld [vmem:[%s3911 + $0x18] sm:$0xf]
  %v3919 = vld [vmem:[%s3911 + $0x1c] sm:$0xf]
  %v3920 = vld [vmem:[%s3911 + $0x20] sm:$0xf]
  %v3921 = vld [vmem:[%s3911 + $0x24] sm:$0xf]
  %v3972 = vunpack.c.l.b16 %v3861
  %v3973 = vunpack.c.l.b16 %v3862
  %v3974 = vunpack.c.l.b16 %v3863
  %v3975 = vunpack.c.l.b16 %v3864
  %v3976 = vunpack.c.l.b16 %v3865
  %v3977 = vunpack.c.l.b16 %v3866
  %v3978 = vunpack.c.l.b16 %v3867
  %v3979 = vunpack.c.l.b16 %v3868
  %v3980 = vunpack.c.l.b16 %v3869
  %v3981 = vunpack.c.l.b16 %v3870
  %v3982 = vunpack.c.l.b16 %v3871
  %v3983 = vunpack.c.l.b16 %v3872
  %v3984 = vunpack.c.l.b16 %v3873
  %v3985 = vunpack.c.l.b16 %v3874
  %v3986 = vunpack.c.l.b16 %v3875
  %v3987 = vunpack.c.l.b16 %v3876
  %v3988 = vunpack.c.l.b16 %v3877
  %v3989 = vunpack.c.l.b16 %v3878
  %v3990 = vunpack.c.l.b16 %v3879
  %v3991 = vunpack.c.l.b16 %v3880
  %v3992 = vunpack.c.l.b16 %v3881
  %v3993 = vunpack.c.l.b16 %v3882
  %v3994 = vunpack.c.l.b16 %v3883
  %v3995 = vunpack.c.l.b16 %v3884
  %v3996 = vunpack.c.l.b16 %v3885
  %v3997 = vunpack.c.l.b16 %v3886
  %v3998 = vunpack.c.l.b16 %v3887
  %v3999 = vunpack.c.l.b16 %v3888
  %v4000 = vunpack.c.l.b16 %v3889
  %v4001 = vunpack.c.l.b16 %v3890
  %v4002 = vunpack.c.l.b16 %v3891
  %v4003 = vunpack.c.l.b16 %v3892
  %v4004 = vunpack.c.l.b16 %v3893
  %v4005 = vunpack.c.l.b16 %v3894
  %v4006 = vunpack.c.l.b16 %v3895
  %v4007 = vunpack.c.l.b16 %v3896
  %v4008 = vunpack.c.l.b16 %v3897
  %v4009 = vunpack.c.l.b16 %v3898
  %v4010 = vunpack.c.l.b16 %v3899
  %v4011 = vunpack.c.l.b16 %v3900
  %v4012 = vunpack.c.l.b16 %v3901
  %v4013 = vunpack.c.l.b16 %v3902
  %v4014 = vunpack.c.l.b16 %v3903
  %v4015 = vunpack.c.l.b16 %v3904
  %v4016 = vunpack.c.l.b16 %v3905
  %v4017 = vunpack.c.l.b16 %v3906
  %v4018 = vunpack.c.l.b16 %v3907
  %v4019 = vunpack.c.l.b16 %v3908
  %v4020 = vunpack.c.l.b16 %v3909
  %v4021 = vunpack.c.l.b16 %v3910
  %v4022 = vpack.c.b16 %v3973, %v3972
  %v4023 = vpack.c.b16 %v3975, %v3974
  %v4024 = vpack.c.b16 %v3977, %v3976
  %v4025 = vpack.c.b16 %v3979, %v3978
  %v4026 = vpack.c.b16 %v3981, %v3980
  %v4027 = vpack.c.b16 %v3983, %v3982
  %v4028 = vpack.c.b16 %v3985, %v3984
  %v4029 = vpack.c.b16 %v3987, %v3986
  %v4030 = vpack.c.b16 %v3989, %v3988
  %v4031 = vpack.c.b16 %v3991, %v3990
  %v4032 = vpack.c.b16 %v3993, %v3992
  %v4033 = vpack.c.b16 %v3995, %v3994
  %v4034 = vpack.c.b16 %v3997, %v3996
  %v4035 = vpack.c.b16 %v3999, %v3998
  %v4036 = vpack.c.b16 %v4001, %v4000
  %v4037 = vpack.c.b16 %v4003, %v4002
  %v4038 = vpack.c.b16 %v4005, %v4004
  %v4039 = vpack.c.b16 %v4007, %v4006
  %v4040 = vpack.c.b16 %v4009, %v4008
  %v4041 = vpack.c.b16 %v4011, %v4010
  %v4042 = vpack.c.b16 %v4013, %v4012
  %v4043 = vpack.c.b16 %v4015, %v4014
  %v4044 = vpack.c.b16 %v4017, %v4016
  %v4045 = vpack.c.b16 %v4019, %v4018
  %v4046 = vpack.c.b16 %v4021, %v4020
  %v4057 = vunpack.c.l.b16 %v3912
  %v4058 = vunpack.c.l.b16 %v3913
  %v4059 = vunpack.c.l.b16 %v3914
  %v4060 = vunpack.c.l.b16 %v3915
  %v4061 = vunpack.c.l.b16 %v3916
  %v4062 = vunpack.c.l.b16 %v3917
  %v4063 = vunpack.c.l.b16 %v3918
  %v4064 = vunpack.c.l.b16 %v3919
  %v4065 = vunpack.c.l.b16 %v3920
  %v4066 = vunpack.c.l.b16 %v3921
  %v4067 = vpack.c.b16 %v4058, %v4057
  %v4068 = vpack.c.b16 %v4060, %v4059
  %v4069 = vpack.c.b16 %v4062, %v4061
  %v4070 = vpack.c.b16 %v4064, %v4063
  %v4071 = vpack.c.b16 %v4066, %v4065
  %v4078 = vsel %vm2388, %v4022, 0
  %v4081 = vsel %vm2388, %v4023, 0
  %v4084 = vsel %vm2388, %v4024, 0
  %v4087 = vsel %vm2388, %v4025, 0
  %v4090 = vsel %vm2388, %v4026, 0
  %v4093 = vsel %vm2388, %v4027, 0
  %v4096 = vsel %vm2388, %v4028, 0
  %v4099 = vsel %vm2388, %v4029, 0
  %v4102 = vsel %vm2388, %v4030, 0
  %v4105 = vsel %vm2388, %v4031, 0
  %v4108 = vsel %vm2388, %v4032, 0
  %v4111 = vsel %vm2388, %v4033, 0
  %v4114 = vsel %vm2388, %v4034, 0
  %v4117 = vsel %vm2388, %v4035, 0
  %v4120 = vsel %vm2388, %v4036, 0
  %v4123 = vsel %vm2388, %v4037, 0
  %v4126 = vsel %vm2388, %v4038, 0
  %v4129 = vsel %vm2388, %v4039, 0
  %v4132 = vsel %vm2388, %v4040, 0
  %v4135 = vsel %vm2388, %v4041, 0
  %v4138 = vsel %vm2388, %v4042, 0
  %v4141 = vsel %vm2388, %v4043, 0
  %v4144 = vsel %vm2388, %v4044, 0
  %v4147 = vsel %vm2388, %v4045, 0
  %v4150 = vsel %vm2388, %v4046, 0
  %4152 = vmatprep.subr.bf16.mxu0 0
  %4153 = vmatpush1.bf16.msra.mxu0 %v4067
  %4154 = vmatprep.subr.bf16.mxu0 0
  %4155 = vmatpush1.bf16.msra.mxu0 %v4068
  %4156 = vmatprep.subr.bf16.mxu0 0
  %4157 = vmatpush1.bf16.msra.mxu0 %v4069
  %4158 = vmatprep.subr.bf16.mxu0 0
  %4159 = vmatpush1.bf16.msra.mxu0 %v4070
  %4160 = vmatprep.subr.bf16.mxu0 0
  %4161 = vmatpush1.bf16.msra.mxu0 %v4071
  %4162 = vmatprep.subr.bf16.mxu0 0
  %4163 = vmatpush1.bf16.msra.mxu0 0
  %4164 = vmatprep.subr.bf16.mxu0 0
  %4165 = vmatpush1.bf16.msra.mxu0 0
  %4166 = vmatprep.subr.bf16.mxu0 0
  %4167 = vmatpush1.bf16.msra.mxu0 0
  %4168 = vmatprep.subr.bf16.mxu0 0
  %4169 = vmatpush1.bf16.msra.mxu0 0
  %4170 = vmatprep.subr.bf16.mxu0 0
  %4171 = vmatpush1.bf16.msra.mxu0 0
  %4172 = vmatprep.subr.bf16.mxu0 0
  %4173 = vmatpush1.bf16.msra.mxu0 0
  %4174 = vmatprep.subr.bf16.mxu0 0
  %4175 = vmatpush1.bf16.msra.mxu0 0
  %4176 = vmatprep.subr.bf16.mxu0 0
  %4177 = vmatpush1.bf16.msra.mxu0 0
  %4178 = vmatprep.subr.bf16.mxu0 0
  %4179 = vmatpush1.bf16.msra.mxu0 0
  %4180 = vmatprep.subr.bf16.mxu0 0
  %4181 = vmatpush1.bf16.msra.mxu0 0
  %4182 = vmatprep.subr.bf16.mxu0 0
  %4183 = vmatpush1.bf16.msra.mxu0 0
  %4184 = vmatprep.mubr.bf16.mxu0 0
  %4185 = vmatmul.mubr.bf16.gmra.mrb[0].mxu0 %v4078
  %v4186 = vpop.f32.mrb[0].mxu0
  %v4187 = vadd.f32 0.0, %v4186
  %v4188 = vpop.f32.mrb[0].mxu0
  %v4189 = vpop.f32.mrb[0].mxu0
  %v4190 = vadd.f32 0.0, %v4189
  %v4191 = vpop.f32.mrb[0].mxu0
  %4192 = vmatprep.mubr.bf16.mxu0 0
  %4193 = vmatmul.mubr.bf16.gmra.mrb[0].mxu0 %v4081
  %v4194 = vpop.f32.mrb[0].mxu0
  %v4195 = vadd.f32 0.0, %v4194
  %v4196 = vpop.f32.mrb[0].mxu0
  %v4197 = vpop.f32.mrb[0].mxu0
  %v4198 = vadd.f32 0.0, %v4197
  %v4199 = vpop.f32.mrb[0].mxu0
  %4200 = vmatprep.mubr.bf16.mxu0 0
  %4201 = vmatmul.mubr.bf16.gmra.mrb[0].mxu0 %v4084
  %v4202 = vpop.f32.mrb[0].mxu0
  %v4203 = vadd.f32 0.0, %v4202
  %v4204 = vpop.f32.mrb[0].mxu0
  %v4205 = vpop.f32.mrb[0].mxu0
  %v4206 = vadd.f32 0.0, %v4205
  %v4207 = vpop.f32.mrb[0].mxu0
  %4208 = vmatprep.mubr.bf16.mxu0 0
  %4209 = vmatmul.mubr.bf16.gmra.mrb[0].mxu0 %v4087
  %v4210 = vpop.f32.mrb[0].mxu0
  %v4211 = vadd.f32 0.0, %v4210
  %v4212 = vpop.f32.mrb[0].mxu0
  %v4213 = vpop.f32.mrb[0].mxu0
  %v4214 = vadd.f32 0.0, %v4213
  %v4215 = vpop.f32.mrb[0].mxu0
  %4216 = vmatprep.mubr.bf16.mxu0 0
  %4217 = vmatmul.mubr.bf16.gmra.mrb[0].mxu0 %v4090
  %v4218 = vpop.f32.mrb[0].mxu0
  %v4219 = vadd.f32 0.0, %v4218
  %v4220 = vpop.f32.mrb[0].mxu0
  %v4221 = vpop.f32.mrb[0].mxu0
  %v4222 = vadd.f32 0.0, %v4221
  %v4223 = vpop.f32.mrb[0].mxu0
  %4224 = vmatprep.mubr.bf16.mxu0 0
  %4225 = vmatmul.mubr.bf16.gmra.mrb[0].mxu0 %v4093
  %v4226 = vpop.f32.mrb[0].mxu0
  %v4227 = vadd.f32 0.0, %v4226
  %v4228 = vpop.f32.mrb[0].mxu0
  %v4229 = vpop.f32.mrb[0].mxu0
  %v4230 = vadd.f32 0.0, %v4229
  %v4231 = vpop.f32.mrb[0].mxu0
  %4232 = vmatprep.mubr.bf16.mxu0 0
  %4233 = vmatmul.mubr.bf16.gmra.mrb[0].mxu0 %v4096
  %v4234 = vpop.f32.mrb[0].mxu0
  %v4235 = vadd.f32 0.0, %v4234
  %v4236 = vpop.f32.mrb[0].mxu0
  %v4237 = vpop.f32.mrb[0].mxu0
  %v4238 = vadd.f32 0.0, %v4237
  %v4239 = vpop.f32.mrb[0].mxu0
  %4240 = vmatprep.mubr.bf16.mxu0 0
  %4241 = vmatmul.mubr.bf16.gmra.mrb[0].mxu0 %v4099
  %v4242 = vpop.f32.mrb[0].mxu0
  %v4243 = vadd.f32 0.0, %v4242
  %v4244 = vpop.f32.mrb[0].mxu0
  %v4245 = vpop.f32.mrb[0].mxu0
  %v4246 = vadd.f32 0.0, %v4245
  %v4247 = vpop.f32.mrb[0].mxu0
  %4248 = vmatprep.mubr.bf16.mxu0 0
  %4249 = vmatmul.mubr.bf16.gmra.mrb[0].mxu0 %v4102
  %v4250 = vpop.f32.mrb[0].mxu0
  %v4251 = vadd.f32 0.0, %v4250
  %v4252 = vpop.f32.mrb[0].mxu0
  %v4253 = vpop.f32.mrb[0].mxu0
  %v4254 = vadd.f32 0.0, %v4253
  %v4255 = vpop.f32.mrb[0].mxu0
  %4256 = vmatprep.mubr.bf16.mxu0 0
  %4257 = vmatmul.mubr.bf16.gmra.mrb[0].mxu0 %v4105
  %v4258 = vpop.f32.mrb[0].mxu0
  %v4259 = vadd.f32 0.0, %v4258
  %v4260 = vpop.f32.mrb[0].mxu0
  %v4261 = vpop.f32.mrb[0].mxu0
  %v4262 = vadd.f32 0.0, %v4261
  %v4263 = vpop.f32.mrb[0].mxu0
  %4264 = vmatprep.mubr.bf16.mxu0 0
  %4265 = vmatmul.mubr.bf16.gmra.mrb[0].mxu0 %v4108
  %v4266 = vpop.f32.mrb[0].mxu0
  %v4267 = vadd.f32 0.0, %v4266
  %v4268 = vpop.f32.mrb[0].mxu0
  %v4269 = vpop.f32.mrb[0].mxu0
  %v4270 = vadd.f32 0.0, %v4269
  %v4271 = vpop.f32.mrb[0].mxu0
  %4272 = vmatprep.mubr.bf16.mxu0 0
  %4273 = vmatmul.mubr.bf16.gmra.mrb[0].mxu0 %v4111
  %v4274 = vpop.f32.mrb[0].mxu0
  %v4275 = vadd.f32 0.0, %v4274
  %v4276 = vpop.f32.mrb[0].mxu0
  %v4277 = vpop.f32.mrb[0].mxu0
  %v4278 = vadd.f32 0.0, %v4277
  %v4279 = vpop.f32.mrb[0].mxu0
  %4280 = vmatprep.mubr.bf16.mxu0 0
  %4281 = vmatmul.mubr.bf16.gmra.mrb[0].mxu0 %v4114
  %v4282 = vpop.f32.mrb[0].mxu0
  %v4283 = vadd.f32 0.0, %v4282
  %v4284 = vpop.f32.mrb[0].mxu0
  %v4285 = vpop.f32.mrb[0].mxu0
  %v4286 = vadd.f32 0.0, %v4285
  %v4287 = vpop.f32.mrb[0].mxu0
  %4288 = vmatprep.mubr.bf16.mxu0 0
  %4289 = vmatmul.mubr.bf16.gmra.mrb[0].mxu0 %v4117
  %v4290 = vpop.f32.mrb[0].mxu0
  %v4291 = vadd.f32 0.0, %v4290
  %v4292 = vpop.f32.mrb[0].mxu0
  %v4293 = vpop.f32.mrb[0].mxu0
  %v4294 = vadd.f32 0.0, %v4293
  %v4295 = vpop.f32.mrb[0].mxu0
  %4296 = vmatprep.mubr.bf16.mxu0 0
  %4297 = vmatmul.mubr.bf16.gmra.mrb[0].mxu0 %v4120
  %v4298 = vpop.f32.mrb[0].mxu0
  %v4299 = vadd.f32 0.0, %v4298
  %v4300 = vpop.f32.mrb[0].mxu0
  %v4301 = vpop.f32.mrb[0].mxu0
  %v4302 = vadd.f32 0.0, %v4301
  %v4303 = vpop.f32.mrb[0].mxu0
  %4304 = vmatprep.mubr.bf16.mxu0 0
  %4305 = vmatmul.mubr.bf16.gmra.mrb[0].mxu0 %v4123
  %v4306 = vpop.f32.mrb[0].mxu0
  %v4307 = vadd.f32 0.0, %v4306
  %v4308 = vpop.f32.mrb[0].mxu0
  %v4309 = vpop.f32.mrb[0].mxu0
  %v4310 = vadd.f32 0.0, %v4309
  %v4311 = vpop.f32.mrb[0].mxu0
  %4312 = vmatprep.mubr.bf16.mxu0 0
  %4313 = vmatmul.mubr.bf16.gmra.mrb[0].mxu0 %v4126
  %v4314 = vpop.f32.mrb[0].mxu0
  %v4315 = vadd.f32 0.0, %v4314
  %v4316 = vpop.f32.mrb[0].mxu0
  %v4317 = vpop.f32.mrb[0].mxu0
  %v4318 = vadd.f32 0.0, %v4317
  %v4319 = vpop.f32.mrb[0].mxu0
  %4320 = vmatprep.mubr.bf16.mxu0 0
  %4321 = vmatmul.mubr.bf16.gmra.mrb[0].mxu0 %v4129
  %v4322 = vpop.f32.mrb[0].mxu0
  %v4323 = vadd.f32 0.0, %v4322
  %v4324 = vpop.f32.mrb[0].mxu0
  %v4325 = vpop.f32.mrb[0].mxu0
  %v4326 = vadd.f32 0.0, %v4325
  %v4327 = vpop.f32.mrb[0].mxu0
  %4328 = vmatprep.mubr.bf16.mxu0 0
  %4329 = vmatmul.mubr.bf16.gmra.mrb[0].mxu0 %v4132
  %v4330 = vpop.f32.mrb[0].mxu0
  %v4331 = vadd.f32 0.0, %v4330
  %v4332 = vpop.f32.mrb[0].mxu0
  %v4333 = vpop.f32.mrb[0].mxu0
  %v4334 = vadd.f32 0.0, %v4333
  %v4335 = vpop.f32.mrb[0].mxu0
  %4336 = vmatprep.mubr.bf16.mxu0 0
  %4337 = vmatmul.mubr.bf16.gmra.mrb[0].mxu0 %v4135
  %v4338 = vpop.f32.mrb[0].mxu0
  %v4339 = vadd.f32 0.0, %v4338
  %v4340 = vpop.f32.mrb[0].mxu0
  %v4341 = vpop.f32.mrb[0].mxu0
  %v4342 = vadd.f32 0.0, %v4341
  %v4343 = vpop.f32.mrb[0].mxu0
  %4344 = vmatprep.mubr.bf16.mxu0 0
  %4345 = vmatmul.mubr.bf16.gmra.mrb[0].mxu0 %v4138
  %v4346 = vpop.f32.mrb[0].mxu0
  %v4347 = vadd.f32 0.0, %v4346
  %v4348 = vpop.f32.mrb[0].mxu0
  %v4349 = vpop.f32.mrb[0].mxu0
  %v4350 = vadd.f32 0.0, %v4349
  %v4351 = vpop.f32.mrb[0].mxu0
  %4352 = vmatprep.mubr.bf16.mxu0 0
  %4353 = vmatmul.mubr.bf16.gmra.mrb[0].mxu0 %v4141
  %v4354 = vpop.f32.mrb[0].mxu0
  %v4355 = vadd.f32 0.0, %v4354
  %v4356 = vpop.f32.mrb[0].mxu0
  %v4357 = vpop.f32.mrb[0].mxu0
  %v4358 = vadd.f32 0.0, %v4357
  %v4359 = vpop.f32.mrb[0].mxu0
  %4360 = vmatprep.mubr.bf16.mxu0 0
  %4361 = vmatmul.mubr.bf16.gmra.mrb[0].mxu0 %v4144
  %v4362 = vpop.f32.mrb[0].mxu0
  %v4363 = vadd.f32 0.0, %v4362
  %v4364 = vpop.f32.mrb[0].mxu0
  %v4365 = vpop.f32.mrb[0].mxu0
  %v4366 = vadd.f32 0.0, %v4365
  %v4367 = vpop.f32.mrb[0].mxu0
  %4368 = vmatprep.mubr.bf16.mxu0 0
  %4369 = vmatmul.mubr.bf16.gmra.mrb[0].mxu0 %v4147
  %v4370 = vpop.f32.mrb[0].mxu0
  %v4371 = vadd.f32 0.0, %v4370
  %v4372 = vpop.f32.mrb[0].mxu0
  %v4373 = vpop.f32.mrb[0].mxu0
  %v4374 = vadd.f32 0.0, %v4373
  %v4375 = vpop.f32.mrb[0].mxu0
  %4376 = vmatprep.mubr.bf16.mxu0 0
  %4377 = vmatmul.mubr.bf16.gmra.mrb[0].mxu0 %v4150
  %v4378 = vpop.f32.mrb[0].mxu0
  %v4379 = vadd.f32 0.0, %v4378
  %v4380 = vpop.f32.mrb[0].mxu0
  %v4381 = vpop.f32.mrb[0].mxu0
  %v4382 = vadd.f32 0.0, %v4381
  %v4383 = vpop.f32.mrb[0].mxu0
  %4384 = vdwg.mxu0
  %v4385 = vmax.f32 %v4187, %v4227
  %v4386 = vmax.f32 %v4190, %v4230
  %v4387 = vmax.f32 %v4195, %v4235
  %v4388 = vmax.f32 %v4198, %v4238
  %v4389 = vmax.f32 %v4203, %v4243
  %v4390 = vmax.f32 %v4206, %v4246
  %v4391 = vmax.f32 %v4211, %v4251
  %v4392 = vmax.f32 %v4214, %v4254
  %v4393 = vmax.f32 %v4219, %v4259
  %v4394 = vmax.f32 %v4222, %v4262
  %v4395 = vmax.f32 %v4385, %v4267
  %v4396 = vmax.f32 %v4386, %v4270
  %v4397 = vmax.f32 %v4387, %v4275
  %v4398 = vmax.f32 %v4388, %v4278
  %v4399 = vmax.f32 %v4389, %v4283
  %v4400 = vmax.f32 %v4390, %v4286
  %v4401 = vmax.f32 %v4391, %v4291
  %v4402 = vmax.f32 %v4392, %v4294
  %v4403 = vmax.f32 %v4393, %v4299
  %v4404 = vmax.f32 %v4394, %v4302
  %v4405 = vmax.f32 %v4395, %v4307
  %v4406 = vmax.f32 %v4396, %v4310
  %v4407 = vmax.f32 %v4397, %v4315
  %v4408 = vmax.f32 %v4398, %v4318
  %v4409 = vmax.f32 %v4399, %v4323
  %v4410 = vmax.f32 %v4400, %v4326
  %v4411 = vmax.f32 %v4401, %v4331
  %v4412 = vmax.f32 %v4402, %v4334
  %v4413 = vmax.f32 %v4403, %v4339
  %v4414 = vmax.f32 %v4404, %v4342
  %v4415 = vmax.f32 %v4405, %v4347
  %v4416 = vmax.f32 %v4406, %v4350
  %v4417 = vmax.f32 %v4407, %v4355
  %v4418 = vmax.f32 %v4408, %v4358
  %v4419 = vmax.f32 %v4409, %v4363
  %v4420 = vmax.f32 %v4410, %v4366
  %v4421 = vmax.f32 %v4411, %v4371
  %v4422 = vmax.f32 %v4412, %v4374
  %v4423 = vmax.f32 %v4413, %v4379
  %v4424 = vmax.f32 %v4414, %v4382
  %v4425 = vld [vmem:[%s4 + $0x7] sm:$0x1]
  %v4426 = vlaneseq
  %v4427 = vshrl.u32 %v4426, 7
  %v4428 = vsub.s32 0, %v4427
  %v4429 = vrot.slane %v4425, %v4428
  %v4430 = vadd.f32 %v4415, %v4429
  %v4431 = vadd.f32 %v4416, %v4429
  %v4432 = vadd.f32 %v4417, %v4429
  %v4433 = vadd.f32 %v4418, %v4429
  %v4434 = vadd.f32 %v4419, %v4429
  %v4435 = vadd.f32 %v4420, %v4429
  %v4436 = vadd.f32 %v4421, %v4429
  %v4437 = vadd.f32 %v4422, %v4429
  %v4438 = vadd.f32 %v4423, %v4429
  %v4439 = vadd.f32 %v4424, %v4429
  %v4440 = vmax.f32 %v4430, 0.0
  %v4441 = vmax.f32 %v4431, 0.0
  %v4442 = vmax.f32 %v4432, 0.0
  %v4443 = vmax.f32 %v4433, 0.0
  %v4444 = vmax.f32 %v4434, 0.0
  %v4445 = vmax.f32 %v4435, 0.0
  %v4446 = vmax.f32 %v4436, 0.0
  %v4447 = vmax.f32 %v4437, 0.0
  %v4448 = vmax.f32 %v4438, 0.0
  %v4449 = vmax.f32 %v4439, 0.0
  %v4450 = vld [vmem:[%s6 + $0x150] sm:$0xff]
  %v4451 = vld [vmem:[%s6 + $0x158] sm:$0xff]
  %v4452 = vld [vmem:[%s6 + $0x160] sm:$0xff]
  %v4453 = vld [vmem:[%s6 + $0x168] sm:$0xff]
  %v4454 = vld [vmem:[%s6 + $0x170] sm:$0xff]
  %v4455 = vld [vmem:[%s6 + $0x178] sm:$0xff]
  %v4456 = vld [vmem:[%s6 + $0x180] sm:$0xff]
  %v4457 = vld [vmem:[%s6 + $0x188] sm:$0xff]
  %v4458 = vld [vmem:[%s6 + $0x190] sm:$0xff]
  %v4459 = vld [vmem:[%s6 + $0x198] sm:$0xff]
  %v4460 = vmul.f32 %v4440, %v4450
  %v4461 = vmul.f32 %v4441, %v4451
  %v4462 = vmul.f32 %v4442, %v4452
  %v4463 = vmul.f32 %v4443, %v4453
  %v4464 = vmul.f32 %v4444, %v4454
  %v4465 = vmul.f32 %v4445, %v4455
  %v4466 = vmul.f32 %v4446, %v4456
  %v4467 = vmul.f32 %v4447, %v4457
  %v4468 = vmul.f32 %v4448, %v4458
  %v4469 = vmul.f32 %v4449, %v4459
  %v4470 = vadd.f32 %v4460, %v4462
  %v4471 = vadd.f32 %v4461, %v4463
  %v4472 = vadd.f32 %v4470, %v4464
  %v4473 = vadd.f32 %v4471, %v4465
  %v4474 = vadd.f32 %v4472, %v4466
  %v4475 = vadd.f32 %v4473, %v4467
  %v4476 = vadd.f32 %v4474, %v4468
  %v4477 = vadd.f32 %v4475, %v4469
  %v4478 = vadd.f32 %v3859, %v4476
  %v4479 = vadd.f32 %v3860, %v4477
  %v4480 = vadd.f32 %v2234, %v4478
  %v4481 = vadd.f32 %v2235, %v4479
  %v4482 = vld [vmem:[%s7] sm:$0xff]
  %v4483 = vld [vmem:[%s7 + $0x8] sm:$0xff]
  %v4484 = vld [vmem:[%s8] sm:$0xf]
  %v4485 = vld [vmem:[%s8 + $0x4] sm:$0xf]
  %v4486 = vld [vmem:[%s8 + $0x8] sm:$0xf]
  %v4487 = vld [vmem:[%s8 + $0xc] sm:$0xf]
  %v4488 = vld [vmem:[%s8 + $0x10] sm:$0xf]
  %v4489 = vld [vmem:[%s8 + $0x14] sm:$0xf]
  %v4490 = vld [vmem:[%s8 + $0x18] sm:$0xf]
  %v4491 = vld [vmem:[%s8 + $0x1c] sm:$0xf]
  %v4492 = vld [vmem:[%s8 + $0x20] sm:$0xf]
  %v4493 = vld [vmem:[%s8 + $0x24] sm:$0xf]
  %v4494 = vld [vmem:[%s8 + $0x28] sm:$0xf]
  %v4495 = vld [vmem:[%s8 + $0x2c] sm:$0xf]
  %v4496 = vld [vmem:[%s8 + $0x30] sm:$0xf]
  %v4497 = vld [vmem:[%s8 + $0x34] sm:$0xf]
  %v4498 = vld [vmem:[%s8 + $0x38] sm:$0xf]
  %v4499 = vld [vmem:[%s8 + $0x3c] sm:$0xf]
  %v4500 = vld [vmem:[%s8 + $0x40] sm:$0xf]
  %v4501 = vld [vmem:[%s8 + $0x44] sm:$0xf]
  %v4502 = vld [vmem:[%s8 + $0x48] sm:$0xf]
  %v4503 = vld [vmem:[%s8 + $0x4c] sm:$0xf]
  %v4504 = vld [vmem:[%s8 + $0x50] sm:$0xf]
  %v4505 = vld [vmem:[%s8 + $0x54] sm:$0xf]
  %v4506 = vld [vmem:[%s8 + $0x58] sm:$0xf]
  %v4507 = vld [vmem:[%s8 + $0x5c] sm:$0xf]
  %v4508 = vld [vmem:[%s8 + $0x60] sm:$0xf]
  %v4509 = vld [vmem:[%s8 + $0x64] sm:$0xf]
  %v4510 = vld [vmem:[%s8 + $0x68] sm:$0xf]
  %v4511 = vld [vmem:[%s8 + $0x6c] sm:$0xf]
  %v4512 = vld [vmem:[%s8 + $0x70] sm:$0xf]
  %v4513 = vld [vmem:[%s8 + $0x74] sm:$0xf]
  %v4514 = vld [vmem:[%s8 + $0x78] sm:$0xf]
  %v4515 = vld [vmem:[%s8 + $0x7c] sm:$0xf]
  %v4516 = vld [vmem:[%s8 + $0x80] sm:$0xf]
  %v4517 = vld [vmem:[%s8 + $0x84] sm:$0xf]
  %v4518 = vld [vmem:[%s8 + $0x88] sm:$0xf]
  %v4519 = vld [vmem:[%s8 + $0x8c] sm:$0xf]
  %v4520 = vld [vmem:[%s8 + $0x90] sm:$0xf]
  %v4521 = vld [vmem:[%s8 + $0x94] sm:$0xf]
  %v4522 = vld [vmem:[%s8 + $0x98] sm:$0xf]
  %v4523 = vld [vmem:[%s8 + $0x9c] sm:$0xf]
  %v4524 = vld [vmem:[%s8 + $0xa0] sm:$0xf]
  %v4525 = vld [vmem:[%s8 + $0xa4] sm:$0xf]
  %v4526 = vld [vmem:[%s8 + $0xa8] sm:$0xf]
  %v4527 = vld [vmem:[%s8 + $0xac] sm:$0xf]
  %v4528 = vld [vmem:[%s8 + $0xb0] sm:$0xf]
  %v4529 = vld [vmem:[%s8 + $0xb4] sm:$0xf]
  %v4530 = vld [vmem:[%s8 + $0xb8] sm:$0xf]
  %v4531 = vld [vmem:[%s8 + $0xbc] sm:$0xf]
  %v4532 = vld [vmem:[%s8 + $0xc0] sm:$0xf]
  %v4533 = vld [vmem:[%s8 + $0xc4] sm:$0xf]
  %v4534 = vld [vmem:[%s9] sm:$0x1]
  %v4536 = vlaneseq
  %v4537 = vshrl.u32 %v4536, 7
  %v4538 = vsub.s32 0, %v4537
  %v4539 = vrot.slane %v4534, %v4538
  %v4543 = vunpack.c.l.b16 %v4482
  %v4544 = vunpack.c.h.b16 %v4482
  %v4545 = vunpack.c.l.b16 %v4483
  %v4546 = vunpack.c.h.b16 %v4483
  %v4547 = vpack.c.b16 %v4543, %v4543
  %v4548 = vpack.c.b16 %v4544, %v4544
  %v4549 = vpack.c.b16 %v4545, %v4545
  %v4550 = vpack.c.b16 %v4546, %v4546
  %v4604 = vunpack.c.l.b16 %v4484
  %v4605 = vunpack.c.l.b16 %v4485
  %v4606 = vunpack.c.l.b16 %v4486
  %v4607 = vunpack.c.l.b16 %v4487
  %v4608 = vunpack.c.l.b16 %v4488
  %v4609 = vunpack.c.l.b16 %v4489
  %v4610 = vunpack.c.l.b16 %v4490
  %v4611 = vunpack.c.l.b16 %v4491
  %v4612 = vunpack.c.l.b16 %v4492
  %v4613 = vunpack.c.l.b16 %v4493
  %v4614 = vunpack.c.l.b16 %v4494
  %v4615 = vunpack.c.l.b16 %v4495
  %v4616 = vunpack.c.l.b16 %v4496
  %v4617 = vunpack.c.l.b16 %v4497
  %v4618 = vunpack.c.l.b16 %v4498
  %v4619 = vunpack.c.l.b16 %v4499
  %v4620 = vunpack.c.l.b16 %v4500
  %v4621 = vunpack.c.l.b16 %v4501
  %v4622 = vunpack.c.l.b16 %v4502
  %v4623 = vunpack.c.l.b16 %v4503
  %v4624 = vunpack.c.l.b16 %v4504
  %v4625 = vunpack.c.l.b16 %v4505
  %v4626 = vunpack.c.l.b16 %v4506
  %v4627 = vunpack.c.l.b16 %v4507
  %v4628 = vunpack.c.l.b16 %v4508
  %v4629 = vunpack.c.l.b16 %v4509
  %v4630 = vunpack.c.l.b16 %v4510
  %v4631 = vunpack.c.l.b16 %v4511
  %v4632 = vunpack.c.l.b16 %v4512
  %v4633 = vunpack.c.l.b16 %v4513
  %v4634 = vunpack.c.l.b16 %v4514
  %v4635 = vunpack.c.l.b16 %v4515
  %v4636 = vunpack.c.l.b16 %v4516
  %v4637 = vunpack.c.l.b16 %v4517
  %v4638 = vunpack.c.l.b16 %v4518
  %v4639 = vunpack.c.l.b16 %v4519
  %v4640 = vunpack.c.l.b16 %v4520
  %v4641 = vunpack.c.l.b16 %v4521
  %v4642 = vunpack.c.l.b16 %v4522
  %v4643 = vunpack.c.l.b16 %v4523
  %v4644 = vunpack.c.l.b16 %v4524
  %v4645 = vunpack.c.l.b16 %v4525
  %v4646 = vunpack.c.l.b16 %v4526
  %v4647 = vunpack.c.l.b16 %v4527
  %v4648 = vunpack.c.l.b16 %v4528
  %v4649 = vunpack.c.l.b16 %v4529
  %v4650 = vunpack.c.l.b16 %v4530
  %v4651 = vunpack.c.l.b16 %v4531
  %v4652 = vunpack.c.l.b16 %v4532
  %v4653 = vunpack.c.l.b16 %v4533
  %v4654 = vpack.c.b16 %v4605, %v4604
  %v4655 = vpack.c.b16 %v4607, %v4606
  %v4656 = vpack.c.b16 %v4609, %v4608
  %v4657 = vpack.c.b16 %v4611, %v4610
  %v4658 = vpack.c.b16 %v4613, %v4612
  %v4659 = vpack.c.b16 %v4615, %v4614
  %v4660 = vpack.c.b16 %v4617, %v4616
  %v4661 = vpack.c.b16 %v4619, %v4618
  %v4662 = vpack.c.b16 %v4621, %v4620
  %v4663 = vpack.c.b16 %v4623, %v4622
  %v4664 = vpack.c.b16 %v4625, %v4624
  %v4665 = vpack.c.b16 %v4627, %v4626
  %v4666 = vpack.c.b16 %v4629, %v4628
  %v4667 = vpack.c.b16 %v4631, %v4630
  %v4668 = vpack.c.b16 %v4633, %v4632
  %v4669 = vpack.c.b16 %v4635, %v4634
  %v4670 = vpack.c.b16 %v4637, %v4636
  %v4671 = vpack.c.b16 %v4639, %v4638
  %v4672 = vpack.c.b16 %v4641, %v4640
  %v4673 = vpack.c.b16 %v4643, %v4642
  %v4674 = vpack.c.b16 %v4645, %v4644
  %v4675 = vpack.c.b16 %v4647, %v4646
  %v4676 = vpack.c.b16 %v4649, %v4648
  %v4677 = vpack.c.b16 %v4651, %v4650
  %v4678 = vpack.c.b16 %v4653, %v4652
  %vm4704 = vcmask 130048
  %v4706 = vsel %vm4704, %v4550, 0
  %4708 = vmatprep.subr.bf16.mxu0 0
  %4709 = vmatpush1.bf16.msra.mxu0 %v4654
  %4710 = vmatprep.subr.bf16.mxu0 0
  %4711 = vmatpush1.bf16.msra.mxu0 %v4655
  %4712 = vmatprep.subr.bf16.mxu0 0
  %4713 = vmatpush1.bf16.msra.mxu0 %v4656
  %4714 = vmatprep.subr.bf16.mxu0 0
  %4715 = vmatpush1.bf16.msra.mxu0 %v4657
  %4716 = vmatprep.subr.bf16.mxu0 0
  %4717 = vmatpush1.bf16.msra.mxu0 %v4658
  %4718 = vmatprep.subr.bf16.mxu0 0
  %4719 = vmatpush1.bf16.msra.mxu0 %v4659
  %4720 = vmatprep.subr.bf16.mxu0 0
  %4721 = vmatpush1.bf16.msra.mxu0 %v4660
  %4722 = vmatprep.subr.bf16.mxu0 0
  %4723 = vmatpush1.bf16.msra.mxu0 %v4661
  %4724 = vmatprep.subr.bf16.mxu0 0
  %4725 = vmatpush1.bf16.msra.mxu0 %v4662
  %4726 = vmatprep.subr.bf16.mxu0 0
  %4727 = vmatpush1.bf16.msra.mxu0 %v4663
  %4728 = vmatprep.subr.bf16.mxu0 0
  %4729 = vmatpush1.bf16.msra.mxu0 %v4664
  %4730 = vmatprep.subr.bf16.mxu0 0
  %4731 = vmatpush1.bf16.msra.mxu0 %v4665
  %4732 = vmatprep.subr.bf16.mxu0 0
  %4733 = vmatpush1.bf16.msra.mxu0 %v4666
  %4734 = vmatprep.subr.bf16.mxu0 0
  %4735 = vmatpush1.bf16.msra.mxu0 %v4667
  %4736 = vmatprep.subr.bf16.mxu0 0
  %4737 = vmatpush1.bf16.msra.mxu0 %v4668
  %4738 = vmatprep.subr.bf16.mxu0 0
  %4739 = vmatpush1.bf16.msra.mxu0 %v4669
  %4740 = vmatprep.mubr.bf16.mxu0 %v4548
  %4741 = vmatmul.mubr.bf16.gmra.mrb[0].mxu0 %v4547
  %v4742 = vpop.f32.mrb[0].mxu0
  %v4743 = vadd.f32 %v4539, %v4742
  %v4744 = vpop.f32.mrb[0].mxu0
  %v4745 = vpop.f32.mrb[0].mxu0
  %v4746 = vpop.f32.mrb[0].mxu0
  %4747 = vdwg.mxu0
  %4748 = vmatprep.subr.bf16.mxu0 0
  %4749 = vmatpush1.bf16.msra.mxu0 %v4670
  %4750 = vmatprep.subr.bf16.mxu0 0
  %4751 = vmatpush1.bf16.msra.mxu0 %v4671
  %4752 = vmatprep.subr.bf16.mxu0 0
  %4753 = vmatpush1.bf16.msra.mxu0 %v4672
  %4754 = vmatprep.subr.bf16.mxu0 0
  %4755 = vmatpush1.bf16.msra.mxu0 %v4673
  %4756 = vmatprep.subr.bf16.mxu0 0
  %4757 = vmatpush1.bf16.msra.mxu0 %v4674
  %4758 = vmatprep.subr.bf16.mxu0 0
  %4759 = vmatpush1.bf16.msra.mxu0 %v4675
  %4760 = vmatprep.subr.bf16.mxu0 0
  %4761 = vmatpush1.bf16.msra.mxu0 %v4676
  %4762 = vmatprep.subr.bf16.mxu0 0
  %4763 = vmatpush1.bf16.msra.mxu0 %v4677
  %4764 = vmatprep.subr.bf16.mxu0 0
  %4765 = vmatpush1.bf16.msra.mxu0 %v4678
  %4766 = vmatprep.subr.bf16.mxu0 0
  %4767 = vmatpush1.bf16.msra.mxu0 0
  %4768 = vmatprep.subr.bf16.mxu0 0
  %4769 = vmatpush1.bf16.msra.mxu0 0
  %4770 = vmatprep.subr.bf16.mxu0 0
  %4771 = vmatpush1.bf16.msra.mxu0 0
  %4772 = vmatprep.subr.bf16.mxu0 0
  %4773 = vmatpush1.bf16.msra.mxu0 0
  %4774 = vmatprep.subr.bf16.mxu0 0
  %4775 = vmatpush1.bf16.msra.mxu0 0
  %4776 = vmatprep.subr.bf16.mxu0 0
  %4777 = vmatpush1.bf16.msra.mxu0 0
  %4778 = vmatprep.subr.bf16.mxu0 0
  %4779 = vmatpush1.bf16.msra.mxu0 0
  %4780 = vmatprep.mubr.bf16.mxu0 %v4706
  %4781 = vmatmul.mubr.bf16.gmra.mrb[0].mxu0 %v4549
  %v4782 = vpop.f32.mrb[0].mxu0
  %v4783 = vadd.f32 %v4743, %v4782
  %v4784 = vpop.f32.mrb[0].mxu0
  %v4785 = vpop.f32.mrb[0].mxu0
  %v4786 = vpop.f32.mrb[0].mxu0
  %4787 = vdwg.mxu0
  %v4788 = vmax.f32 %v4783, 0.0
  %v4789 = vpack.c.bf16 %v4788, %v4788
  %v4790 = vld [vmem:[%s10] sm:$0xf]
  %v4791 = vld [vmem:[%s10 + $0x4] sm:$0xf]
  %v4792 = vld [vmem:[%s10 + $0x8] sm:$0xf]
  %v4793 = vld [vmem:[%s10 + $0xc] sm:$0xf]
  %v4794 = vld [vmem:[%s10 + $0x10] sm:$0xf]
  %v4795 = vld [vmem:[%s10 + $0x14] sm:$0xf]
  %v4796 = vld [vmem:[%s10 + $0x18] sm:$0xf]
  %v4797 = vld [vmem:[%s10 + $0x1c] sm:$0xf]
  %v4798 = vld [vmem:[%s10 + $0x20] sm:$0xf]
  %v4799 = vld [vmem:[%s10 + $0x24] sm:$0xf]
  %v4800 = vld [vmem:[%s10 + $0x28] sm:$0xf]
  %v4801 = vld [vmem:[%s10 + $0x2c] sm:$0xf]
  %v4802 = vld [vmem:[%s10 + $0x30] sm:$0xf]
  %v4803 = vld [vmem:[%s10 + $0x34] sm:$0xf]
  %v4804 = vld [vmem:[%s10 + $0x38] sm:$0xf]
  %v4805 = vld [vmem:[%s10 + $0x3c] sm:$0xf]
  %v4806 = vld [vmem:[%s11] sm:$0x1]
  %v4808 = vlaneseq
  %v4809 = vshrl.u32 %v4808, 7
  %v4810 = vsub.s32 0, %v4809
  %v4811 = vrot.slane %v4806, %v4810
  %v4829 = vunpack.c.l.b16 %v4790
  %v4830 = vunpack.c.l.b16 %v4791
  %v4831 = vunpack.c.l.b16 %v4792
  %v4832 = vunpack.c.l.b16 %v4793
  %v4833 = vunpack.c.l.b16 %v4794
  %v4834 = vunpack.c.l.b16 %v4795
  %v4835 = vunpack.c.l.b16 %v4796
  %v4836 = vunpack.c.l.b16 %v4797
  %v4837 = vunpack.c.l.b16 %v4798
  %v4838 = vunpack.c.l.b16 %v4799
  %v4839 = vunpack.c.l.b16 %v4800
  %v4840 = vunpack.c.l.b16 %v4801
  %v4841 = vunpack.c.l.b16 %v4802
  %v4842 = vunpack.c.l.b16 %v4803
  %v4843 = vunpack.c.l.b16 %v4804
  %v4844 = vunpack.c.l.b16 %v4805
  %v4845 = vpack.c.b16 %v4830, %v4829
  %v4846 = vpack.c.b16 %v4832, %v4831
  %v4847 = vpack.c.b16 %v4834, %v4833
  %v4848 = vpack.c.b16 %v4836, %v4835
  %v4849 = vpack.c.b16 %v4838, %v4837
  %v4850 = vpack.c.b16 %v4840, %v4839
  %v4851 = vpack.c.b16 %v4842, %v4841
  %v4852 = vpack.c.b16 %v4844, %v4843
  %4861 = vmatprep.subr.bf16.mxu0 0
  %4862 = vmatpush1.bf16.msra.mxu0 %v4845
  %4863 = vmatprep.subr.bf16.mxu0 0
  %4864 = vmatpush1.bf16.msra.mxu0 %v4846
  %4865 = vmatprep.subr.bf16.mxu0 0
  %4866 = vmatpush1.bf16.msra.mxu0 %v4847
  %4867 = vmatprep.subr.bf16.mxu0 0
  %4868 = vmatpush1.bf16.msra.mxu0 %v4848
  %4869 = vmatprep.subr.bf16.mxu0 0
  %4870 = vmatpush1.bf16.msra.mxu0 %v4849
  %4871 = vmatprep.subr.bf16.mxu0 0
  %4872 = vmatpush1.bf16.msra.mxu0 %v4850
  %4873 = vmatprep.subr.bf16.mxu0 0
  %4874 = vmatpush1.bf16.msra.mxu0 %v4851
  %4875 = vmatprep.subr.bf16.mxu0 0
  %4876 = vmatpush1.bf16.msra.mxu0 %v4852
  %4877 = vmatprep.subr.bf16.mxu0 0
  %4878 = vmatpush1.bf16.msra.mxu0 0
  %4879 = vmatprep.subr.bf16.mxu0 0
  %4880 = vmatpush1.bf16.msra.mxu0 0
  %4881 = vmatprep.subr.bf16.mxu0 0
  %4882 = vmatpush1.bf16.msra.mxu0 0
  %4883 = vmatprep.subr.bf16.mxu0 0
  %4884 = vmatpush1.bf16.msra.mxu0 0
  %4885 = vmatprep.subr.bf16.mxu0 0
  %4886 = vmatpush1.bf16.msra.mxu0 0
  %4887 = vmatprep.subr.bf16.mxu0 0
  %4888 = vmatpush1.bf16.msra.mxu0 0
  %4889 = vmatprep.subr.bf16.mxu0 0
  %4890 = vmatpush1.bf16.msra.mxu0 0
  %4891 = vmatprep.subr.bf16.mxu0 0
  %4892 = vmatpush1.bf16.msra.mxu0 0
  %4893 = vmatprep.mubr.bf16.mxu0 0
  %4894 = vmatmul.mubr.bf16.gmra.mrb[0].mxu0 %v4789
  %v4895 = vpop.f32.mrb[0].mxu0
  %v4896 = vadd.f32 %v4811, %v4895
  %v4897 = vpop.f32.mrb[0].mxu0
  %v4898 = vpop.f32.mrb[0].mxu0
  %v4899 = vpop.f32.mrb[0].mxu0
  %4900 = vdwg.mxu0
  %v4901 = vmax.f32 %v4896, 0.0
  %v4902 = vadd.f32 %v4480, %v4481
  %v4903 = vld [vmem:[%s14] sm:$0x1]
  %v4905 = vlaneseq
  %v4906 = vshrl.u32 %v4905, 7
  %v4907 = vsub.s32 0, %v4906
  %v4908 = vrot.slane %v4903, %v4907
  %v4910 = vmul.f32 %v4901, %v4908
  %v4911 = vadd.f32 %v4902, %v4910
  %v4912 = vld [vmem:[%s12] sm:$0xff]
  %v4913 = vld [vmem:[%s13] sm:$0x1]
  %v4915 = vlaneseq
  %v4916 = vshrl.u32 %v4915, 7
  %v4917 = vsub.s32 0, %v4916
  %v4918 = vrot.slane %v4913, %v4917
  %v4920 = vmul.f32 %v4912, %v4918
  %v4921 = vadd.f32 %v4911, %v4920
  %vm4922 = vcmask 261120
  %v4923 = vsel %vm4922, %v4921, 0.0
  %4924 = vadd.xlane.f32.xlu0 %v4923
  %v4925 = vpop.xlane.xlu0 %4924
  %v4926 = vld [vmem:[#allocation2] sm:$0x1]
  %v4928 = vlaneseq
  %v4929 = vshrl.u32 %v4928, 7
  %v4930 = vsub.s32 0, %v4929
  %v4931 = vrot.slane %v4926, %v4930
  %v4933 = vadd.f32 %v4925, %v4931
  %v4934 = vsub.f32 0.0, %v4933
  %v4935 = vmul.f32 %v4934, 1.442695
  %v4936 = vpow.pop %v4935
  %v4937 = vadd.f32 %v4936, 1.0
  %v4938 = vrcp.pop %v4937
  %v4939 = vmul.f32 1.0, %v4938
  %4941 = vset.pattern.permute.xlu0 0
  %4942 = vperm.xlu0 %4941, %v4939
  %v4943 = vpop.permute.xlu0 %4942
  %4945 = vst [vmem:[%s16] sm:$0xff] %v4943
  // Predicated region
  $region66: #{forward.1} parent=0 // pred_check
    _
  $region67: #{forward.1} parent=0 // pred_check_branch
    %4947 = sbr.rel (0) target = $region69
  $region68: #{forward.1} parent=0 // pred_region
    _
  $region69: #{forward.1} parent=0 // pred_fallthru
    _
  // Predicated region
  $region70: #{forward.1} parent=0 // pred_check
    _
  $region71: #{forward.1} parent=0 // pred_check_branch
    %4949 = sbr.rel (0) target = $region73
  $region72: #{forward.1} parent=0 // pred_region
    _
  $region73: #{forward.1} parent=0 // pred_fallthru
    _

</llo_original>
